<compile_context>
chip_gen: v7x
topology: tpu7x:2x2x1
jax: 0.10.0
libtpu: 0.0.40
codegen_flags: <defaults>
</compile_context>

<pallas_src>
import functools

import jax
import jax.numpy as jnp
from jax import lax
from jax.experimental import pallas as pl
from jax.experimental.pallas import tpu as pltpu

EPS = 1e-5
LANES = 128


def _round_up(x, m):
    return (x + m - 1) // m * m


# --------------------------------------------------------------------- fused kernel
def _bottleneck_kernel(x_ref, w1_ref, w2_ref, w3_ref,
                       g1_ref, b1_ref, g2_ref, b2_ref, g3_ref, b3_ref,
                       o_ref, ypad_ref, *, n, h, w, rate):
    """Whole Atrous_Bottleneck forward on VMEM-resident data (single grid step)."""
    m = x_ref.shape[0]          # N*H*W rows
    cp = ypad_ref.shape[-1]     # lane-dense padded channel width (multiple of 128)
    inv_m = 1.0 / float(m)

    def bn(y, g, b, relu):
        # PyTorch training-mode BN: batch mean + biased variance, f32, two-pass variance.
        mean = jnp.sum(y, axis=0, keepdims=True) * inv_m
        d = y - mean
        var = jnp.sum(d * d, axis=0, keepdims=True) * inv_m
        out = d * (g * lax.rsqrt(var + EPS)) + b
        return jnp.maximum(out, 0.0) if relu else out

    x = x_ref[...]                                              # (M, CP) f32

    # ---- conv1 (1x1) + bn1 + relu --------------------------------------------------
    y = jnp.dot(x.astype(jnp.bfloat16), w1_ref[...],
                preferred_element_type=jnp.float32)             # (M, CP)
    y = bn(y, g1_ref[...], b1_ref[...], relu=True)

    # ---- conv2 (3x3, dilation=rate, padding=rate) + bn2 + relu -----------------------
    # Scatter y once into a zero-padded spatial scratch, then fold the 9 dilated taps
    # into the contraction dimension of one MXU matmul (K = 9*CP).  No HBM im2col.
    ypad_ref[...] = jnp.zeros_like(ypad_ref)
    ypad_ref[:, rate:rate + h, rate:rate + w, :] = y.reshape(n, h, w, cp)
    taps = [ypad_ref[:, ky * rate:ky * rate + h, kx * rate:kx * rate + w, :]
            for ky in range(3) for kx in range(3)]
    xt = jnp.concatenate(taps, axis=-1).reshape(m, 9 * cp)      # (M, 9*CP)
    y = jnp.dot(xt.astype(jnp.bfloat16), w2_ref[...],
                preferred_element_type=jnp.float32)             # (M, CP)
    y = bn(y, g2_ref[...], b2_ref[...], relu=True)

    # ---- conv3 (1x1) + bn3 + residual add (no ReLU after the add, per the module) ----
    y = jnp.dot(y.astype(jnp.bfloat16), w3_ref[...],
                preferred_element_type=jnp.float32)             # (M, CP)
    y = bn(y, g3_ref[...], b3_ref[...], relu=False)
    o_ref[...] = y + x


# ------------------------------------------------------------------ wrapper / host prep
def atrous_bottleneck_forward(x_nhwc, params, *, rate):
    n, h, w, cin = x_nhwc.shape
    planes = params["w1"].shape[1]
    cout = params["w3"].shape[1]
    assert cout == cin, "stride=1 / downsample=None requires inplanes == planes*expansion"
    m = n * h * w
    cp = _round_up(max(cin, planes, cout), LANES)   # lane-dense padded channel width

    f32, bf16 = jnp.float32, jnp.bfloat16

    # Host-side (XLA) prep: zero-pad channels to 128 lanes, pre-cast weights to bf16.
    x2d = jnp.zeros((m, cp), f32).at[:, :cin].set(x_nhwc.reshape(m, cin))
    w1 = jnp.zeros((cp, cp), f32).at[:cin, :planes].set(params["w1"]).astype(bf16)
    w2 = (jnp.zeros((9, cp, cp), f32)
          .at[:, :planes, :planes].set(params["w2"].reshape(9, planes, planes))
          .reshape(9 * cp, cp).astype(bf16))
    w3 = jnp.zeros((cp, cp), f32).at[:planes, :cout].set(params["w3"]).astype(bf16)

    def padvec(v, c):
        return jnp.zeros((1, cp), f32).at[:, :c].set(v.reshape(1, c))

    g1, b1 = padvec(params["g1"], planes), padvec(params["b1"], planes)
    g2, b2 = padvec(params["g2"], planes), padvec(params["b2"], planes)
    g3, b3 = padvec(params["g3"], cout), padvec(params["b3"], cout)

    def full_spec(shape):
        nd = len(shape)
        return pl.BlockSpec(shape, lambda i, _nd=nd: (0,) * _nd)

    kernel = functools.partial(_bottleneck_kernel, n=n, h=h, w=w, rate=rate)
    out_p = pl.pallas_call(
        kernel,
        out_shape=jax.ShapeDtypeStruct((m, cp), f32),
        grid=(1,),
        in_specs=[full_spec((m, cp)),
                  full_spec((cp, cp)), full_spec((9 * cp, cp)), full_spec((cp, cp)),
                  full_spec((1, cp)), full_spec((1, cp)),
                  full_spec((1, cp)), full_spec((1, cp)),
                  full_spec((1, cp)), full_spec((1, cp))],
        out_specs=full_spec((m, cp)),
        scratch_shapes=[pltpu.VMEM((n, h + 2 * rate, w + 2 * rate, cp), f32)],
        compiler_params=pltpu.CompilerParams(
            dimension_semantics=("arbitrary",),
            vmem_limit_bytes=32 * 1024 * 1024),
    )(x2d, w1, w2, w3, g1, b1, g2, b2, g3, b3)

    return out_p[:, :cout].reshape(n, h, w, cout)


# --------------------------------------------------------------------- pure-JAX reference
def reference_forward(x_nhwc, params, *, rate, conv_dtype=jnp.float32):
    """Pure-JAX reference.  conv_dtype=bfloat16 mirrors the kernel's MXU-feed precision."""

    def bn(y, g, b):
        mean = jnp.mean(y, axis=(0, 1, 2))
        var = jnp.mean((y - mean) ** 2, axis=(0, 1, 2))
        return (y - mean) * (g.reshape(-1) * lax.rsqrt(var + EPS)) + b.reshape(-1)

    def conv1x1(y, wt):
        return jnp.einsum("nhwc,cd->nhwd", y.astype(conv_dtype), wt.astype(conv_dtype),
                          preferred_element_type=jnp.float32)

    y = jax.nn.relu(bn(conv1x1(x_nhwc, params["w1"]), params["g1"], params["b1"]))
    y = lax.conv_general_dilated(
        y.astype(conv_dtype), params["w2"].astype(conv_dtype), window_strides=(1, 1),
        padding=[(rate, rate), (rate, rate)], rhs_dilation=(rate, rate),
        dimension_numbers=("NHWC", "HWIO", "NHWC"),
        preferred_element_type=jnp.float32)
    y = jax.nn.relu(bn(y, params["g2"], params["b2"]))
    y = bn(conv1x1(y, params["w3"]), params["g3"], params["b3"])
    return y + x_nhwc


if __name__ == "__main__":
    # Module config: inplanes=16, planes=4, expansion=4 (out channels 16 == inplanes),
    # stride=1, rate=2, downsample=None.  Input is NHWC (2, 16, 16, 16).
    N, H, W = 2, 16, 16
    inplanes, planes, rate = 16, 4, 2
    expansion = 4

    key = jax.random.PRNGKey(0)
    kx, k1, k2, k3, kg, kb = jax.random.split(key, 6)

    x = jax.random.normal(kx, (N, H, W, inplanes), jnp.float32)
    params = {
        "w1": 0.2 * jax.random.normal(k1, (inplanes, planes), jnp.float32),
        "w2": 0.2 * jax.random.normal(k2, (3, 3, planes, planes), jnp.float32),
        "w3": 0.2 * jax.random.normal(k3, (planes, planes * expansion), jnp.float32),
        "g1": 1.0 + 0.1 * jax.random.normal(kg, (1, planes), jnp.float32),
        "b1": 0.1 * jax.random.normal(kb, (1, planes), jnp.float32),
        "g2": 1.0 + 0.1 * jax.random.normal(jax.random.fold_in(kg, 2), (1, planes), jnp.float32),
        "b2": 0.1 * jax.random.normal(jax.random.fold_in(kb, 2), (1, planes), jnp.float32),
        "g3": 1.0 + 0.1 * jax.random.normal(jax.random.fold_in(kg, 3), (1, planes * expansion), jnp.float32),
        "b3": 0.1 * jax.random.normal(jax.random.fold_in(kb, 3), (1, planes * expansion), jnp.float32),
    }

    fwd = jax.jit(functools.partial(atrous_bottleneck_forward, rate=rate))
    out = jax.block_until_ready(fwd(x, params))
    assert out.shape == (N, H, W, planes * expansion)

    # Strict check against a reference with the same numerical contract
    # (bf16 MXU feeds, f32 accumulation / BN).
    ref_bf16 = reference_forward(x, params, rate=rate, conv_dtype=jnp.bfloat16)
    err_bf16 = float(jnp.max(jnp.abs(out - ref_bf16)))
    assert jnp.allclose(out, ref_bf16, rtol=1e-2, atol=1e-2), \
        f"max |out - ref_bf16| = {err_bf16}"

    # Loose sanity check against the full-f32 reference (headroom only for bf16 MXU feeds;
    # any structural bug — wrong tap, missing BN/ReLU, wrong residual — gives O(1) error).
    ref_f32 = reference_forward(x, params, rate=rate, conv_dtype=jnp.float32)
    err_f32 = float(jnp.max(jnp.abs(out - ref_f32)))
    assert err_f32 < 0.25, f"max |out - ref_f32| = {err_f32}"

    print("KERNEL_OK")
</pallas_src>

<mosaic_0001>
module attributes {stable_mosaic.version = 11 : i64} {
  func.func @_bottleneck_kernel(%arg0: i32, %arg1: memref<512x128xf32, #tpu.memory_space<vmem>>, %arg2: memref<128x128xbf16, #tpu.memory_space<vmem>>, %arg3: memref<1152x128xbf16, #tpu.memory_space<vmem>>, %arg4: memref<128x128xbf16, #tpu.memory_space<vmem>>, %arg5: memref<1x128xf32, #tpu.memory_space<vmem>>, %arg6: memref<1x128xf32, #tpu.memory_space<vmem>>, %arg7: memref<1x128xf32, #tpu.memory_space<vmem>>, %arg8: memref<1x128xf32, #tpu.memory_space<vmem>>, %arg9: memref<1x128xf32, #tpu.memory_space<vmem>>, %arg10: memref<1x128xf32, #tpu.memory_space<vmem>>, %arg11: memref<512x128xf32, #tpu.memory_space<vmem>>, %arg12: memref<2x20x20x128xf32, #tpu.memory_space<vmem>>) attributes {dimension_semantics = [#tpu.dimension_semantics<arbitrary>], iteration_bounds = array<i64: 1>, scalar_prefetch = 0 : i64, scratch_operands = 1 : i64, tpu.core_type = #tpu.core_type<tc>, window_params = [{pipeline_mode = #tpu.pipeline_mode<synchronous>, transform_indices = @transform_0, window_bounds = array<i64: 512, 128>}, {pipeline_mode = #tpu.pipeline_mode<synchronous>, transform_indices = @transform_1, window_bounds = array<i64: 128, 128>}, {pipeline_mode = #tpu.pipeline_mode<synchronous>, transform_indices = @transform_2, window_bounds = array<i64: 1152, 128>}, {pipeline_mode = #tpu.pipeline_mode<synchronous>, transform_indices = @transform_3, window_bounds = array<i64: 128, 128>}, {pipeline_mode = #tpu.pipeline_mode<synchronous>, transform_indices = @transform_4, window_bounds = array<i64: 1, 128>}, {pipeline_mode = #tpu.pipeline_mode<synchronous>, transform_indices = @transform_5, window_bounds = array<i64: 1, 128>}, {pipeline_mode = #tpu.pipeline_mode<synchronous>, transform_indices = @transform_6, window_bounds = array<i64: 1, 128>}, {pipeline_mode = #tpu.pipeline_mode<synchronous>, transform_indices = @transform_7, window_bounds = array<i64: 1, 128>}, {pipeline_mode = #tpu.pipeline_mode<synchronous>, transform_indices = @transform_8, window_bounds = array<i64: 1, 128>}, {pipeline_mode = #tpu.pipeline_mode<synchronous>, transform_indices = @transform_9, window_bounds = array<i64: 1, 128>}, {pipeline_mode = #tpu.pipeline_mode<synchronous>, transform_indices = @transform_10, window_bounds = array<i64: 512, 128>}]} {
    %c0 = arith.constant 0 : index
    %c0_0 = arith.constant 0 : index
    %0 = vector.load %arg1[%c0, %c0_0] : memref<512x128xf32, #tpu.memory_space<vmem>>, vector<512x128xf32>
    %1 = arith.truncf %0 : vector<512x128xf32> to vector<512x128xbf16>
    %c0_1 = arith.constant 0 : index
    %c0_2 = arith.constant 0 : index
    %2 = vector.load %arg2[%c0_1, %c0_2] : memref<128x128xbf16, #tpu.memory_space<vmem>>, vector<128x128xbf16>
    %cst = arith.constant dense<0.000000e+00> : vector<512x128xf32>
    %3 = tpu.matmul %1, %2, %cst {dimension_numbers = #tpu.dot_dimension_numbers<[1], [0], [0], [1], [0, 0, 1, 1], [], []>} : vector<512x128xbf16>, vector<128x128xbf16>, vector<512x128xf32> -> vector<512x128xf32>
    %c0_3 = arith.constant 0 : index
    %c0_4 = arith.constant 0 : index
    %4 = vector.load %arg5[%c0_3, %c0_4] : memref<1x128xf32, #tpu.memory_space<vmem>>, vector<1x128xf32>
    %c0_5 = arith.constant 0 : index
    %c0_6 = arith.constant 0 : index
    %5 = vector.load %arg6[%c0_5, %c0_6] : memref<1x128xf32, #tpu.memory_space<vmem>>, vector<1x128xf32>
    %cst_7 = arith.constant dense<0.000000e+00> : vector<128xf32>
    %6 = vector.multi_reduction <add>, %3, %cst_7 [0] : vector<512x128xf32> to vector<128xf32>
    %7 = vector.shape_cast %6 : vector<128xf32> to vector<1x128xf32>
    %cst_8 = arith.constant 0.001953125 : f32
    %8 = vector.broadcast %cst_8 : f32 to vector<1x128xf32>
    %9 = arith.mulf %7, %8 : vector<1x128xf32>
    %10 = vector.broadcast %9 : vector<1x128xf32> to vector<512x128xf32>
    %11 = arith.subf %3, %10 : vector<512x128xf32>
    %12 = arith.mulf %11, %11 : vector<512x128xf32>
    %cst_9 = arith.constant dense<0.000000e+00> : vector<128xf32>
    %13 = vector.multi_reduction <add>, %12, %cst_9 [0] : vector<512x128xf32> to vector<128xf32>
    %14 = vector.shape_cast %13 : vector<128xf32> to vector<1x128xf32>
    %cst_10 = arith.constant 0.001953125 : f32
    %15 = vector.broadcast %cst_10 : f32 to vector<1x128xf32>
    %16 = arith.mulf %14, %15 : vector<1x128xf32>
    %cst_11 = arith.constant 9.99999974E-6 : f32
    %17 = vector.broadcast %cst_11 : f32 to vector<1x128xf32>
    %18 = arith.addf %16, %17 : vector<1x128xf32>
    %19 = math.rsqrt %18 : vector<1x128xf32>
    %20 = arith.mulf %4, %19 : vector<1x128xf32>
    %21 = vector.broadcast %20 : vector<1x128xf32> to vector<512x128xf32>
    %22 = arith.mulf %11, %21 : vector<512x128xf32>
    %23 = vector.broadcast %5 : vector<1x128xf32> to vector<512x128xf32>
    %24 = arith.addf %22, %23 : vector<512x128xf32>
    %cst_12 = arith.constant 0.000000e+00 : f32
    %25 = vector.broadcast %cst_12 : f32 to vector<512x128xf32>
    %26 = arith.maximumf %24, %25 : vector<512x128xf32>
    %cst_13 = arith.constant 0.000000e+00 : f32
    %27 = vector.broadcast %cst_13 : f32 to vector<2x20x20x128xf32>
    %c0_14 = arith.constant 0 : index
    %c0_15 = arith.constant 0 : index
    %c0_16 = arith.constant 0 : index
    %c0_17 = arith.constant 0 : index
    %28 = vector.load %arg12[%c0_14, %c0_15, %c0_16, %c0_17] : memref<2x20x20x128xf32, #tpu.memory_space<vmem>>, vector<2x20x20x128xf32>
    tpu.vector_store %arg12[%c0_14, %c0_15, %c0_16, %c0_17], %27 {strides = array<i32>} : memref<2x20x20x128xf32, #tpu.memory_space<vmem>>, vector<2x20x20x128xf32>,
    %29 = vector.shape_cast %26 : vector<512x128xf32> to vector<2x16x16x128xf32>
    %c0_18 = arith.constant 0 : index
    %c2 = arith.constant 2 : index
    %c2_19 = arith.constant 2 : index
    %c0_20 = arith.constant 0 : index
    %30 = vector.load %arg12[%c0_18, %c2, %c2_19, %c0_20] : memref<2x20x20x128xf32, #tpu.memory_space<vmem>>, vector<2x16x16x128xf32>
    tpu.vector_store %arg12[%c0_18, %c2, %c2_19, %c0_20], %29 {strides = array<i32>} : memref<2x20x20x128xf32, #tpu.memory_space<vmem>>, vector<2x16x16x128xf32>,
    %c0_21 = arith.constant 0 : index
    %c0_22 = arith.constant 0 : index
    %c0_23 = arith.constant 0 : index
    %c0_24 = arith.constant 0 : index
    %31 = vector.load %arg12[%c0_21, %c0_22, %c0_23, %c0_24] : memref<2x20x20x128xf32, #tpu.memory_space<vmem>>, vector<2x16x16x128xf32>
    %c0_25 = arith.constant 0 : index
    %c0_26 = arith.constant 0 : index
    %c2_27 = arith.constant 2 : index
    %c0_28 = arith.constant 0 : index
    %32 = vector.load %arg12[%c0_25, %c0_26, %c2_27, %c0_28] : memref<2x20x20x128xf32, #tpu.memory_space<vmem>>, vector<2x16x16x128xf32>
    %c0_29 = arith.constant 0 : index
    %c0_30 = arith.constant 0 : index
    %c4 = arith.constant 4 : index
    %c0_31 = arith.constant 0 : index
    %33 = vector.load %arg12[%c0_29, %c0_30, %c4, %c0_31] : memref<2x20x20x128xf32, #tpu.memory_space<vmem>>, vector<2x16x16x128xf32>
    %c0_32 = arith.constant 0 : index
    %c2_33 = arith.constant 2 : index
    %c0_34 = arith.constant 0 : index
    %c0_35 = arith.constant 0 : index
    %34 = vector.load %arg12[%c0_32, %c2_33, %c0_34, %c0_35] : memref<2x20x20x128xf32, #tpu.memory_space<vmem>>, vector<2x16x16x128xf32>
    %c0_36 = arith.constant 0 : index
    %c2_37 = arith.constant 2 : index
    %c2_38 = arith.constant 2 : index
    %c0_39 = arith.constant 0 : index
    %35 = vector.load %arg12[%c0_36, %c2_37, %c2_38, %c0_39] : memref<2x20x20x128xf32, #tpu.memory_space<vmem>>, vector<2x16x16x128xf32>
    %c0_40 = arith.constant 0 : index
    %c2_41 = arith.constant 2 : index
    %c4_42 = arith.constant 4 : index
    %c0_43 = arith.constant 0 : index
    %36 = vector.load %arg12[%c0_40, %c2_41, %c4_42, %c0_43] : memref<2x20x20x128xf32, #tpu.memory_space<vmem>>, vector<2x16x16x128xf32>
    %c0_44 = arith.constant 0 : index
    %c4_45 = arith.constant 4 : index
    %c0_46 = arith.constant 0 : index
    %c0_47 = arith.constant 0 : index
    %37 = vector.load %arg12[%c0_44, %c4_45, %c0_46, %c0_47] : memref<2x20x20x128xf32, #tpu.memory_space<vmem>>, vector<2x16x16x128xf32>
    %c0_48 = arith.constant 0 : index
    %c4_49 = arith.constant 4 : index
    %c2_50 = arith.constant 2 : index
    %c0_51 = arith.constant 0 : index
    %38 = vector.load %arg12[%c0_48, %c4_49, %c2_50, %c0_51] : memref<2x20x20x128xf32, #tpu.memory_space<vmem>>, vector<2x16x16x128xf32>
    %c0_52 = arith.constant 0 : index
    %c4_53 = arith.constant 4 : index
    %c4_54 = arith.constant 4 : index
    %c0_55 = arith.constant 0 : index
    %39 = vector.load %arg12[%c0_52, %c4_53, %c4_54, %c0_55] : memref<2x20x20x128xf32, #tpu.memory_space<vmem>>, vector<2x16x16x128xf32>
    %40 = tpu.concatenate %31, %32, %33, %34, %35, %36, %37, %38, %39 in 3 : vector<2x16x16x128xf32>, vector<2x16x16x128xf32>, vector<2x16x16x128xf32>, vector<2x16x16x128xf32>, vector<2x16x16x128xf32>, vector<2x16x16x128xf32>, vector<2x16x16x128xf32>, vector<2x16x16x128xf32>, vector<2x16x16x128xf32> -> vector<2x16x16x1152xf32>
    %41 = vector.shape_cast %40 : vector<2x16x16x1152xf32> to vector<512x1152xf32>
    %42 = arith.truncf %41 : vector<512x1152xf32> to vector<512x1152xbf16>
    %c0_56 = arith.constant 0 : index
    %c0_57 = arith.constant 0 : index
    %43 = vector.load %arg3[%c0_56, %c0_57] : memref<1152x128xbf16, #tpu.memory_space<vmem>>, vector<1152x128xbf16>
    %cst_58 = arith.constant dense<0.000000e+00> : vector<512x128xf32>
    %44 = tpu.matmul %42, %43, %cst_58 {dimension_numbers = #tpu.dot_dimension_numbers<[1], [0], [0], [1], [0, 0, 1, 1], [], []>} : vector<512x1152xbf16>, vector<1152x128xbf16>, vector<512x128xf32> -> vector<512x128xf32>
    %c0_59 = arith.constant 0 : index
    %c0_60 = arith.constant 0 : index
    %45 = vector.load %arg7[%c0_59, %c0_60] : memref<1x128xf32, #tpu.memory_space<vmem>>, vector<1x128xf32>
    %c0_61 = arith.constant 0 : index
    %c0_62 = arith.constant 0 : index
    %46 = vector.load %arg8[%c0_61, %c0_62] : memref<1x128xf32, #tpu.memory_space<vmem>>, vector<1x128xf32>
    %cst_63 = arith.constant dense<0.000000e+00> : vector<128xf32>
    %47 = vector.multi_reduction <add>, %44, %cst_63 [0] : vector<512x128xf32> to vector<128xf32>
    %48 = vector.shape_cast %47 : vector<128xf32> to vector<1x128xf32>
    %cst_64 = arith.constant 0.001953125 : f32
    %49 = vector.broadcast %cst_64 : f32 to vector<1x128xf32>
    %50 = arith.mulf %48, %49 : vector<1x128xf32>
    %51 = vector.broadcast %50 : vector<1x128xf32> to vector<512x128xf32>
    %52 = arith.subf %44, %51 : vector<512x128xf32>
    %53 = arith.mulf %52, %52 : vector<512x128xf32>
    %cst_65 = arith.constant dense<0.000000e+00> : vector<128xf32>
    %54 = vector.multi_reduction <add>, %53, %cst_65 [0] : vector<512x128xf32> to vector<128xf32>
    %55 = vector.shape_cast %54 : vector<128xf32> to vector<1x128xf32>
    %cst_66 = arith.constant 0.001953125 : f32
    %56 = vector.broadcast %cst_66 : f32 to vector<1x128xf32>
    %57 = arith.mulf %55, %56 : vector<1x128xf32>
    %cst_67 = arith.constant 9.99999974E-6 : f32
    %58 = vector.broadcast %cst_67 : f32 to vector<1x128xf32>
    %59 = arith.addf %57, %58 : vector<1x128xf32>
    %60 = math.rsqrt %59 : vector<1x128xf32>
    %61 = arith.mulf %45, %60 : vector<1x128xf32>
    %62 = vector.broadcast %61 : vector<1x128xf32> to vector<512x128xf32>
    %63 = arith.mulf %52, %62 : vector<512x128xf32>
    %64 = vector.broadcast %46 : vector<1x128xf32> to vector<512x128xf32>
    %65 = arith.addf %63, %64 : vector<512x128xf32>
    %cst_68 = arith.constant 0.000000e+00 : f32
    %66 = vector.broadcast %cst_68 : f32 to vector<512x128xf32>
    %67 = arith.maximumf %65, %66 : vector<512x128xf32>
    %68 = arith.truncf %67 : vector<512x128xf32> to vector<512x128xbf16>
    %c0_69 = arith.constant 0 : index
    %c0_70 = arith.constant 0 : index
    %69 = vector.load %arg4[%c0_69, %c0_70] : memref<128x128xbf16, #tpu.memory_space<vmem>>, vector<128x128xbf16>
    %cst_71 = arith.constant dense<0.000000e+00> : vector<512x128xf32>
    %70 = tpu.matmul %68, %69, %cst_71 {dimension_numbers = #tpu.dot_dimension_numbers<[1], [0], [0], [1], [0, 0, 1, 1], [], []>} : vector<512x128xbf16>, vector<128x128xbf16>, vector<512x128xf32> -> vector<512x128xf32>
    %c0_72 = arith.constant 0 : index
    %c0_73 = arith.constant 0 : index
    %71 = vector.load %arg9[%c0_72, %c0_73] : memref<1x128xf32, #tpu.memory_space<vmem>>, vector<1x128xf32>
    %c0_74 = arith.constant 0 : index
    %c0_75 = arith.constant 0 : index
    %72 = vector.load %arg10[%c0_74, %c0_75] : memref<1x128xf32, #tpu.memory_space<vmem>>, vector<1x128xf32>
    %cst_76 = arith.constant dense<0.000000e+00> : vector<128xf32>
    %73 = vector.multi_reduction <add>, %70, %cst_76 [0] : vector<512x128xf32> to vector<128xf32>
    %74 = vector.shape_cast %73 : vector<128xf32> to vector<1x128xf32>
    %cst_77 = arith.constant 0.001953125 : f32
    %75 = vector.broadcast %cst_77 : f32 to vector<1x128xf32>
    %76 = arith.mulf %74, %75 : vector<1x128xf32>
    %77 = vector.broadcast %76 : vector<1x128xf32> to vector<512x128xf32>
    %78 = arith.subf %70, %77 : vector<512x128xf32>
    %79 = arith.mulf %78, %78 : vector<512x128xf32>
    %cst_78 = arith.constant dense<0.000000e+00> : vector<128xf32>
    %80 = vector.multi_reduction <add>, %79, %cst_78 [0] : vector<512x128xf32> to vector<128xf32>
    %81 = vector.shape_cast %80 : vector<128xf32> to vector<1x128xf32>
    %cst_79 = arith.constant 0.001953125 : f32
    %82 = vector.broadcast %cst_79 : f32 to vector<1x128xf32>
    %83 = arith.mulf %81, %82 : vector<1x128xf32>
    %cst_80 = arith.constant 9.99999974E-6 : f32
    %84 = vector.broadcast %cst_80 : f32 to vector<1x128xf32>
    %85 = arith.addf %83, %84 : vector<1x128xf32>
    %86 = math.rsqrt %85 : vector<1x128xf32>
    %87 = arith.mulf %71, %86 : vector<1x128xf32>
    %88 = vector.broadcast %87 : vector<1x128xf32> to vector<512x128xf32>
    %89 = arith.mulf %78, %88 : vector<512x128xf32>
    %90 = vector.broadcast %72 : vector<1x128xf32> to vector<512x128xf32>
    %91 = arith.addf %89, %90 : vector<512x128xf32>
    %92 = arith.addf %91, %0 : vector<512x128xf32>
    %c0_81 = arith.constant 0 : index
    %c0_82 = arith.constant 0 : index
    %93 = vector.load %arg11[%c0_81, %c0_82] : memref<512x128xf32, #tpu.memory_space<vmem>>, vector<512x128xf32>
    tpu.vector_store %arg11[%c0_81, %c0_82], %92 {strides = array<i32>} : memref<512x128xf32, #tpu.memory_space<vmem>>, vector<512x128xf32>,
    return
  }
  func.func @transform_0(%arg0: i32) -> (i32, i32) {
    %c0_i32 = arith.constant 0 : i32
    %c0_i32_0 = arith.constant 0 : i32
    %c0_i32_1 = arith.constant 0 : i32
    return %c0_i32, %c0_i32_0 : i32, i32
  }
  func.func @transform_1(%arg0: i32) -> (i32, i32) {
    %c0_i32 = arith.constant 0 : i32
    %c0_i32_0 = arith.constant 0 : i32
    %c0_i32_1 = arith.constant 0 : i32
    return %c0_i32, %c0_i32_0 : i32, i32
  }
  func.func @transform_2(%arg0: i32) -> (i32, i32) {
    %c0_i32 = arith.constant 0 : i32
    %c0_i32_0 = arith.constant 0 : i32
    %c0_i32_1 = arith.constant 0 : i32
    return %c0_i32, %c0_i32_0 : i32, i32
  }
  func.func @transform_3(%arg0: i32) -> (i32, i32) {
    %c0_i32 = arith.constant 0 : i32
    %c0_i32_0 = arith.constant 0 : i32
    %c0_i32_1 = arith.constant 0 : i32
    return %c0_i32, %c0_i32_0 : i32, i32
  }
  func.func @transform_4(%arg0: i32) -> (i32, i32) {
    %c0_i32 = arith.constant 0 : i32
    %c0_i32_0 = arith.constant 0 : i32
    %c0_i32_1 = arith.constant 0 : i32
    return %c0_i32, %c0_i32_0 : i32, i32
  }
  func.func @transform_5(%arg0: i32) -> (i32, i32) {
    %c0_i32 = arith.constant 0 : i32
    %c0_i32_0 = arith.constant 0 : i32
    %c0_i32_1 = arith.constant 0 : i32
    return %c0_i32, %c0_i32_0 : i32, i32
  }
  func.func @transform_6(%arg0: i32) -> (i32, i32) {
    %c0_i32 = arith.constant 0 : i32
    %c0_i32_0 = arith.constant 0 : i32
    %c0_i32_1 = arith.constant 0 : i32
    return %c0_i32, %c0_i32_0 : i32, i32
  }
  func.func @transform_7(%arg0: i32) -> (i32, i32) {
    %c0_i32 = arith.constant 0 : i32
    %c0_i32_0 = arith.constant 0 : i32
    %c0_i32_1 = arith.constant 0 : i32
    return %c0_i32, %c0_i32_0 : i32, i32
  }
  func.func @transform_8(%arg0: i32) -> (i32, i32) {
    %c0_i32 = arith.constant 0 : i32
    %c0_i32_0 = arith.constant 0 : i32
    %c0_i32_1 = arith.constant 0 : i32
    return %c0_i32, %c0_i32_0 : i32, i32
  }
  func.func @transform_9(%arg0: i32) -> (i32, i32) {
    %c0_i32 = arith.constant 0 : i32
    %c0_i32_0 = arith.constant 0 : i32
    %c0_i32_1 = arith.constant 0 : i32
    return %c0_i32, %c0_i32_0 : i32, i32
  }
  func.func @transform_10(%arg0: i32) -> (i32, i32) {
    %c0_i32 = arith.constant 0 : i32
    %c0_i32_0 = arith.constant 0 : i32
    %c0_i32_1 = arith.constant 0 : i32
    return %c0_i32, %c0_i32_0 : i32, i32
  }
}

</mosaic_0001>

<llo_original>
// kernel: atrous_bottleneck_forward.1
$region0: #{atrous_bottleneck_forward.1}
  #allocation0 [shape = 'u32[]', space=smem, size = 0x4, offset = 0x4, fixed_abs, tag = 'smem constant byte address 0x4 - core index']
  #allocation1 [shape = 'u32[144,128]{1,0:T(1,128)}', space=vmem, size = 0x12000, scoped, tag = 'internal scratch']
  #allocation2 [shape = 'f32[2,20,20,128]{3,2,1,0:T(8,128)}', space=vmem, size = 0x78000, scoped, tag = 'scratch operand']
  %s0 = inlined_call_operand.vmem [shape: f32[512,128], index: 0, kind: input, shape index: {}]
  %s1 = inlined_call_operand.vmem [shape: bf16[128,128], index: 1, kind: input, shape index: {}]
  %s2 = inlined_call_operand.vmem [shape: bf16[1152,128], index: 2, kind: input, shape index: {}]
  %s3 = inlined_call_operand.vmem [shape: bf16[128,128], index: 3, kind: input, shape index: {}]
  %s4 = inlined_call_operand.vmem [shape: f32[1,128], index: 4, kind: input, shape index: {}]
  %s5 = inlined_call_operand.vmem [shape: f32[1,128], index: 5, kind: input, shape index: {}]
  %s6 = inlined_call_operand.vmem [shape: f32[1,128], index: 6, kind: input, shape index: {}]
  %s7 = inlined_call_operand.vmem [shape: f32[1,128], index: 7, kind: input, shape index: {}]
  %s8 = inlined_call_operand.vmem [shape: f32[1,128], index: 8, kind: input, shape index: {}]
  %s9 = inlined_call_operand.vmem [shape: f32[1,128], index: 9, kind: input, shape index: {}]
  %s10 = inlined_call_operand.hbm [shape: f32[512,128], index: 10, kind: output, shape index: {}]
  %s11 = sld [smem:[#allocation0]]
  $region50: #{atrous_bottleneck_forward.1} parent=0
    _
  %s13 = ssub.s32 1, %s11
  %s14 = scalar_select 0, %s13, %s11
  $region1: #{atrous_bottleneck_forward.1} parent=0
    #allocation3 [shape = 'u8[262144]{0}', space=vmem, size = 0x40000, scoped, tag = 'output window, operand 0, single buffered']
    #allocation4 [shape = 's32[1]{0}', space=sflag, size = 0x4, scoped, tag = 'scoped memory for atrous_bottleneck_forward.1']
    %15 = vsyncpa [#allocation4], 0
    // Predicated region
    $region2: #{atrous_bottleneck_forward.1} parent=1 // pred_check
      _
    $region3: #{atrous_bottleneck_forward.1} parent=1 // pred_check_branch
      %17 = sbr.rel (0) target = $region5
    $region4: #{atrous_bottleneck_forward.1} parent=1 // pred_region
      _
    $region5: #{atrous_bottleneck_forward.1} parent=1 // pred_fallthru
      _
    // Predicated region
    $region6: #{atrous_bottleneck_forward.1} parent=1 // pred_check
      _
    $region7: #{atrous_bottleneck_forward.1} parent=1 // pred_check_branch
      %19 = sbr.rel (0) target = $region9
    $region8: #{atrous_bottleneck_forward.1} parent=1 // pred_region
      _
    $region9: #{atrous_bottleneck_forward.1} parent=1 // pred_fallthru
      _
    // Predicated region
    $region10: #{atrous_bottleneck_forward.1} parent=1 // pred_check
      _
    $region11: #{atrous_bottleneck_forward.1} parent=1 // pred_check_branch
      %21 = sbr.rel (0) target = $region13
    $region12: #{atrous_bottleneck_forward.1} parent=1 // pred_region
      _
    $region13: #{atrous_bottleneck_forward.1} parent=1 // pred_fallthru
      _
    // Predicated region
    $region14: #{atrous_bottleneck_forward.1} parent=1 // pred_check
      _
    $region15: #{atrous_bottleneck_forward.1} parent=1 // pred_check_branch
      %23 = sbr.rel (0) target = $region17
    $region16: #{atrous_bottleneck_forward.1} parent=1 // pred_region
      _
    $region17: #{atrous_bottleneck_forward.1} parent=1 // pred_fallthru
      _
    // Predicated region
    $region18: #{atrous_bottleneck_forward.1} parent=1 // pred_check
      _
    $region19: #{atrous_bottleneck_forward.1} parent=1 // pred_check_branch
      %25 = sbr.rel (0) target = $region21
    $region20: #{atrous_bottleneck_forward.1} parent=1 // pred_region
      _
    $region21: #{atrous_bottleneck_forward.1} parent=1 // pred_fallthru
      _
    // Predicated region
    $region22: #{atrous_bottleneck_forward.1} parent=1 // pred_check
      _
    $region23: #{atrous_bottleneck_forward.1} parent=1 // pred_check_branch
      %27 = sbr.rel (0) target = $region25
    $region24: #{atrous_bottleneck_forward.1} parent=1 // pred_region
      _
    $region25: #{atrous_bottleneck_forward.1} parent=1 // pred_fallthru
      _
    // Predicated region
    $region26: #{atrous_bottleneck_forward.1} parent=1 // pred_check
      _
    $region27: #{atrous_bottleneck_forward.1} parent=1 // pred_check_branch
      %29 = sbr.rel (0) target = $region29
    $region28: #{atrous_bottleneck_forward.1} parent=1 // pred_region
      _
    $region29: #{atrous_bottleneck_forward.1} parent=1 // pred_fallthru
      _
    // Predicated region
    $region30: #{atrous_bottleneck_forward.1} parent=1 // pred_check
      _
    $region31: #{atrous_bottleneck_forward.1} parent=1 // pred_check_branch
      %31 = sbr.rel (0) target = $region33
    $region32: #{atrous_bottleneck_forward.1} parent=1 // pred_region
      _
    $region33: #{atrous_bottleneck_forward.1} parent=1 // pred_fallthru
      _
    // Predicated region
    $region34: #{atrous_bottleneck_forward.1} parent=1 // pred_check
      _
    $region35: #{atrous_bottleneck_forward.1} parent=1 // pred_check_branch
      %33 = sbr.rel (0) target = $region37
    $region36: #{atrous_bottleneck_forward.1} parent=1 // pred_region
      _
    $region37: #{atrous_bottleneck_forward.1} parent=1 // pred_fallthru
      _
    // Predicated region
    $region38: #{atrous_bottleneck_forward.1} parent=1 // pred_check
      _
    $region39: #{atrous_bottleneck_forward.1} parent=1 // pred_check_branch
      %35 = sbr.rel (0) target = $region41
    $region40: #{atrous_bottleneck_forward.1} parent=1 // pred_region
      _
    $region41: #{atrous_bottleneck_forward.1} parent=1 // pred_fallthru
      _
    %v37 = vld [vmem:[%s0] sm:$0xff]
    %v38 = vld [vmem:[%s0 + $0x8] sm:$0xff]
    %v39 = vld [vmem:[%s0 + $0x10] sm:$0xff]
    %v40 = vld [vmem:[%s0 + $0x18] sm:$0xff]
    %v41 = vld [vmem:[%s0 + $0x20] sm:$0xff]
    %v42 = vld [vmem:[%s0 + $0x28] sm:$0xff]
    %v43 = vld [vmem:[%s0 + $0x30] sm:$0xff]
    %v44 = vld [vmem:[%s0 + $0x38] sm:$0xff]
    %v45 = vld [vmem:[%s0 + $0x40] sm:$0xff]
    %v46 = vld [vmem:[%s0 + $0x48] sm:$0xff]
    %v47 = vld [vmem:[%s0 + $0x50] sm:$0xff]
    %v48 = vld [vmem:[%s0 + $0x58] sm:$0xff]
    %v49 = vld [vmem:[%s0 + $0x60] sm:$0xff]
    %v50 = vld [vmem:[%s0 + $0x68] sm:$0xff]
    %v51 = vld [vmem:[%s0 + $0x70] sm:$0xff]
    %v52 = vld [vmem:[%s0 + $0x78] sm:$0xff]
    %v53 = vld [vmem:[%s0 + $0x80] sm:$0xff]
    %v54 = vld [vmem:[%s0 + $0x88] sm:$0xff]
    %v55 = vld [vmem:[%s0 + $0x90] sm:$0xff]
    %v56 = vld [vmem:[%s0 + $0x98] sm:$0xff]
    %v57 = vld [vmem:[%s0 + $0xa0] sm:$0xff]
    %v58 = vld [vmem:[%s0 + $0xa8] sm:$0xff]
    %v59 = vld [vmem:[%s0 + $0xb0] sm:$0xff]
    %v60 = vld [vmem:[%s0 + $0xb8] sm:$0xff]
    %v61 = vld [vmem:[%s0 + $0xc0] sm:$0xff]
    %v62 = vld [vmem:[%s0 + $0xc8] sm:$0xff]
    %v63 = vld [vmem:[%s0 + $0xd0] sm:$0xff]
    %v64 = vld [vmem:[%s0 + $0xd8] sm:$0xff]
    %v65 = vld [vmem:[%s0 + $0xe0] sm:$0xff]
    %v66 = vld [vmem:[%s0 + $0xe8] sm:$0xff]
    %v67 = vld [vmem:[%s0 + $0xf0] sm:$0xff]
    %v68 = vld [vmem:[%s0 + $0xf8] sm:$0xff]
    %v69 = vld [vmem:[%s0 + $0x100] sm:$0xff]
    %v70 = vld [vmem:[%s0 + $0x108] sm:$0xff]
    %v71 = vld [vmem:[%s0 + $0x110] sm:$0xff]
    %v72 = vld [vmem:[%s0 + $0x118] sm:$0xff]
    %v73 = vld [vmem:[%s0 + $0x120] sm:$0xff]
    %v74 = vld [vmem:[%s0 + $0x128] sm:$0xff]
    %v75 = vld [vmem:[%s0 + $0x130] sm:$0xff]
    %v76 = vld [vmem:[%s0 + $0x138] sm:$0xff]
    %v77 = vld [vmem:[%s0 + $0x140] sm:$0xff]
    %v78 = vld [vmem:[%s0 + $0x148] sm:$0xff]
    %v79 = vld [vmem:[%s0 + $0x150] sm:$0xff]
    %v80 = vld [vmem:[%s0 + $0x158] sm:$0xff]
    %v81 = vld [vmem:[%s0 + $0x160] sm:$0xff]
    %v82 = vld [vmem:[%s0 + $0x168] sm:$0xff]
    %v83 = vld [vmem:[%s0 + $0x170] sm:$0xff]
    %v84 = vld [vmem:[%s0 + $0x178] sm:$0xff]
    %v85 = vld [vmem:[%s0 + $0x180] sm:$0xff]
    %v86 = vld [vmem:[%s0 + $0x188] sm:$0xff]
    %v87 = vld [vmem:[%s0 + $0x190] sm:$0xff]
    %v88 = vld [vmem:[%s0 + $0x198] sm:$0xff]
    %v89 = vld [vmem:[%s0 + $0x1a0] sm:$0xff]
    %v90 = vld [vmem:[%s0 + $0x1a8] sm:$0xff]
    %v91 = vld [vmem:[%s0 + $0x1b0] sm:$0xff]
    %v92 = vld [vmem:[%s0 + $0x1b8] sm:$0xff]
    %v93 = vld [vmem:[%s0 + $0x1c0] sm:$0xff]
    %v94 = vld [vmem:[%s0 + $0x1c8] sm:$0xff]
    %v95 = vld [vmem:[%s0 + $0x1d0] sm:$0xff]
    %v96 = vld [vmem:[%s0 + $0x1d8] sm:$0xff]
    %v97 = vld [vmem:[%s0 + $0x1e0] sm:$0xff]
    %v98 = vld [vmem:[%s0 + $0x1e8] sm:$0xff]
    %v99 = vld [vmem:[%s0 + $0x1f0] sm:$0xff]
    %v100 = vld [vmem:[%s0 + $0x1f8] sm:$0xff]
    %v101 = vpack.c.bf16 %v38, %v37
    %v102 = vpack.c.bf16 %v40, %v39
    %v103 = vpack.c.bf16 %v42, %v41
    %v104 = vpack.c.bf16 %v44, %v43
    %v105 = vpack.c.bf16 %v46, %v45
    %v106 = vpack.c.bf16 %v48, %v47
    %v107 = vpack.c.bf16 %v50, %v49
    %v108 = vpack.c.bf16 %v52, %v51
    %v109 = vpack.c.bf16 %v54, %v53
    %v110 = vpack.c.bf16 %v56, %v55
    %v111 = vpack.c.bf16 %v58, %v57
    %v112 = vpack.c.bf16 %v60, %v59
    %v113 = vpack.c.bf16 %v62, %v61
    %v114 = vpack.c.bf16 %v64, %v63
    %v115 = vpack.c.bf16 %v66, %v65
    %v116 = vpack.c.bf16 %v68, %v67
    %v117 = vpack.c.bf16 %v70, %v69
    %v118 = vpack.c.bf16 %v72, %v71
    %v119 = vpack.c.bf16 %v74, %v73
    %v120 = vpack.c.bf16 %v76, %v75
    %v121 = vpack.c.bf16 %v78, %v77
    %v122 = vpack.c.bf16 %v80, %v79
    %v123 = vpack.c.bf16 %v82, %v81
    %v124 = vpack.c.bf16 %v84, %v83
    %v125 = vpack.c.bf16 %v86, %v85
    %v126 = vpack.c.bf16 %v88, %v87
    %v127 = vpack.c.bf16 %v90, %v89
    %v128 = vpack.c.bf16 %v92, %v91
    %v129 = vpack.c.bf16 %v94, %v93
    %v130 = vpack.c.bf16 %v96, %v95
    %v131 = vpack.c.bf16 %v98, %v97
    %v132 = vpack.c.bf16 %v100, %v99
    %v133 = vld [vmem:[%s1] sm:$0xf]
    %v134 = vld [vmem:[%s1 + $0x4] sm:$0xf]
    %v135 = vld [vmem:[%s1 + $0x8] sm:$0xf]
    %v136 = vld [vmem:[%s1 + $0xc] sm:$0xf]
    %v137 = vld [vmem:[%s1 + $0x10] sm:$0xf]
    %v138 = vld [vmem:[%s1 + $0x14] sm:$0xf]
    %v139 = vld [vmem:[%s1 + $0x18] sm:$0xf]
    %v140 = vld [vmem:[%s1 + $0x1c] sm:$0xf]
    %v141 = vld [vmem:[%s1 + $0x20] sm:$0xf]
    %v142 = vld [vmem:[%s1 + $0x24] sm:$0xf]
    %v143 = vld [vmem:[%s1 + $0x28] sm:$0xf]
    %v144 = vld [vmem:[%s1 + $0x2c] sm:$0xf]
    %v145 = vld [vmem:[%s1 + $0x30] sm:$0xf]
    %v146 = vld [vmem:[%s1 + $0x34] sm:$0xf]
    %v147 = vld [vmem:[%s1 + $0x38] sm:$0xf]
    %v148 = vld [vmem:[%s1 + $0x3c] sm:$0xf]
    %v165 = vunpack.c.l.b16 %v133
    %v166 = vunpack.c.l.b16 %v134
    %v167 = vunpack.c.l.b16 %v135
    %v168 = vunpack.c.l.b16 %v136
    %v169 = vunpack.c.l.b16 %v137
    %v170 = vunpack.c.l.b16 %v138
    %v171 = vunpack.c.l.b16 %v139
    %v172 = vunpack.c.l.b16 %v140
    %v173 = vunpack.c.l.b16 %v141
    %v174 = vunpack.c.l.b16 %v142
    %v175 = vunpack.c.l.b16 %v143
    %v176 = vunpack.c.l.b16 %v144
    %v177 = vunpack.c.l.b16 %v145
    %v178 = vunpack.c.l.b16 %v146
    %v179 = vunpack.c.l.b16 %v147
    %v180 = vunpack.c.l.b16 %v148
    %v181 = vpack.c.b16 %v166, %v165
    %v182 = vpack.c.b16 %v168, %v167
    %v183 = vpack.c.b16 %v170, %v169
    %v184 = vpack.c.b16 %v172, %v171
    %v185 = vpack.c.b16 %v174, %v173
    %v186 = vpack.c.b16 %v176, %v175
    %v187 = vpack.c.b16 %v178, %v177
    %v188 = vpack.c.b16 %v180, %v179
    %197 = vmatprep.subr.bf16.mxu0 0
    %198 = vmatpush1.bf16.msra.mxu0 %v181
    %199 = vmatprep.subr.bf16.mxu0 0
    %200 = vmatpush1.bf16.msra.mxu0 %v182
    %201 = vmatprep.subr.bf16.mxu0 0
    %202 = vmatpush1.bf16.msra.mxu0 %v183
    %203 = vmatprep.subr.bf16.mxu0 0
    %204 = vmatpush1.bf16.msra.mxu0 %v184
    %205 = vmatprep.subr.bf16.mxu0 0
    %206 = vmatpush1.bf16.msra.mxu0 %v185
    %207 = vmatprep.subr.bf16.mxu0 0
    %208 = vmatpush1.bf16.msra.mxu0 %v186
    %209 = vmatprep.subr.bf16.mxu0 0
    %210 = vmatpush1.bf16.msra.mxu0 %v187
    %211 = vmatprep.subr.bf16.mxu0 0
    %212 = vmatpush1.bf16.msra.mxu0 %v188
    %213 = vmatprep.subr.bf16.mxu0 0
    %214 = vmatpush1.bf16.msra.mxu0 0
    %215 = vmatprep.subr.bf16.mxu0 0
    %216 = vmatpush1.bf16.msra.mxu0 0
    %217 = vmatprep.subr.bf16.mxu0 0
    %218 = vmatpush1.bf16.msra.mxu0 0
    %219 = vmatprep.subr.bf16.mxu0 0
    %220 = vmatpush1.bf16.msra.mxu0 0
    %221 = vmatprep.subr.bf16.mxu0 0
    %222 = vmatpush1.bf16.msra.mxu0 0
    %223 = vmatprep.subr.bf16.mxu0 0
    %224 = vmatpush1.bf16.msra.mxu0 0
    %225 = vmatprep.subr.bf16.mxu0 0
    %226 = vmatpush1.bf16.msra.mxu0 0
    %227 = vmatprep.subr.bf16.mxu0 0
    %228 = vmatpush1.bf16.msra.mxu0 0
    %229 = vmatprep.mubr.bf16.mxu0 0
    %230 = vmatmul.mubr.bf16.gmra.mrb[0].mxu0 %v101
    %v231 = vpop.f32.mrb[0].mxu0
    %v232 = vadd.f32 0.0, %v231
    %v233 = vpop.f32.mrb[0].mxu0
    %v234 = vpop.f32.mrb[0].mxu0
    %v235 = vadd.f32 0.0, %v234
    %v236 = vpop.f32.mrb[0].mxu0
    %237 = vmatprep.mubr.bf16.mxu0 0
    %238 = vmatmul.mubr.bf16.gmra.mrb[0].mxu0 %v102
    %v239 = vpop.f32.mrb[0].mxu0
    %v240 = vadd.f32 0.0, %v239
    %v241 = vpop.f32.mrb[0].mxu0
    %v242 = vpop.f32.mrb[0].mxu0
    %v243 = vadd.f32 0.0, %v242
    %v244 = vpop.f32.mrb[0].mxu0
    %245 = vmatprep.mubr.bf16.mxu0 0
    %246 = vmatmul.mubr.bf16.gmra.mrb[0].mxu0 %v103
    %v247 = vpop.f32.mrb[0].mxu0
    %v248 = vadd.f32 0.0, %v247
    %v249 = vpop.f32.mrb[0].mxu0
    %v250 = vpop.f32.mrb[0].mxu0
    %v251 = vadd.f32 0.0, %v250
    %v252 = vpop.f32.mrb[0].mxu0
    %253 = vmatprep.mubr.bf16.mxu0 0
    %254 = vmatmul.mubr.bf16.gmra.mrb[0].mxu0 %v104
    %v255 = vpop.f32.mrb[0].mxu0
    %v256 = vadd.f32 0.0, %v255
    %v257 = vpop.f32.mrb[0].mxu0
    %v258 = vpop.f32.mrb[0].mxu0
    %v259 = vadd.f32 0.0, %v258
    %v260 = vpop.f32.mrb[0].mxu0
    %261 = vmatprep.mubr.bf16.mxu0 0
    %262 = vmatmul.mubr.bf16.gmra.mrb[0].mxu0 %v105
    %v263 = vpop.f32.mrb[0].mxu0
    %v264 = vadd.f32 0.0, %v263
    %v265 = vpop.f32.mrb[0].mxu0
    %v266 = vpop.f32.mrb[0].mxu0
    %v267 = vadd.f32 0.0, %v266
    %v268 = vpop.f32.mrb[0].mxu0
    %269 = vmatprep.mubr.bf16.mxu0 0
    %270 = vmatmul.mubr.bf16.gmra.mrb[0].mxu0 %v106
    %v271 = vpop.f32.mrb[0].mxu0
    %v272 = vadd.f32 0.0, %v271
    %v273 = vpop.f32.mrb[0].mxu0
    %v274 = vpop.f32.mrb[0].mxu0
    %v275 = vadd.f32 0.0, %v274
    %v276 = vpop.f32.mrb[0].mxu0
    %277 = vmatprep.mubr.bf16.mxu0 0
    %278 = vmatmul.mubr.bf16.gmra.mrb[0].mxu0 %v107
    %v279 = vpop.f32.mrb[0].mxu0
    %v280 = vadd.f32 0.0, %v279
    %v281 = vpop.f32.mrb[0].mxu0
    %v282 = vpop.f32.mrb[0].mxu0
    %v283 = vadd.f32 0.0, %v282
    %v284 = vpop.f32.mrb[0].mxu0
    %285 = vmatprep.mubr.bf16.mxu0 0
    %286 = vmatmul.mubr.bf16.gmra.mrb[0].mxu0 %v108
    %v287 = vpop.f32.mrb[0].mxu0
    %v288 = vadd.f32 0.0, %v287
    %v289 = vpop.f32.mrb[0].mxu0
    %v290 = vpop.f32.mrb[0].mxu0
    %v291 = vadd.f32 0.0, %v290
    %v292 = vpop.f32.mrb[0].mxu0
    %293 = vmatprep.mubr.bf16.mxu0 0
    %294 = vmatmul.mubr.bf16.gmra.mrb[0].mxu0 %v109
    %v295 = vpop.f32.mrb[0].mxu0
    %v296 = vadd.f32 0.0, %v295
    %v297 = vpop.f32.mrb[0].mxu0
    %v298 = vpop.f32.mrb[0].mxu0
    %v299 = vadd.f32 0.0, %v298
    %v300 = vpop.f32.mrb[0].mxu0
    %301 = vmatprep.mubr.bf16.mxu0 0
    %302 = vmatmul.mubr.bf16.gmra.mrb[0].mxu0 %v110
    %v303 = vpop.f32.mrb[0].mxu0
    %v304 = vadd.f32 0.0, %v303
    %v305 = vpop.f32.mrb[0].mxu0
    %v306 = vpop.f32.mrb[0].mxu0
    %v307 = vadd.f32 0.0, %v306
    %v308 = vpop.f32.mrb[0].mxu0
    %309 = vmatprep.mubr.bf16.mxu0 0
    %310 = vmatmul.mubr.bf16.gmra.mrb[0].mxu0 %v111
    %v311 = vpop.f32.mrb[0].mxu0
    %v312 = vadd.f32 0.0, %v311
    %v313 = vpop.f32.mrb[0].mxu0
    %v314 = vpop.f32.mrb[0].mxu0
    %v315 = vadd.f32 0.0, %v314
    %v316 = vpop.f32.mrb[0].mxu0
    %317 = vmatprep.mubr.bf16.mxu0 0
    %318 = vmatmul.mubr.bf16.gmra.mrb[0].mxu0 %v112
    %v319 = vpop.f32.mrb[0].mxu0
    %v320 = vadd.f32 0.0, %v319
    %v321 = vpop.f32.mrb[0].mxu0
    %v322 = vpop.f32.mrb[0].mxu0
    %v323 = vadd.f32 0.0, %v322
    %v324 = vpop.f32.mrb[0].mxu0
    %325 = vmatprep.mubr.bf16.mxu0 0
    %326 = vmatmul.mubr.bf16.gmra.mrb[0].mxu0 %v113
    %v327 = vpop.f32.mrb[0].mxu0
    %v328 = vadd.f32 0.0, %v327
    %v329 = vpop.f32.mrb[0].mxu0
    %v330 = vpop.f32.mrb[0].mxu0
    %v331 = vadd.f32 0.0, %v330
    %v332 = vpop.f32.mrb[0].mxu0
    %333 = vmatprep.mubr.bf16.mxu0 0
    %334 = vmatmul.mubr.bf16.gmra.mrb[0].mxu0 %v114
    %v335 = vpop.f32.mrb[0].mxu0
    %v336 = vadd.f32 0.0, %v335
    %v337 = vpop.f32.mrb[0].mxu0
    %v338 = vpop.f32.mrb[0].mxu0
    %v339 = vadd.f32 0.0, %v338
    %v340 = vpop.f32.mrb[0].mxu0
    %341 = vmatprep.mubr.bf16.mxu0 0
    %342 = vmatmul.mubr.bf16.gmra.mrb[0].mxu0 %v115
    %v343 = vpop.f32.mrb[0].mxu0
    %v344 = vadd.f32 0.0, %v343
    %v345 = vpop.f32.mrb[0].mxu0
    %v346 = vpop.f32.mrb[0].mxu0
    %v347 = vadd.f32 0.0, %v346
    %v348 = vpop.f32.mrb[0].mxu0
    %349 = vmatprep.mubr.bf16.mxu0 0
    %350 = vmatmul.mubr.bf16.gmra.mrb[0].mxu0 %v116
    %v351 = vpop.f32.mrb[0].mxu0
    %v352 = vadd.f32 0.0, %v351
    %v353 = vpop.f32.mrb[0].mxu0
    %v354 = vpop.f32.mrb[0].mxu0
    %v355 = vadd.f32 0.0, %v354
    %v356 = vpop.f32.mrb[0].mxu0
    %357 = vmatprep.mubr.bf16.mxu0 0
    %358 = vmatmul.mubr.bf16.gmra.mrb[0].mxu0 %v117
    %v359 = vpop.f32.mrb[0].mxu0
    %v360 = vadd.f32 0.0, %v359
    %v361 = vpop.f32.mrb[0].mxu0
    %v362 = vpop.f32.mrb[0].mxu0
    %v363 = vadd.f32 0.0, %v362
    %v364 = vpop.f32.mrb[0].mxu0
    %365 = vmatprep.mubr.bf16.mxu0 0
    %366 = vmatmul.mubr.bf16.gmra.mrb[0].mxu0 %v118
    %v367 = vpop.f32.mrb[0].mxu0
    %v368 = vadd.f32 0.0, %v367
    %v369 = vpop.f32.mrb[0].mxu0
    %v370 = vpop.f32.mrb[0].mxu0
    %v371 = vadd.f32 0.0, %v370
    %v372 = vpop.f32.mrb[0].mxu0
    %373 = vmatprep.mubr.bf16.mxu0 0
    %374 = vmatmul.mubr.bf16.gmra.mrb[0].mxu0 %v119
    %v375 = vpop.f32.mrb[0].mxu0
    %v376 = vadd.f32 0.0, %v375
    %v377 = vpop.f32.mrb[0].mxu0
    %v378 = vpop.f32.mrb[0].mxu0
    %v379 = vadd.f32 0.0, %v378
    %v380 = vpop.f32.mrb[0].mxu0
    %381 = vmatprep.mubr.bf16.mxu0 0
    %382 = vmatmul.mubr.bf16.gmra.mrb[0].mxu0 %v120
    %v383 = vpop.f32.mrb[0].mxu0
    %v384 = vadd.f32 0.0, %v383
    %v385 = vpop.f32.mrb[0].mxu0
    %v386 = vpop.f32.mrb[0].mxu0
    %v387 = vadd.f32 0.0, %v386
    %v388 = vpop.f32.mrb[0].mxu0
    %389 = vmatprep.mubr.bf16.mxu0 0
    %390 = vmatmul.mubr.bf16.gmra.mrb[0].mxu0 %v121
    %v391 = vpop.f32.mrb[0].mxu0
    %v392 = vadd.f32 0.0, %v391
    %v393 = vpop.f32.mrb[0].mxu0
    %v394 = vpop.f32.mrb[0].mxu0
    %v395 = vadd.f32 0.0, %v394
    %v396 = vpop.f32.mrb[0].mxu0
    %397 = vmatprep.mubr.bf16.mxu0 0
    %398 = vmatmul.mubr.bf16.gmra.mrb[0].mxu0 %v122
    %v399 = vpop.f32.mrb[0].mxu0
    %v400 = vadd.f32 0.0, %v399
    %v401 = vpop.f32.mrb[0].mxu0
    %v402 = vpop.f32.mrb[0].mxu0
    %v403 = vadd.f32 0.0, %v402
    %v404 = vpop.f32.mrb[0].mxu0
    %405 = vmatprep.mubr.bf16.mxu0 0
    %406 = vmatmul.mubr.bf16.gmra.mrb[0].mxu0 %v123
    %v407 = vpop.f32.mrb[0].mxu0
    %v408 = vadd.f32 0.0, %v407
    %v409 = vpop.f32.mrb[0].mxu0
    %v410 = vpop.f32.mrb[0].mxu0
    %v411 = vadd.f32 0.0, %v410
    %v412 = vpop.f32.mrb[0].mxu0
    %413 = vmatprep.mubr.bf16.mxu0 0
    %414 = vmatmul.mubr.bf16.gmra.mrb[0].mxu0 %v124
    %v415 = vpop.f32.mrb[0].mxu0
    %v416 = vadd.f32 0.0, %v415
    %v417 = vpop.f32.mrb[0].mxu0
    %v418 = vpop.f32.mrb[0].mxu0
    %v419 = vadd.f32 0.0, %v418
    %v420 = vpop.f32.mrb[0].mxu0
    %421 = vmatprep.mubr.bf16.mxu0 0
    %422 = vmatmul.mubr.bf16.gmra.mrb[0].mxu0 %v125
    %v423 = vpop.f32.mrb[0].mxu0
    %v424 = vadd.f32 0.0, %v423
    %v425 = vpop.f32.mrb[0].mxu0
    %v426 = vpop.f32.mrb[0].mxu0
    %v427 = vadd.f32 0.0, %v426
    %v428 = vpop.f32.mrb[0].mxu0
    %429 = vmatprep.mubr.bf16.mxu0 0
    %430 = vmatmul.mubr.bf16.gmra.mrb[0].mxu0 %v126
    %v431 = vpop.f32.mrb[0].mxu0
    %v432 = vadd.f32 0.0, %v431
    %v433 = vpop.f32.mrb[0].mxu0
    %v434 = vpop.f32.mrb[0].mxu0
    %v435 = vadd.f32 0.0, %v434
    %v436 = vpop.f32.mrb[0].mxu0
    %437 = vmatprep.mubr.bf16.mxu0 0
    %438 = vmatmul.mubr.bf16.gmra.mrb[0].mxu0 %v127
    %v439 = vpop.f32.mrb[0].mxu0
    %v440 = vadd.f32 0.0, %v439
    %v441 = vpop.f32.mrb[0].mxu0
    %v442 = vpop.f32.mrb[0].mxu0
    %v443 = vadd.f32 0.0, %v442
    %v444 = vpop.f32.mrb[0].mxu0
    %445 = vmatprep.mubr.bf16.mxu0 0
    %446 = vmatmul.mubr.bf16.gmra.mrb[0].mxu0 %v128
    %v447 = vpop.f32.mrb[0].mxu0
    %v448 = vadd.f32 0.0, %v447
    %v449 = vpop.f32.mrb[0].mxu0
    %v450 = vpop.f32.mrb[0].mxu0
    %v451 = vadd.f32 0.0, %v450
    %v452 = vpop.f32.mrb[0].mxu0
    %453 = vmatprep.mubr.bf16.mxu0 0
    %454 = vmatmul.mubr.bf16.gmra.mrb[0].mxu0 %v129
    %v455 = vpop.f32.mrb[0].mxu0
    %v456 = vadd.f32 0.0, %v455
    %v457 = vpop.f32.mrb[0].mxu0
    %v458 = vpop.f32.mrb[0].mxu0
    %v459 = vadd.f32 0.0, %v458
    %v460 = vpop.f32.mrb[0].mxu0
    %461 = vmatprep.mubr.bf16.mxu0 0
    %462 = vmatmul.mubr.bf16.gmra.mrb[0].mxu0 %v130
    %v463 = vpop.f32.mrb[0].mxu0
    %v464 = vadd.f32 0.0, %v463
    %v465 = vpop.f32.mrb[0].mxu0
    %v466 = vpop.f32.mrb[0].mxu0
    %v467 = vadd.f32 0.0, %v466
    %v468 = vpop.f32.mrb[0].mxu0
    %469 = vmatprep.mubr.bf16.mxu0 0
    %470 = vmatmul.mubr.bf16.gmra.mrb[0].mxu0 %v131
    %v471 = vpop.f32.mrb[0].mxu0
    %v472 = vadd.f32 0.0, %v471
    %v473 = vpop.f32.mrb[0].mxu0
    %v474 = vpop.f32.mrb[0].mxu0
    %v475 = vadd.f32 0.0, %v474
    %v476 = vpop.f32.mrb[0].mxu0
    %477 = vmatprep.mubr.bf16.mxu0 0
    %478 = vmatmul.mubr.bf16.gmra.mrb[0].mxu0 %v132
    %v479 = vpop.f32.mrb[0].mxu0
    %v480 = vadd.f32 0.0, %v479
    %v481 = vpop.f32.mrb[0].mxu0
    %v482 = vpop.f32.mrb[0].mxu0
    %v483 = vadd.f32 0.0, %v482
    %v484 = vpop.f32.mrb[0].mxu0
    %485 = vdwg.mxu0
    %v486 = vld [vmem:[%s4] sm:$0x1]
    %v487 = vld [vmem:[%s5] sm:$0x1]
    %v488 = vadd.f32 %v232, %v235
    %v489 = vadd.f32 %v488, %v240
    %v490 = vadd.f32 %v489, %v243
    %v491 = vadd.f32 %v490, %v248
    %v492 = vadd.f32 %v491, %v251
    %v493 = vadd.f32 %v492, %v256
    %v494 = vadd.f32 %v493, %v259
    %v495 = vadd.f32 %v494, %v264
    %v496 = vadd.f32 %v495, %v267
    %v497 = vadd.f32 %v496, %v272
    %v498 = vadd.f32 %v497, %v275
    %v499 = vadd.f32 %v498, %v280
    %v500 = vadd.f32 %v499, %v283
    %v501 = vadd.f32 %v500, %v288
    %v502 = vadd.f32 %v501, %v291
    %v503 = vadd.f32 %v502, %v296
    %v504 = vadd.f32 %v503, %v299
    %v505 = vadd.f32 %v504, %v304
    %v506 = vadd.f32 %v505, %v307
    %v507 = vadd.f32 %v506, %v312
    %v508 = vadd.f32 %v507, %v315
    %v509 = vadd.f32 %v508, %v320
    %v510 = vadd.f32 %v509, %v323
    %v511 = vadd.f32 %v510, %v328
    %v512 = vadd.f32 %v511, %v331
    %v513 = vadd.f32 %v512, %v336
    %v514 = vadd.f32 %v513, %v339
    %v515 = vadd.f32 %v514, %v344
    %v516 = vadd.f32 %v515, %v347
    %v517 = vadd.f32 %v516, %v352
    %v518 = vadd.f32 %v517, %v355
    %v519 = vadd.f32 %v518, %v360
    %v520 = vadd.f32 %v519, %v363
    %v521 = vadd.f32 %v520, %v368
    %v522 = vadd.f32 %v521, %v371
    %v523 = vadd.f32 %v522, %v376
    %v524 = vadd.f32 %v523, %v379
    %v525 = vadd.f32 %v524, %v384
    %v526 = vadd.f32 %v525, %v387
    %v527 = vadd.f32 %v526, %v392
    %v528 = vadd.f32 %v527, %v395
    %v529 = vadd.f32 %v528, %v400
    %v530 = vadd.f32 %v529, %v403
    %v531 = vadd.f32 %v530, %v408
    %v532 = vadd.f32 %v531, %v411
    %v533 = vadd.f32 %v532, %v416
    %v534 = vadd.f32 %v533, %v419
    %v535 = vadd.f32 %v534, %v424
    %v536 = vadd.f32 %v535, %v427
    %v537 = vadd.f32 %v536, %v432
    %v538 = vadd.f32 %v537, %v435
    %v539 = vadd.f32 %v538, %v440
    %v540 = vadd.f32 %v539, %v443
    %v541 = vadd.f32 %v540, %v448
    %v542 = vadd.f32 %v541, %v451
    %v543 = vadd.f32 %v542, %v456
    %v544 = vadd.f32 %v543, %v459
    %v545 = vadd.f32 %v544, %v464
    %v546 = vadd.f32 %v545, %v467
    %v547 = vadd.f32 %v546, %v472
    %v548 = vadd.f32 %v547, %v475
    %v549 = vadd.f32 %v548, %v480
    %v550 = vadd.f32 %v549, %v483
    %v551 = vrot.slane %v550, 4
    %v552 = vadd.f32 %v550, %v551
    %v553 = vrot.slane %v552, 2
    %v554 = vadd.f32 %v552, %v553
    %v555 = vrot.slane %v554, 1
    %v556 = vadd.f32 %v554, %v555
    %v557 = vmul.f32 %v556, 0.001953125
    %v558 = vsub.f32 %v232, %v557
    %v559 = vsub.f32 %v235, %v557
    %v560 = vsub.f32 %v240, %v557
    %v561 = vsub.f32 %v243, %v557
    %v562 = vsub.f32 %v248, %v557
    %v563 = vsub.f32 %v251, %v557
    %v564 = vsub.f32 %v256, %v557
    %v565 = vsub.f32 %v259, %v557
    %v566 = vsub.f32 %v264, %v557
    %v567 = vsub.f32 %v267, %v557
    %v568 = vsub.f32 %v272, %v557
    %v569 = vsub.f32 %v275, %v557
    %v570 = vsub.f32 %v280, %v557
    %v571 = vsub.f32 %v283, %v557
    %v572 = vsub.f32 %v288, %v557
    %v573 = vsub.f32 %v291, %v557
    %v574 = vsub.f32 %v296, %v557
    %v575 = vsub.f32 %v299, %v557
    %v576 = vsub.f32 %v304, %v557
    %v577 = vsub.f32 %v307, %v557
    %v578 = vsub.f32 %v312, %v557
    %v579 = vsub.f32 %v315, %v557
    %v580 = vsub.f32 %v320, %v557
    %v581 = vsub.f32 %v323, %v557
    %v582 = vsub.f32 %v328, %v557
    %v583 = vsub.f32 %v331, %v557
    %v584 = vsub.f32 %v336, %v557
    %v585 = vsub.f32 %v339, %v557
    %v586 = vsub.f32 %v344, %v557
    %v587 = vsub.f32 %v347, %v557
    %v588 = vsub.f32 %v352, %v557
    %v589 = vsub.f32 %v355, %v557
    %v590 = vsub.f32 %v360, %v557
    %v591 = vsub.f32 %v363, %v557
    %v592 = vsub.f32 %v368, %v557
    %v593 = vsub.f32 %v371, %v557
    %v594 = vsub.f32 %v376, %v557
    %v595 = vsub.f32 %v379, %v557
    %v596 = vsub.f32 %v384, %v557
    %v597 = vsub.f32 %v387, %v557
    %v598 = vsub.f32 %v392, %v557
    %v599 = vsub.f32 %v395, %v557
    %v600 = vsub.f32 %v400, %v557
    %v601 = vsub.f32 %v403, %v557
    %v602 = vsub.f32 %v408, %v557
    %v603 = vsub.f32 %v411, %v557
    %v604 = vsub.f32 %v416, %v557
    %v605 = vsub.f32 %v419, %v557
    %v606 = vsub.f32 %v424, %v557
    %v607 = vsub.f32 %v427, %v557
    %v608 = vsub.f32 %v432, %v557
    %v609 = vsub.f32 %v435, %v557
    %v610 = vsub.f32 %v440, %v557
    %v611 = vsub.f32 %v443, %v557
    %v612 = vsub.f32 %v448, %v557
    %v613 = vsub.f32 %v451, %v557
    %v614 = vsub.f32 %v456, %v557
    %v615 = vsub.f32 %v459, %v557
    %v616 = vsub.f32 %v464, %v557
    %v617 = vsub.f32 %v467, %v557
    %v618 = vsub.f32 %v472, %v557
    %v619 = vsub.f32 %v475, %v557
    %v620 = vsub.f32 %v480, %v557
    %v621 = vsub.f32 %v483, %v557
    %v622 = vmul.f32 %v558, %v558
    %v623 = vmul.f32 %v559, %v559
    %v624 = vmul.f32 %v560, %v560
    %v625 = vmul.f32 %v561, %v561
    %v626 = vmul.f32 %v562, %v562
    %v627 = vmul.f32 %v563, %v563
    %v628 = vmul.f32 %v564, %v564
    %v629 = vmul.f32 %v565, %v565
    %v630 = vmul.f32 %v566, %v566
    %v631 = vmul.f32 %v567, %v567
    %v632 = vmul.f32 %v568, %v568
    %v633 = vmul.f32 %v569, %v569
    %v634 = vmul.f32 %v570, %v570
    %v635 = vmul.f32 %v571, %v571
    %v636 = vmul.f32 %v572, %v572
    %v637 = vmul.f32 %v573, %v573
    %v638 = vmul.f32 %v574, %v574
    %v639 = vmul.f32 %v575, %v575
    %v640 = vmul.f32 %v576, %v576
    %v641 = vmul.f32 %v577, %v577
    %v642 = vmul.f32 %v578, %v578
    %v643 = vmul.f32 %v579, %v579
    %v644 = vmul.f32 %v580, %v580
    %v645 = vmul.f32 %v581, %v581
    %v646 = vmul.f32 %v582, %v582
    %v647 = vmul.f32 %v583, %v583
    %v648 = vmul.f32 %v584, %v584
    %v649 = vmul.f32 %v585, %v585
    %v650 = vmul.f32 %v586, %v586
    %v651 = vmul.f32 %v587, %v587
    %v652 = vmul.f32 %v588, %v588
    %v653 = vmul.f32 %v589, %v589
    %v654 = vmul.f32 %v590, %v590
    %v655 = vmul.f32 %v591, %v591
    %v656 = vmul.f32 %v592, %v592
    %v657 = vmul.f32 %v593, %v593
    %v658 = vmul.f32 %v594, %v594
    %v659 = vmul.f32 %v595, %v595
    %v660 = vmul.f32 %v596, %v596
    %v661 = vmul.f32 %v597, %v597
    %v662 = vmul.f32 %v598, %v598
    %v663 = vmul.f32 %v599, %v599
    %v664 = vmul.f32 %v600, %v600
    %v665 = vmul.f32 %v601, %v601
    %v666 = vmul.f32 %v602, %v602
    %v667 = vmul.f32 %v603, %v603
    %v668 = vmul.f32 %v604, %v604
    %v669 = vmul.f32 %v605, %v605
    %v670 = vmul.f32 %v606, %v606
    %v671 = vmul.f32 %v607, %v607
    %v672 = vmul.f32 %v608, %v608
    %v673 = vmul.f32 %v609, %v609
    %v674 = vmul.f32 %v610, %v610
    %v675 = vmul.f32 %v611, %v611
    %v676 = vmul.f32 %v612, %v612
    %v677 = vmul.f32 %v613, %v613
    %v678 = vmul.f32 %v614, %v614
    %v679 = vmul.f32 %v615, %v615
    %v680 = vmul.f32 %v616, %v616
    %v681 = vmul.f32 %v617, %v617
    %v682 = vmul.f32 %v618, %v618
    %v683 = vmul.f32 %v619, %v619
    %v684 = vmul.f32 %v620, %v620
    %v685 = vmul.f32 %v621, %v621
    %v686 = vadd.f32 %v622, %v623
    %v687 = vadd.f32 %v686, %v624
    %v688 = vadd.f32 %v687, %v625
    %v689 = vadd.f32 %v688, %v626
    %v690 = vadd.f32 %v689, %v627
    %v691 = vadd.f32 %v690, %v628
    %v692 = vadd.f32 %v691, %v629
    %v693 = vadd.f32 %v692, %v630
    %v694 = vadd.f32 %v693, %v631
    %v695 = vadd.f32 %v694, %v632
    %v696 = vadd.f32 %v695, %v633
    %v697 = vadd.f32 %v696, %v634
    %v698 = vadd.f32 %v697, %v635
    %v699 = vadd.f32 %v698, %v636
    %v700 = vadd.f32 %v699, %v637
    %v701 = vadd.f32 %v700, %v638
    %v702 = vadd.f32 %v701, %v639
    %v703 = vadd.f32 %v702, %v640
    %v704 = vadd.f32 %v703, %v641
    %v705 = vadd.f32 %v704, %v642
    %v706 = vadd.f32 %v705, %v643
    %v707 = vadd.f32 %v706, %v644
    %v708 = vadd.f32 %v707, %v645
    %v709 = vadd.f32 %v708, %v646
    %v710 = vadd.f32 %v709, %v647
    %v711 = vadd.f32 %v710, %v648
    %v712 = vadd.f32 %v711, %v649
    %v713 = vadd.f32 %v712, %v650
    %v714 = vadd.f32 %v713, %v651
    %v715 = vadd.f32 %v714, %v652
    %v716 = vadd.f32 %v715, %v653
    %v717 = vadd.f32 %v716, %v654
    %v718 = vadd.f32 %v717, %v655
    %v719 = vadd.f32 %v718, %v656
    %v720 = vadd.f32 %v719, %v657
    %v721 = vadd.f32 %v720, %v658
    %v722 = vadd.f32 %v721, %v659
    %v723 = vadd.f32 %v722, %v660
    %v724 = vadd.f32 %v723, %v661
    %v725 = vadd.f32 %v724, %v662
    %v726 = vadd.f32 %v725, %v663
    %v727 = vadd.f32 %v726, %v664
    %v728 = vadd.f32 %v727, %v665
    %v729 = vadd.f32 %v728, %v666
    %v730 = vadd.f32 %v729, %v667
    %v731 = vadd.f32 %v730, %v668
    %v732 = vadd.f32 %v731, %v669
    %v733 = vadd.f32 %v732, %v670
    %v734 = vadd.f32 %v733, %v671
    %v735 = vadd.f32 %v734, %v672
    %v736 = vadd.f32 %v735, %v673
    %v737 = vadd.f32 %v736, %v674
    %v738 = vadd.f32 %v737, %v675
    %v739 = vadd.f32 %v738, %v676
    %v740 = vadd.f32 %v739, %v677
    %v741 = vadd.f32 %v740, %v678
    %v742 = vadd.f32 %v741, %v679
    %v743 = vadd.f32 %v742, %v680
    %v744 = vadd.f32 %v743, %v681
    %v745 = vadd.f32 %v744, %v682
    %v746 = vadd.f32 %v745, %v683
    %v747 = vadd.f32 %v746, %v684
    %v748 = vadd.f32 %v747, %v685
    %v749 = vrot.slane %v748, 4
    %v750 = vadd.f32 %v748, %v749
    %v751 = vrot.slane %v750, 2
    %v752 = vadd.f32 %v750, %v751
    %v753 = vrot.slane %v752, 1
    %v754 = vadd.f32 %v752, %v753
    %v755 = vmul.f32 %v754, 0.001953125
    %v756 = vadd.f32 %v755, 1e-05
    %v757 = vrsqrt.pop %v756
    %v758 = vmul.f32 %v486, %v757
    %v760 = vlaneseq
    %v761 = vshrl.u32 %v760, 7
    %v762 = vsub.s32 0, %v761
    %v763 = vrot.slane %v758, %v762
    %v765 = vmul.f32 %v558, %v763
    %v766 = vmul.f32 %v559, %v763
    %v767 = vmul.f32 %v560, %v763
    %v768 = vmul.f32 %v561, %v763
    %v769 = vmul.f32 %v562, %v763
    %v770 = vmul.f32 %v563, %v763
    %v771 = vmul.f32 %v564, %v763
    %v772 = vmul.f32 %v565, %v763
    %v773 = vmul.f32 %v566, %v763
    %v774 = vmul.f32 %v567, %v763
    %v775 = vmul.f32 %v568, %v763
    %v776 = vmul.f32 %v569, %v763
    %v777 = vmul.f32 %v570, %v763
    %v778 = vmul.f32 %v571, %v763
    %v779 = vmul.f32 %v572, %v763
    %v780 = vmul.f32 %v573, %v763
    %v781 = vmul.f32 %v574, %v763
    %v782 = vmul.f32 %v575, %v763
    %v783 = vmul.f32 %v576, %v763
    %v784 = vmul.f32 %v577, %v763
    %v785 = vmul.f32 %v578, %v763
    %v786 = vmul.f32 %v579, %v763
    %v787 = vmul.f32 %v580, %v763
    %v788 = vmul.f32 %v581, %v763
    %v789 = vmul.f32 %v582, %v763
    %v790 = vmul.f32 %v583, %v763
    %v791 = vmul.f32 %v584, %v763
    %v792 = vmul.f32 %v585, %v763
    %v793 = vmul.f32 %v586, %v763
    %v794 = vmul.f32 %v587, %v763
    %v795 = vmul.f32 %v588, %v763
    %v796 = vmul.f32 %v589, %v763
    %v797 = vmul.f32 %v590, %v763
    %v798 = vmul.f32 %v591, %v763
    %v799 = vmul.f32 %v592, %v763
    %v800 = vmul.f32 %v593, %v763
    %v801 = vmul.f32 %v594, %v763
    %v802 = vmul.f32 %v595, %v763
    %v803 = vmul.f32 %v596, %v763
    %v804 = vmul.f32 %v597, %v763
    %v805 = vmul.f32 %v598, %v763
    %v806 = vmul.f32 %v599, %v763
    %v807 = vmul.f32 %v600, %v763
    %v808 = vmul.f32 %v601, %v763
    %v809 = vmul.f32 %v602, %v763
    %v810 = vmul.f32 %v603, %v763
    %v811 = vmul.f32 %v604, %v763
    %v812 = vmul.f32 %v605, %v763
    %v813 = vmul.f32 %v606, %v763
    %v814 = vmul.f32 %v607, %v763
    %v815 = vmul.f32 %v608, %v763
    %v816 = vmul.f32 %v609, %v763
    %v817 = vmul.f32 %v610, %v763
    %v818 = vmul.f32 %v611, %v763
    %v819 = vmul.f32 %v612, %v763
    %v820 = vmul.f32 %v613, %v763
    %v821 = vmul.f32 %v614, %v763
    %v822 = vmul.f32 %v615, %v763
    %v823 = vmul.f32 %v616, %v763
    %v824 = vmul.f32 %v617, %v763
    %v825 = vmul.f32 %v618, %v763
    %v826 = vmul.f32 %v619, %v763
    %v827 = vmul.f32 %v620, %v763
    %v828 = vmul.f32 %v621, %v763
    %v830 = vlaneseq
    %v831 = vshrl.u32 %v830, 7
    %v832 = vsub.s32 0, %v831
    %v833 = vrot.slane %v487, %v832
    %v835 = vadd.f32 %v765, %v833
    %v836 = vadd.f32 %v766, %v833
    %v837 = vadd.f32 %v767, %v833
    %v838 = vadd.f32 %v768, %v833
    %v839 = vadd.f32 %v769, %v833
    %v840 = vadd.f32 %v770, %v833
    %v841 = vadd.f32 %v771, %v833
    %v842 = vadd.f32 %v772, %v833
    %v843 = vadd.f32 %v773, %v833
    %v844 = vadd.f32 %v774, %v833
    %v845 = vadd.f32 %v775, %v833
    %v846 = vadd.f32 %v776, %v833
    %v847 = vadd.f32 %v777, %v833
    %v848 = vadd.f32 %v778, %v833
    %v849 = vadd.f32 %v779, %v833
    %v850 = vadd.f32 %v780, %v833
    %v851 = vadd.f32 %v781, %v833
    %v852 = vadd.f32 %v782, %v833
    %v853 = vadd.f32 %v783, %v833
    %v854 = vadd.f32 %v784, %v833
    %v855 = vadd.f32 %v785, %v833
    %v856 = vadd.f32 %v786, %v833
    %v857 = vadd.f32 %v787, %v833
    %v858 = vadd.f32 %v788, %v833
    %v859 = vadd.f32 %v789, %v833
    %v860 = vadd.f32 %v790, %v833
    %v861 = vadd.f32 %v791, %v833
    %v862 = vadd.f32 %v792, %v833
    %v863 = vadd.f32 %v793, %v833
    %v864 = vadd.f32 %v794, %v833
    %v865 = vadd.f32 %v795, %v833
    %v866 = vadd.f32 %v796, %v833
    %v867 = vadd.f32 %v797, %v833
    %v868 = vadd.f32 %v798, %v833
    %v869 = vadd.f32 %v799, %v833
    %v870 = vadd.f32 %v800, %v833
    %v871 = vadd.f32 %v801, %v833
    %v872 = vadd.f32 %v802, %v833
    %v873 = vadd.f32 %v803, %v833
    %v874 = vadd.f32 %v804, %v833
    %v875 = vadd.f32 %v805, %v833
    %v876 = vadd.f32 %v806, %v833
    %v877 = vadd.f32 %v807, %v833
    %v878 = vadd.f32 %v808, %v833
    %v879 = vadd.f32 %v809, %v833
    %v880 = vadd.f32 %v810, %v833
    %v881 = vadd.f32 %v811, %v833
    %v882 = vadd.f32 %v812, %v833
    %v883 = vadd.f32 %v813, %v833
    %v884 = vadd.f32 %v814, %v833
    %v885 = vadd.f32 %v815, %v833
    %v886 = vadd.f32 %v816, %v833
    %v887 = vadd.f32 %v817, %v833
    %v888 = vadd.f32 %v818, %v833
    %v889 = vadd.f32 %v819, %v833
    %v890 = vadd.f32 %v820, %v833
    %v891 = vadd.f32 %v821, %v833
    %v892 = vadd.f32 %v822, %v833
    %v893 = vadd.f32 %v823, %v833
    %v894 = vadd.f32 %v824, %v833
    %v895 = vadd.f32 %v825, %v833
    %v896 = vadd.f32 %v826, %v833
    %v897 = vadd.f32 %v827, %v833
    %v898 = vadd.f32 %v828, %v833
    %v899 = vmax.f32 %v835, 0.0
    %v900 = vmax.f32 %v836, 0.0
    %v901 = vmax.f32 %v837, 0.0
    %v902 = vmax.f32 %v838, 0.0
    %v903 = vmax.f32 %v839, 0.0
    %v904 = vmax.f32 %v840, 0.0
    %v905 = vmax.f32 %v841, 0.0
    %v906 = vmax.f32 %v842, 0.0
    %v907 = vmax.f32 %v843, 0.0
    %v908 = vmax.f32 %v844, 0.0
    %v909 = vmax.f32 %v845, 0.0
    %v910 = vmax.f32 %v846, 0.0
    %v911 = vmax.f32 %v847, 0.0
    %v912 = vmax.f32 %v848, 0.0
    %v913 = vmax.f32 %v849, 0.0
    %v914 = vmax.f32 %v850, 0.0
    %v915 = vmax.f32 %v851, 0.0
    %v916 = vmax.f32 %v852, 0.0
    %v917 = vmax.f32 %v853, 0.0
    %v918 = vmax.f32 %v854, 0.0
    %v919 = vmax.f32 %v855, 0.0
    %v920 = vmax.f32 %v856, 0.0
    %v921 = vmax.f32 %v857, 0.0
    %v922 = vmax.f32 %v858, 0.0
    %v923 = vmax.f32 %v859, 0.0
    %v924 = vmax.f32 %v860, 0.0
    %v925 = vmax.f32 %v861, 0.0
    %v926 = vmax.f32 %v862, 0.0
    %v927 = vmax.f32 %v863, 0.0
    %v928 = vmax.f32 %v864, 0.0
    %v929 = vmax.f32 %v865, 0.0
    %v930 = vmax.f32 %v866, 0.0
    %v931 = vmax.f32 %v867, 0.0
    %v932 = vmax.f32 %v868, 0.0
    %v933 = vmax.f32 %v869, 0.0
    %v934 = vmax.f32 %v870, 0.0
    %v935 = vmax.f32 %v871, 0.0
    %v936 = vmax.f32 %v872, 0.0
    %v937 = vmax.f32 %v873, 0.0
    %v938 = vmax.f32 %v874, 0.0
    %v939 = vmax.f32 %v875, 0.0
    %v940 = vmax.f32 %v876, 0.0
    %v941 = vmax.f32 %v877, 0.0
    %v942 = vmax.f32 %v878, 0.0
    %v943 = vmax.f32 %v879, 0.0
    %v944 = vmax.f32 %v880, 0.0
    %v945 = vmax.f32 %v881, 0.0
    %v946 = vmax.f32 %v882, 0.0
    %v947 = vmax.f32 %v883, 0.0
    %v948 = vmax.f32 %v884, 0.0
    %v949 = vmax.f32 %v885, 0.0
    %v950 = vmax.f32 %v886, 0.0
    %v951 = vmax.f32 %v887, 0.0
    %v952 = vmax.f32 %v888, 0.0
    %v953 = vmax.f32 %v889, 0.0
    %v954 = vmax.f32 %v890, 0.0
    %v955 = vmax.f32 %v891, 0.0
    %v956 = vmax.f32 %v892, 0.0
    %v957 = vmax.f32 %v893, 0.0
    %v958 = vmax.f32 %v894, 0.0
    %v959 = vmax.f32 %v895, 0.0
    %v960 = vmax.f32 %v896, 0.0
    %v961 = vmax.f32 %v897, 0.0
    %v962 = vmax.f32 %v898, 0.0
    %963 = vst [vmem:[#allocation2] sm:$0xff] 0.0
    %964 = vst [vmem:[#allocation2 + $0x8] sm:$0xff] 0.0
    %965 = vst [vmem:[#allocation2 + $0x10] sm:$0xf] 0.0
    %966 = vst [vmem:[#allocation2 + $0x18] sm:$0xff] 0.0
    %967 = vst [vmem:[#allocation2 + $0x20] sm:$0xff] 0.0
    %968 = vst [vmem:[#allocation2 + $0x28] sm:$0xf] 0.0
    %969 = vst [vmem:[#allocation2 + $0x30] sm:$0xff] 0.0
    %970 = vst [vmem:[#allocation2 + $0x38] sm:$0xff] 0.0
    %971 = vst [vmem:[#allocation2 + $0x40] sm:$0xf] 0.0
    %972 = vst [vmem:[#allocation2 + $0x48] sm:$0xff] 0.0
    %973 = vst [vmem:[#allocation2 + $0x50] sm:$0xff] 0.0
    %974 = vst [vmem:[#allocation2 + $0x58] sm:$0xf] 0.0
    %975 = vst [vmem:[#allocation2 + $0x60] sm:$0xff] 0.0
    %976 = vst [vmem:[#allocation2 + $0x68] sm:$0xff] 0.0
    %977 = vst [vmem:[#allocation2 + $0x70] sm:$0xf] 0.0
    %978 = vst [vmem:[#allocation2 + $0x78] sm:$0xff] 0.0
    %979 = vst [vmem:[#allocation2 + $0x80] sm:$0xff] 0.0
    %980 = vst [vmem:[#allocation2 + $0x88] sm:$0xf] 0.0
    %981 = vst [vmem:[#allocation2 + $0x90] sm:$0xff] 0.0
    %982 = vst [vmem:[#allocation2 + $0x98] sm:$0xff] 0.0
    %983 = vst [vmem:[#allocation2 + $0xa0] sm:$0xf] 0.0
    %984 = vst [vmem:[#allocation2 + $0xa8] sm:$0xff] 0.0
    %985 = vst [vmem:[#allocation2 + $0xb0] sm:$0xff] 0.0
    %986 = vst [vmem:[#allocation2 + $0xb8] sm:$0xf] 0.0
    %987 = vst [vmem:[#allocation2 + $0xc0] sm:$0xff] 0.0
    %988 = vst [vmem:[#allocation2 + $0xc8] sm:$0xff] 0.0
    %989 = vst [vmem:[#allocation2 + $0xd0] sm:$0xf] 0.0
    %990 = vst [vmem:[#allocation2 + $0xd8] sm:$0xff] 0.0
    %991 = vst [vmem:[#allocation2 + $0xe0] sm:$0xff] 0.0
    %992 = vst [vmem:[#allocation2 + $0xe8] sm:$0xf] 0.0
    %993 = vst [vmem:[#allocation2 + $0xf0] sm:$0xff] 0.0
    %994 = vst [vmem:[#allocation2 + $0xf8] sm:$0xff] 0.0
    %995 = vst [vmem:[#allocation2 + $0x100] sm:$0xf] 0.0
    %996 = vst [vmem:[#allocation2 + $0x108] sm:$0xff] 0.0
    %997 = vst [vmem:[#allocation2 + $0x110] sm:$0xff] 0.0
    %998 = vst [vmem:[#allocation2 + $0x118] sm:$0xf] 0.0
    %999 = vst [vmem:[#allocation2 + $0x120] sm:$0xff] 0.0
    %1000 = vst [vmem:[#allocation2 + $0x128] sm:$0xff] 0.0
    %1001 = vst [vmem:[#allocation2 + $0x130] sm:$0xf] 0.0
    %1002 = vst [vmem:[#allocation2 + $0x138] sm:$0xff] 0.0
    %1003 = vst [vmem:[#allocation2 + $0x140] sm:$0xff] 0.0
    %1004 = vst [vmem:[#allocation2 + $0x148] sm:$0xf] 0.0
    %1005 = vst [vmem:[#allocation2 + $0x150] sm:$0xff] 0.0
    %1006 = vst [vmem:[#allocation2 + $0x158] sm:$0xff] 0.0
    %1007 = vst [vmem:[#allocation2 + $0x160] sm:$0xf] 0.0
    %1008 = vst [vmem:[#allocation2 + $0x168] sm:$0xff] 0.0
    %1009 = vst [vmem:[#allocation2 + $0x170] sm:$0xff] 0.0
    %1010 = vst [vmem:[#allocation2 + $0x178] sm:$0xf] 0.0
    %1011 = vst [vmem:[#allocation2 + $0x180] sm:$0xff] 0.0
    %1012 = vst [vmem:[#allocation2 + $0x188] sm:$0xff] 0.0
    %1013 = vst [vmem:[#allocation2 + $0x190] sm:$0xf] 0.0
    %1014 = vst [vmem:[#allocation2 + $0x198] sm:$0xff] 0.0
    %1015 = vst [vmem:[#allocation2 + $0x1a0] sm:$0xff] 0.0
    %1016 = vst [vmem:[#allocation2 + $0x1a8] sm:$0xf] 0.0
    %1017 = vst [vmem:[#allocation2 + $0x1b0] sm:$0xff] 0.0
    %1018 = vst [vmem:[#allocation2 + $0x1b8] sm:$0xff] 0.0
    %1019 = vst [vmem:[#allocation2 + $0x1c0] sm:$0xf] 0.0
    %1020 = vst [vmem:[#allocation2 + $0x1c8] sm:$0xff] 0.0
    %1021 = vst [vmem:[#allocation2 + $0x1d0] sm:$0xff] 0.0
    %1022 = vst [vmem:[#allocation2 + $0x1d8] sm:$0xf] 0.0
    %1023 = vst [vmem:[#allocation2 + $0x1e0] sm:$0xff] 0.0
    %1024 = vst [vmem:[#allocation2 + $0x1e8] sm:$0xff] 0.0
    %1025 = vst [vmem:[#allocation2 + $0x1f0] sm:$0xf] 0.0
    %1026 = vst [vmem:[#allocation2 + $0x1f8] sm:$0xff] 0.0
    %1027 = vst [vmem:[#allocation2 + $0x200] sm:$0xff] 0.0
    %1028 = vst [vmem:[#allocation2 + $0x208] sm:$0xf] 0.0
    %1029 = vst [vmem:[#allocation2 + $0x210] sm:$0xff] 0.0
    %1030 = vst [vmem:[#allocation2 + $0x218] sm:$0xff] 0.0
    %1031 = vst [vmem:[#allocation2 + $0x220] sm:$0xf] 0.0
    %1032 = vst [vmem:[#allocation2 + $0x228] sm:$0xff] 0.0
    %1033 = vst [vmem:[#allocation2 + $0x230] sm:$0xff] 0.0
    %1034 = vst [vmem:[#allocation2 + $0x238] sm:$0xf] 0.0
    %1035 = vst [vmem:[#allocation2 + $0x240] sm:$0xff] 0.0
    %1036 = vst [vmem:[#allocation2 + $0x248] sm:$0xff] 0.0
    %1037 = vst [vmem:[#allocation2 + $0x250] sm:$0xf] 0.0
    %1038 = vst [vmem:[#allocation2 + $0x258] sm:$0xff] 0.0
    %1039 = vst [vmem:[#allocation2 + $0x260] sm:$0xff] 0.0
    %1040 = vst [vmem:[#allocation2 + $0x268] sm:$0xf] 0.0
    %1041 = vst [vmem:[#allocation2 + $0x270] sm:$0xff] 0.0
    %1042 = vst [vmem:[#allocation2 + $0x278] sm:$0xff] 0.0
    %1043 = vst [vmem:[#allocation2 + $0x280] sm:$0xf] 0.0
    %1044 = vst [vmem:[#allocation2 + $0x288] sm:$0xff] 0.0
    %1045 = vst [vmem:[#allocation2 + $0x290] sm:$0xff] 0.0
    %1046 = vst [vmem:[#allocation2 + $0x298] sm:$0xf] 0.0
    %1047 = vst [vmem:[#allocation2 + $0x2a0] sm:$0xff] 0.0
    %1048 = vst [vmem:[#allocation2 + $0x2a8] sm:$0xff] 0.0
    %1049 = vst [vmem:[#allocation2 + $0x2b0] sm:$0xf] 0.0
    %1050 = vst [vmem:[#allocation2 + $0x2b8] sm:$0xff] 0.0
    %1051 = vst [vmem:[#allocation2 + $0x2c0] sm:$0xff] 0.0
    %1052 = vst [vmem:[#allocation2 + $0x2c8] sm:$0xf] 0.0
    %1053 = vst [vmem:[#allocation2 + $0x2d0] sm:$0xff] 0.0
    %1054 = vst [vmem:[#allocation2 + $0x2d8] sm:$0xff] 0.0
    %1055 = vst [vmem:[#allocation2 + $0x2e0] sm:$0xf] 0.0
    %1056 = vst [vmem:[#allocation2 + $0x2e8] sm:$0xff] 0.0
    %1057 = vst [vmem:[#allocation2 + $0x2f0] sm:$0xff] 0.0
    %1058 = vst [vmem:[#allocation2 + $0x2f8] sm:$0xf] 0.0
    %1059 = vst [vmem:[#allocation2 + $0x300] sm:$0xff] 0.0
    %1060 = vst [vmem:[#allocation2 + $0x308] sm:$0xff] 0.0
    %1061 = vst [vmem:[#allocation2 + $0x310] sm:$0xf] 0.0
    %1062 = vst [vmem:[#allocation2 + $0x318] sm:$0xff] 0.0
    %1063 = vst [vmem:[#allocation2 + $0x320] sm:$0xff] 0.0
    %1064 = vst [vmem:[#allocation2 + $0x328] sm:$0xf] 0.0
    %1065 = vst [vmem:[#allocation2 + $0x330] sm:$0xff] 0.0
    %1066 = vst [vmem:[#allocation2 + $0x338] sm:$0xff] 0.0
    %1067 = vst [vmem:[#allocation2 + $0x340] sm:$0xf] 0.0
    %1068 = vst [vmem:[#allocation2 + $0x348] sm:$0xff] 0.0
    %1069 = vst [vmem:[#allocation2 + $0x350] sm:$0xff] 0.0
    %1070 = vst [vmem:[#allocation2 + $0x358] sm:$0xf] 0.0
    %1071 = vst [vmem:[#allocation2 + $0x360] sm:$0xff] 0.0
    %1072 = vst [vmem:[#allocation2 + $0x368] sm:$0xff] 0.0
    %1073 = vst [vmem:[#allocation2 + $0x370] sm:$0xf] 0.0
    %1074 = vst [vmem:[#allocation2 + $0x378] sm:$0xff] 0.0
    %1075 = vst [vmem:[#allocation2 + $0x380] sm:$0xff] 0.0
    %1076 = vst [vmem:[#allocation2 + $0x388] sm:$0xf] 0.0
    %1077 = vst [vmem:[#allocation2 + $0x390] sm:$0xff] 0.0
    %1078 = vst [vmem:[#allocation2 + $0x398] sm:$0xff] 0.0
    %1079 = vst [vmem:[#allocation2 + $0x3a0] sm:$0xf] 0.0
    %1080 = vst [vmem:[#allocation2 + $0x3a8] sm:$0xff] 0.0
    %1081 = vst [vmem:[#allocation2 + $0x3b0] sm:$0xff] 0.0
    %1082 = vst [vmem:[#allocation2 + $0x3b8] sm:$0xf] 0.0
    %s1083 = scalar_lea.vmem [#allocation2], 48
    %1084 = vst [vmem:[%s1083 + $0x2] sm:$0xff] %v899
    %1085 = vst [vmem:[%s1083 + $0xa] sm:$0xff] %v900
    %1086 = vst [vmem:[%s1083 + $0x1a] sm:$0xff] %v901
    %1087 = vst [vmem:[%s1083 + $0x22] sm:$0xff] %v902
    %1088 = vst [vmem:[%s1083 + $0x32] sm:$0xff] %v903
    %1089 = vst [vmem:[%s1083 + $0x3a] sm:$0xff] %v904
    %1090 = vst [vmem:[%s1083 + $0x4a] sm:$0xff] %v905
    %1091 = vst [vmem:[%s1083 + $0x52] sm:$0xff] %v906
    %1092 = vst [vmem:[%s1083 + $0x62] sm:$0xff] %v907
    %1093 = vst [vmem:[%s1083 + $0x6a] sm:$0xff] %v908
    %1094 = vst [vmem:[%s1083 + $0x7a] sm:$0xff] %v909
    %1095 = vst [vmem:[%s1083 + $0x82] sm:$0xff] %v910
    %1096 = vst [vmem:[%s1083 + $0x92] sm:$0xff] %v911
    %1097 = vst [vmem:[%s1083 + $0x9a] sm:$0xff] %v912
    %1098 = vst [vmem:[%s1083 + $0xaa] sm:$0xff] %v913
    %1099 = vst [vmem:[%s1083 + $0xb2] sm:$0xff] %v914
    %1100 = vst [vmem:[%s1083 + $0xc2] sm:$0xff] %v915
    %1101 = vst [vmem:[%s1083 + $0xca] sm:$0xff] %v916
    %1102 = vst [vmem:[%s1083 + $0xda] sm:$0xff] %v917
    %1103 = vst [vmem:[%s1083 + $0xe2] sm:$0xff] %v918
    %1104 = vst [vmem:[%s1083 + $0xf2] sm:$0xff] %v919
    %1105 = vst [vmem:[%s1083 + $0xfa] sm:$0xff] %v920
    %1106 = vst [vmem:[%s1083 + $0x10a] sm:$0xff] %v921
    %1107 = vst [vmem:[%s1083 + $0x112] sm:$0xff] %v922
    %1108 = vst [vmem:[%s1083 + $0x122] sm:$0xff] %v923
    %1109 = vst [vmem:[%s1083 + $0x12a] sm:$0xff] %v924
    %1110 = vst [vmem:[%s1083 + $0x13a] sm:$0xff] %v925
    %1111 = vst [vmem:[%s1083 + $0x142] sm:$0xff] %v926
    %1112 = vst [vmem:[%s1083 + $0x152] sm:$0xff] %v927
    %1113 = vst [vmem:[%s1083 + $0x15a] sm:$0xff] %v928
    %1114 = vst [vmem:[%s1083 + $0x16a] sm:$0xff] %v929
    %1115 = vst [vmem:[%s1083 + $0x172] sm:$0xff] %v930
    %1116 = vst [vmem:[%s1083 + $0x1e2] sm:$0xff] %v931
    %1117 = vst [vmem:[%s1083 + $0x1ea] sm:$0xff] %v932
    %1118 = vst [vmem:[%s1083 + $0x1fa] sm:$0xff] %v933
    %1119 = vst [vmem:[%s1083 + $0x202] sm:$0xff] %v934
    %1120 = vst [vmem:[%s1083 + $0x212] sm:$0xff] %v935
    %1121 = vst [vmem:[%s1083 + $0x21a] sm:$0xff] %v936
    %1122 = vst [vmem:[%s1083 + $0x22a] sm:$0xff] %v937
    %1123 = vst [vmem:[%s1083 + $0x232] sm:$0xff] %v938
    %1124 = vst [vmem:[%s1083 + $0x242] sm:$0xff] %v939
    %1125 = vst [vmem:[%s1083 + $0x24a] sm:$0xff] %v940
    %1126 = vst [vmem:[%s1083 + $0x25a] sm:$0xff] %v941
    %1127 = vst [vmem:[%s1083 + $0x262] sm:$0xff] %v942
    %1128 = vst [vmem:[%s1083 + $0x272] sm:$0xff] %v943
    %1129 = vst [vmem:[%s1083 + $0x27a] sm:$0xff] %v944
    %1130 = vst [vmem:[%s1083 + $0x28a] sm:$0xff] %v945
    %1131 = vst [vmem:[%s1083 + $0x292] sm:$0xff] %v946
    %1132 = vst [vmem:[%s1083 + $0x2a2] sm:$0xff] %v947
    %1133 = vst [vmem:[%s1083 + $0x2aa] sm:$0xff] %v948
    %1134 = vst [vmem:[%s1083 + $0x2ba] sm:$0xff] %v949
    %1135 = vst [vmem:[%s1083 + $0x2c2] sm:$0xff] %v950
    %1136 = vst [vmem:[%s1083 + $0x2d2] sm:$0xff] %v951
    %1137 = vst [vmem:[%s1083 + $0x2da] sm:$0xff] %v952
    %1138 = vst [vmem:[%s1083 + $0x2ea] sm:$0xff] %v953
    %1139 = vst [vmem:[%s1083 + $0x2f2] sm:$0xff] %v954
    %1140 = vst [vmem:[%s1083 + $0x302] sm:$0xff] %v955
    %1141 = vst [vmem:[%s1083 + $0x30a] sm:$0xff] %v956
    %1142 = vst [vmem:[%s1083 + $0x31a] sm:$0xff] %v957
    %1143 = vst [vmem:[%s1083 + $0x322] sm:$0xff] %v958
    %1144 = vst [vmem:[%s1083 + $0x332] sm:$0xff] %v959
    %1145 = vst [vmem:[%s1083 + $0x33a] sm:$0xff] %v960
    %1146 = vst [vmem:[%s1083 + $0x34a] sm:$0xff] %v961
    %1147 = vst [vmem:[%s1083 + $0x352] sm:$0xff] %v962
    %v1148 = vld [vmem:[#allocation2] sm:$0xff]
    %v1149 = vld [vmem:[#allocation2 + $0x8] sm:$0xff]
    %v1150 = vld [vmem:[#allocation2 + $0x18] sm:$0xff]
    %v1151 = vld [vmem:[#allocation2 + $0x20] sm:$0xff]
    %v1152 = vld [vmem:[#allocation2 + $0x30] sm:$0xff]
    %v1153 = vld [vmem:[#allocation2 + $0x38] sm:$0xff]
    %v1154 = vld [vmem:[#allocation2 + $0x48] sm:$0xff]
    %v1155 = vld [vmem:[#allocation2 + $0x50] sm:$0xff]
    %v1156 = vld [vmem:[#allocation2 + $0x60] sm:$0xff]
    %v1157 = vld [vmem:[#allocation2 + $0x68] sm:$0xff]
    %v1158 = vld [vmem:[#allocation2 + $0x78] sm:$0xff]
    %v1159 = vld [vmem:[#allocation2 + $0x80] sm:$0xff]
    %v1160 = vld [vmem:[#allocation2 + $0x90] sm:$0xff]
    %v1161 = vld [vmem:[#allocation2 + $0x98] sm:$0xff]
    %v1162 = vld [vmem:[#allocation2 + $0xa8] sm:$0xff]
    %v1163 = vld [vmem:[#allocation2 + $0xb0] sm:$0xff]
    %v1164 = vld [vmem:[#allocation2 + $0xc0] sm:$0xff]
    %v1165 = vld [vmem:[#allocation2 + $0xc8] sm:$0xff]
    %v1166 = vld [vmem:[#allocation2 + $0xd8] sm:$0xff]
    %v1167 = vld [vmem:[#allocation2 + $0xe0] sm:$0xff]
    %v1168 = vld [vmem:[#allocation2 + $0xf0] sm:$0xff]
    %v1169 = vld [vmem:[#allocation2 + $0xf8] sm:$0xff]
    %v1170 = vld [vmem:[#allocation2 + $0x108] sm:$0xff]
    %v1171 = vld [vmem:[#allocation2 + $0x110] sm:$0xff]
    %v1172 = vld [vmem:[#allocation2 + $0x120] sm:$0xff]
    %v1173 = vld [vmem:[#allocation2 + $0x128] sm:$0xff]
    %v1174 = vld [vmem:[#allocation2 + $0x138] sm:$0xff]
    %v1175 = vld [vmem:[#allocation2 + $0x140] sm:$0xff]
    %v1176 = vld [vmem:[#allocation2 + $0x150] sm:$0xff]
    %v1177 = vld [vmem:[#allocation2 + $0x158] sm:$0xff]
    %v1178 = vld [vmem:[#allocation2 + $0x168] sm:$0xff]
    %v1179 = vld [vmem:[#allocation2 + $0x170] sm:$0xff]
    %v1180 = vld [vmem:[#allocation2 + $0x1e0] sm:$0xff]
    %v1181 = vld [vmem:[#allocation2 + $0x1e8] sm:$0xff]
    %v1182 = vld [vmem:[#allocation2 + $0x1f8] sm:$0xff]
    %v1183 = vld [vmem:[#allocation2 + $0x200] sm:$0xff]
    %v1184 = vld [vmem:[#allocation2 + $0x210] sm:$0xff]
    %v1185 = vld [vmem:[#allocation2 + $0x218] sm:$0xff]
    %v1186 = vld [vmem:[#allocation2 + $0x228] sm:$0xff]
    %v1187 = vld [vmem:[#allocation2 + $0x230] sm:$0xff]
    %v1188 = vld [vmem:[#allocation2 + $0x240] sm:$0xff]
    %v1189 = vld [vmem:[#allocation2 + $0x248] sm:$0xff]
    %v1190 = vld [vmem:[#allocation2 + $0x258] sm:$0xff]
    %v1191 = vld [vmem:[#allocation2 + $0x260] sm:$0xff]
    %v1192 = vld [vmem:[#allocation2 + $0x270] sm:$0xff]
    %v1193 = vld [vmem:[#allocation2 + $0x278] sm:$0xff]
    %v1194 = vld [vmem:[#allocation2 + $0x288] sm:$0xff]
    %v1195 = vld [vmem:[#allocation2 + $0x290] sm:$0xff]
    %v1196 = vld [vmem:[#allocation2 + $0x2a0] sm:$0xff]
    %v1197 = vld [vmem:[#allocation2 + $0x2a8] sm:$0xff]
    %v1198 = vld [vmem:[#allocation2 + $0x2b8] sm:$0xff]
    %v1199 = vld [vmem:[#allocation2 + $0x2c0] sm:$0xff]
    %v1200 = vld [vmem:[#allocation2 + $0x2d0] sm:$0xff]
    %v1201 = vld [vmem:[#allocation2 + $0x2d8] sm:$0xff]
    %v1202 = vld [vmem:[#allocation2 + $0x2e8] sm:$0xff]
    %v1203 = vld [vmem:[#allocation2 + $0x2f0] sm:$0xff]
    %v1204 = vld [vmem:[#allocation2 + $0x300] sm:$0xff]
    %v1205 = vld [vmem:[#allocation2 + $0x308] sm:$0xff]
    %v1206 = vld [vmem:[#allocation2 + $0x318] sm:$0xff]
    %v1207 = vld [vmem:[#allocation2 + $0x320] sm:$0xff]
    %v1208 = vld [vmem:[#allocation2 + $0x330] sm:$0xff]
    %v1209 = vld [vmem:[#allocation2 + $0x338] sm:$0xff]
    %v1210 = vld [vmem:[#allocation2 + $0x348] sm:$0xff]
    %v1211 = vld [vmem:[#allocation2 + $0x350] sm:$0xff]
    %v1212 = vld [vmem:[#allocation2 + $0x2] sm:$0xff]
    %v1213 = vld [vmem:[#allocation2 + $0xa] sm:$0xff]
    %v1214 = vld [vmem:[#allocation2 + $0x1a] sm:$0xff]
    %v1215 = vld [vmem:[#allocation2 + $0x22] sm:$0xff]
    %v1216 = vld [vmem:[#allocation2 + $0x32] sm:$0xff]
    %v1217 = vld [vmem:[#allocation2 + $0x3a] sm:$0xff]
    %v1218 = vld [vmem:[#allocation2 + $0x4a] sm:$0xff]
    %v1219 = vld [vmem:[#allocation2 + $0x52] sm:$0xff]
    %v1220 = vld [vmem:[#allocation2 + $0x62] sm:$0xff]
    %v1221 = vld [vmem:[#allocation2 + $0x6a] sm:$0xff]
    %v1222 = vld [vmem:[#allocation2 + $0x7a] sm:$0xff]
    %v1223 = vld [vmem:[#allocation2 + $0x82] sm:$0xff]
    %v1224 = vld [vmem:[#allocation2 + $0x92] sm:$0xff]
    %v1225 = vld [vmem:[#allocation2 + $0x9a] sm:$0xff]
    %v1226 = vld [vmem:[#allocation2 + $0xaa] sm:$0xff]
    %v1227 = vld [vmem:[#allocation2 + $0xb2] sm:$0xff]
    %v1228 = vld [vmem:[#allocation2 + $0xc2] sm:$0xff]
    %v1229 = vld [vmem:[#allocation2 + $0xca] sm:$0xff]
    %v1230 = vld [vmem:[#allocation2 + $0xda] sm:$0xff]
    %v1231 = vld [vmem:[#allocation2 + $0xe2] sm:$0xff]
    %v1232 = vld [vmem:[#allocation2 + $0xf2] sm:$0xff]
    %v1233 = vld [vmem:[#allocation2 + $0xfa] sm:$0xff]
    %v1234 = vld [vmem:[#allocation2 + $0x10a] sm:$0xff]
    %v1235 = vld [vmem:[#allocation2 + $0x112] sm:$0xff]
    %v1236 = vld [vmem:[#allocation2 + $0x122] sm:$0xff]
    %v1237 = vld [vmem:[#allocation2 + $0x12a] sm:$0xff]
    %v1238 = vld [vmem:[#allocation2 + $0x13a] sm:$0xff]
    %v1239 = vld [vmem:[#allocation2 + $0x142] sm:$0xff]
    %v1240 = vld [vmem:[#allocation2 + $0x152] sm:$0xff]
    %v1241 = vld [vmem:[#allocation2 + $0x15a] sm:$0xff]
    %v1242 = vld [vmem:[#allocation2 + $0x16a] sm:$0xff]
    %v1243 = vld [vmem:[#allocation2 + $0x172] sm:$0xff]
    %v1244 = vld [vmem:[#allocation2 + $0x1e2] sm:$0xff]
    %v1245 = vld [vmem:[#allocation2 + $0x1ea] sm:$0xff]
    %v1246 = vld [vmem:[#allocation2 + $0x1fa] sm:$0xff]
    %v1247 = vld [vmem:[#allocation2 + $0x202] sm:$0xff]
    %v1248 = vld [vmem:[#allocation2 + $0x212] sm:$0xff]
    %v1249 = vld [vmem:[#allocation2 + $0x21a] sm:$0xff]
    %v1250 = vld [vmem:[#allocation2 + $0x22a] sm:$0xff]
    %v1251 = vld [vmem:[#allocation2 + $0x232] sm:$0xff]
    %v1252 = vld [vmem:[#allocation2 + $0x242] sm:$0xff]
    %v1253 = vld [vmem:[#allocation2 + $0x24a] sm:$0xff]
    %v1254 = vld [vmem:[#allocation2 + $0x25a] sm:$0xff]
    %v1255 = vld [vmem:[#allocation2 + $0x262] sm:$0xff]
    %v1256 = vld [vmem:[#allocation2 + $0x272] sm:$0xff]
    %v1257 = vld [vmem:[#allocation2 + $0x27a] sm:$0xff]
    %v1258 = vld [vmem:[#allocation2 + $0x28a] sm:$0xff]
    %v1259 = vld [vmem:[#allocation2 + $0x292] sm:$0xff]
    %v1260 = vld [vmem:[#allocation2 + $0x2a2] sm:$0xff]
    %v1261 = vld [vmem:[#allocation2 + $0x2aa] sm:$0xff]
    %v1262 = vld [vmem:[#allocation2 + $0x2ba] sm:$0xff]
    %v1263 = vld [vmem:[#allocation2 + $0x2c2] sm:$0xff]
    %v1264 = vld [vmem:[#allocation2 + $0x2d2] sm:$0xff]
    %v1265 = vld [vmem:[#allocation2 + $0x2da] sm:$0xff]
    %v1266 = vld [vmem:[#allocation2 + $0x2ea] sm:$0xff]
    %v1267 = vld [vmem:[#allocation2 + $0x2f2] sm:$0xff]
    %v1268 = vld [vmem:[#allocation2 + $0x302] sm:$0xff]
    %v1269 = vld [vmem:[#allocation2 + $0x30a] sm:$0xff]
    %v1270 = vld [vmem:[#allocation2 + $0x31a] sm:$0xff]
    %v1271 = vld [vmem:[#allocation2 + $0x322] sm:$0xff]
    %v1272 = vld [vmem:[#allocation2 + $0x332] sm:$0xff]
    %v1273 = vld [vmem:[#allocation2 + $0x33a] sm:$0xff]
    %v1274 = vld [vmem:[#allocation2 + $0x34a] sm:$0xff]
    %v1275 = vld [vmem:[#allocation2 + $0x352] sm:$0xff]
    %v1276 = vld [vmem:[#allocation2 + $0x4] sm:$0xff]
    %v1277 = vld [vmem:[#allocation2 + $0xc] sm:$0xff]
    %v1278 = vld [vmem:[#allocation2 + $0x1c] sm:$0xff]
    %v1279 = vld [vmem:[#allocation2 + $0x24] sm:$0xff]
    %v1280 = vld [vmem:[#allocation2 + $0x34] sm:$0xff]
    %v1281 = vld [vmem:[#allocation2 + $0x3c] sm:$0xff]
    %v1282 = vld [vmem:[#allocation2 + $0x4c] sm:$0xff]
    %v1283 = vld [vmem:[#allocation2 + $0x54] sm:$0xff]
    %v1284 = vld [vmem:[#allocation2 + $0x64] sm:$0xff]
    %v1285 = vld [vmem:[#allocation2 + $0x6c] sm:$0xff]
    %v1286 = vld [vmem:[#allocation2 + $0x7c] sm:$0xff]
    %v1287 = vld [vmem:[#allocation2 + $0x84] sm:$0xff]
    %v1288 = vld [vmem:[#allocation2 + $0x94] sm:$0xff]
    %v1289 = vld [vmem:[#allocation2 + $0x9c] sm:$0xff]
    %v1290 = vld [vmem:[#allocation2 + $0xac] sm:$0xff]
    %v1291 = vld [vmem:[#allocation2 + $0xb4] sm:$0xff]
    %v1292 = vld [vmem:[#allocation2 + $0xc4] sm:$0xff]
    %v1293 = vld [vmem:[#allocation2 + $0xcc] sm:$0xff]
    %v1294 = vld [vmem:[#allocation2 + $0xdc] sm:$0xff]
    %v1295 = vld [vmem:[#allocation2 + $0xe4] sm:$0xff]
    %v1296 = vld [vmem:[#allocation2 + $0xf4] sm:$0xff]
    %v1297 = vld [vmem:[#allocation2 + $0xfc] sm:$0xff]
    %v1298 = vld [vmem:[#allocation2 + $0x10c] sm:$0xff]
    %v1299 = vld [vmem:[#allocation2 + $0x114] sm:$0xff]
    %v1300 = vld [vmem:[#allocation2 + $0x124] sm:$0xff]
    %v1301 = vld [vmem:[#allocation2 + $0x12c] sm:$0xff]
    %v1302 = vld [vmem:[#allocation2 + $0x13c] sm:$0xff]
    %v1303 = vld [vmem:[#allocation2 + $0x144] sm:$0xff]
    %v1304 = vld [vmem:[#allocation2 + $0x154] sm:$0xff]
    %v1305 = vld [vmem:[#allocation2 + $0x15c] sm:$0xff]
    %v1306 = vld [vmem:[#allocation2 + $0x16c] sm:$0xff]
    %v1307 = vld [vmem:[#allocation2 + $0x174] sm:$0xff]
    %v1308 = vld [vmem:[#allocation2 + $0x1e4] sm:$0xff]
    %v1309 = vld [vmem:[#allocation2 + $0x1ec] sm:$0xff]
    %v1310 = vld [vmem:[#allocation2 + $0x1fc] sm:$0xff]
    %v1311 = vld [vmem:[#allocation2 + $0x204] sm:$0xff]
    %v1312 = vld [vmem:[#allocation2 + $0x214] sm:$0xff]
    %v1313 = vld [vmem:[#allocation2 + $0x21c] sm:$0xff]
    %v1314 = vld [vmem:[#allocation2 + $0x22c] sm:$0xff]
    %v1315 = vld [vmem:[#allocation2 + $0x234] sm:$0xff]
    %v1316 = vld [vmem:[#allocation2 + $0x244] sm:$0xff]
    %v1317 = vld [vmem:[#allocation2 + $0x24c] sm:$0xff]
    %v1318 = vld [vmem:[#allocation2 + $0x25c] sm:$0xff]
    %v1319 = vld [vmem:[#allocation2 + $0x264] sm:$0xff]
    %v1320 = vld [vmem:[#allocation2 + $0x274] sm:$0xff]
    %v1321 = vld [vmem:[#allocation2 + $0x27c] sm:$0xff]
    %v1322 = vld [vmem:[#allocation2 + $0x28c] sm:$0xff]
    %v1323 = vld [vmem:[#allocation2 + $0x294] sm:$0xff]
    %v1324 = vld [vmem:[#allocation2 + $0x2a4] sm:$0xff]
    %v1325 = vld [vmem:[#allocation2 + $0x2ac] sm:$0xff]
    %v1326 = vld [vmem:[#allocation2 + $0x2bc] sm:$0xff]
    %v1327 = vld [vmem:[#allocation2 + $0x2c4] sm:$0xff]
    %v1328 = vld [vmem:[#allocation2 + $0x2d4] sm:$0xff]
    %v1329 = vld [vmem:[#allocation2 + $0x2dc] sm:$0xff]
    %v1330 = vld [vmem:[#allocation2 + $0x2ec] sm:$0xff]
    %v1331 = vld [vmem:[#allocation2 + $0x2f4] sm:$0xff]
    %v1332 = vld [vmem:[#allocation2 + $0x304] sm:$0xff]
    %v1333 = vld [vmem:[#allocation2 + $0x30c] sm:$0xff]
    %v1334 = vld [vmem:[#allocation2 + $0x31c] sm:$0xff]
    %v1335 = vld [vmem:[#allocation2 + $0x324] sm:$0xff]
    %v1336 = vld [vmem:[#allocation2 + $0x334] sm:$0xff]
    %v1337 = vld [vmem:[#allocation2 + $0x33c] sm:$0xff]
    %v1338 = vld [vmem:[#allocation2 + $0x34c] sm:$0xff]
    %v1339 = vld [vmem:[#allocation2 + $0x354] sm:$0xff]
    %v1340 = vld [vmem:[%s1083] sm:$0xff]
    %v1341 = vld [vmem:[%s1083 + $0x8] sm:$0xff]
    %v1342 = vld [vmem:[%s1083 + $0x18] sm:$0xff]
    %v1343 = vld [vmem:[%s1083 + $0x20] sm:$0xff]
    %v1344 = vld [vmem:[%s1083 + $0x30] sm:$0xff]
    %v1345 = vld [vmem:[%s1083 + $0x38] sm:$0xff]
    %v1346 = vld [vmem:[%s1083 + $0x48] sm:$0xff]
    %v1347 = vld [vmem:[%s1083 + $0x50] sm:$0xff]
    %v1348 = vld [vmem:[%s1083 + $0x60] sm:$0xff]
    %v1349 = vld [vmem:[%s1083 + $0x68] sm:$0xff]
    %v1350 = vld [vmem:[%s1083 + $0x78] sm:$0xff]
    %v1351 = vld [vmem:[%s1083 + $0x80] sm:$0xff]
    %v1352 = vld [vmem:[%s1083 + $0x90] sm:$0xff]
    %v1353 = vld [vmem:[%s1083 + $0x98] sm:$0xff]
    %v1354 = vld [vmem:[%s1083 + $0xa8] sm:$0xff]
    %v1355 = vld [vmem:[%s1083 + $0xb0] sm:$0xff]
    %v1356 = vld [vmem:[%s1083 + $0xc0] sm:$0xff]
    %v1357 = vld [vmem:[%s1083 + $0xc8] sm:$0xff]
    %v1358 = vld [vmem:[%s1083 + $0xd8] sm:$0xff]
    %v1359 = vld [vmem:[%s1083 + $0xe0] sm:$0xff]
    %v1360 = vld [vmem:[%s1083 + $0xf0] sm:$0xff]
    %v1361 = vld [vmem:[%s1083 + $0xf8] sm:$0xff]
    %v1362 = vld [vmem:[%s1083 + $0x108] sm:$0xff]
    %v1363 = vld [vmem:[%s1083 + $0x110] sm:$0xff]
    %v1364 = vld [vmem:[%s1083 + $0x120] sm:$0xff]
    %v1365 = vld [vmem:[%s1083 + $0x128] sm:$0xff]
    %v1366 = vld [vmem:[%s1083 + $0x138] sm:$0xff]
    %v1367 = vld [vmem:[%s1083 + $0x140] sm:$0xff]
    %v1368 = vld [vmem:[%s1083 + $0x150] sm:$0xff]
    %v1369 = vld [vmem:[%s1083 + $0x158] sm:$0xff]
    %v1370 = vld [vmem:[%s1083 + $0x168] sm:$0xff]
    %v1371 = vld [vmem:[%s1083 + $0x170] sm:$0xff]
    %v1372 = vld [vmem:[%s1083 + $0x1e0] sm:$0xff]
    %v1373 = vld [vmem:[%s1083 + $0x1e8] sm:$0xff]
    %v1374 = vld [vmem:[%s1083 + $0x1f8] sm:$0xff]
    %v1375 = vld [vmem:[%s1083 + $0x200] sm:$0xff]
    %v1376 = vld [vmem:[%s1083 + $0x210] sm:$0xff]
    %v1377 = vld [vmem:[%s1083 + $0x218] sm:$0xff]
    %v1378 = vld [vmem:[%s1083 + $0x228] sm:$0xff]
    %v1379 = vld [vmem:[%s1083 + $0x230] sm:$0xff]
    %v1380 = vld [vmem:[%s1083 + $0x240] sm:$0xff]
    %v1381 = vld [vmem:[%s1083 + $0x248] sm:$0xff]
    %v1382 = vld [vmem:[%s1083 + $0x258] sm:$0xff]
    %v1383 = vld [vmem:[%s1083 + $0x260] sm:$0xff]
    %v1384 = vld [vmem:[%s1083 + $0x270] sm:$0xff]
    %v1385 = vld [vmem:[%s1083 + $0x278] sm:$0xff]
    %v1386 = vld [vmem:[%s1083 + $0x288] sm:$0xff]
    %v1387 = vld [vmem:[%s1083 + $0x290] sm:$0xff]
    %v1388 = vld [vmem:[%s1083 + $0x2a0] sm:$0xff]
    %v1389 = vld [vmem:[%s1083 + $0x2a8] sm:$0xff]
    %v1390 = vld [vmem:[%s1083 + $0x2b8] sm:$0xff]
    %v1391 = vld [vmem:[%s1083 + $0x2c0] sm:$0xff]
    %v1392 = vld [vmem:[%s1083 + $0x2d0] sm:$0xff]
    %v1393 = vld [vmem:[%s1083 + $0x2d8] sm:$0xff]
    %v1394 = vld [vmem:[%s1083 + $0x2e8] sm:$0xff]
    %v1395 = vld [vmem:[%s1083 + $0x2f0] sm:$0xff]
    %v1396 = vld [vmem:[%s1083 + $0x300] sm:$0xff]
    %v1397 = vld [vmem:[%s1083 + $0x308] sm:$0xff]
    %v1398 = vld [vmem:[%s1083 + $0x318] sm:$0xff]
    %v1399 = vld [vmem:[%s1083 + $0x320] sm:$0xff]
    %v1400 = vld [vmem:[%s1083 + $0x330] sm:$0xff]
    %v1401 = vld [vmem:[%s1083 + $0x338] sm:$0xff]
    %v1402 = vld [vmem:[%s1083 + $0x348] sm:$0xff]
    %v1403 = vld [vmem:[%s1083 + $0x350] sm:$0xff]
    %v1404 = vld [vmem:[%s1083 + $0x2] sm:$0xff]
    %v1405 = vld [vmem:[%s1083 + $0xa] sm:$0xff]
    %v1406 = vld [vmem:[%s1083 + $0x1a] sm:$0xff]
    %v1407 = vld [vmem:[%s1083 + $0x22] sm:$0xff]
    %v1408 = vld [vmem:[%s1083 + $0x32] sm:$0xff]
    %v1409 = vld [vmem:[%s1083 + $0x3a] sm:$0xff]
    %v1410 = vld [vmem:[%s1083 + $0x4a] sm:$0xff]
    %v1411 = vld [vmem:[%s1083 + $0x52] sm:$0xff]
    %v1412 = vld [vmem:[%s1083 + $0x62] sm:$0xff]
    %v1413 = vld [vmem:[%s1083 + $0x6a] sm:$0xff]
    %v1414 = vld [vmem:[%s1083 + $0x7a] sm:$0xff]
    %v1415 = vld [vmem:[%s1083 + $0x82] sm:$0xff]
    %v1416 = vld [vmem:[%s1083 + $0x92] sm:$0xff]
    %v1417 = vld [vmem:[%s1083 + $0x9a] sm:$0xff]
    %v1418 = vld [vmem:[%s1083 + $0xaa] sm:$0xff]
    %v1419 = vld [vmem:[%s1083 + $0xb2] sm:$0xff]
    %v1420 = vld [vmem:[%s1083 + $0xc2] sm:$0xff]
    %v1421 = vld [vmem:[%s1083 + $0xca] sm:$0xff]
    %v1422 = vld [vmem:[%s1083 + $0xda] sm:$0xff]
    %v1423 = vld [vmem:[%s1083 + $0xe2] sm:$0xff]
    %v1424 = vld [vmem:[%s1083 + $0xf2] sm:$0xff]
    %v1425 = vld [vmem:[%s1083 + $0xfa] sm:$0xff]
    %v1426 = vld [vmem:[%s1083 + $0x10a] sm:$0xff]
    %v1427 = vld [vmem:[%s1083 + $0x112] sm:$0xff]
    %v1428 = vld [vmem:[%s1083 + $0x122] sm:$0xff]
    %v1429 = vld [vmem:[%s1083 + $0x12a] sm:$0xff]
    %v1430 = vld [vmem:[%s1083 + $0x13a] sm:$0xff]
    %v1431 = vld [vmem:[%s1083 + $0x142] sm:$0xff]
    %v1432 = vld [vmem:[%s1083 + $0x152] sm:$0xff]
    %v1433 = vld [vmem:[%s1083 + $0x15a] sm:$0xff]
    %v1434 = vld [vmem:[%s1083 + $0x16a] sm:$0xff]
    %v1435 = vld [vmem:[%s1083 + $0x172] sm:$0xff]
    %v1436 = vld [vmem:[%s1083 + $0x1e2] sm:$0xff]
    %v1437 = vld [vmem:[%s1083 + $0x1ea] sm:$0xff]
    %v1438 = vld [vmem:[%s1083 + $0x1fa] sm:$0xff]
    %v1439 = vld [vmem:[%s1083 + $0x202] sm:$0xff]
    %v1440 = vld [vmem:[%s1083 + $0x212] sm:$0xff]
    %v1441 = vld [vmem:[%s1083 + $0x21a] sm:$0xff]
    %v1442 = vld [vmem:[%s1083 + $0x22a] sm:$0xff]
    %v1443 = vld [vmem:[%s1083 + $0x232] sm:$0xff]
    %v1444 = vld [vmem:[%s1083 + $0x242] sm:$0xff]
    %v1445 = vld [vmem:[%s1083 + $0x24a] sm:$0xff]
    %v1446 = vld [vmem:[%s1083 + $0x25a] sm:$0xff]
    %v1447 = vld [vmem:[%s1083 + $0x262] sm:$0xff]
    %v1448 = vld [vmem:[%s1083 + $0x272] sm:$0xff]
    %v1449 = vld [vmem:[%s1083 + $0x27a] sm:$0xff]
    %v1450 = vld [vmem:[%s1083 + $0x28a] sm:$0xff]
    %v1451 = vld [vmem:[%s1083 + $0x292] sm:$0xff]
    %v1452 = vld [vmem:[%s1083 + $0x2a2] sm:$0xff]
    %v1453 = vld [vmem:[%s1083 + $0x2aa] sm:$0xff]
    %v1454 = vld [vmem:[%s1083 + $0x2ba] sm:$0xff]
    %v1455 = vld [vmem:[%s1083 + $0x2c2] sm:$0xff]
    %v1456 = vld [vmem:[%s1083 + $0x2d2] sm:$0xff]
    %v1457 = vld [vmem:[%s1083 + $0x2da] sm:$0xff]
    %v1458 = vld [vmem:[%s1083 + $0x2ea] sm:$0xff]
    %v1459 = vld [vmem:[%s1083 + $0x2f2] sm:$0xff]
    %v1460 = vld [vmem:[%s1083 + $0x302] sm:$0xff]
    %v1461 = vld [vmem:[%s1083 + $0x30a] sm:$0xff]
    %v1462 = vld [vmem:[%s1083 + $0x31a] sm:$0xff]
    %v1463 = vld [vmem:[%s1083 + $0x322] sm:$0xff]
    %v1464 = vld [vmem:[%s1083 + $0x332] sm:$0xff]
    %v1465 = vld [vmem:[%s1083 + $0x33a] sm:$0xff]
    %v1466 = vld [vmem:[%s1083 + $0x34a] sm:$0xff]
    %v1467 = vld [vmem:[%s1083 + $0x352] sm:$0xff]
    %v1468 = vld [vmem:[%s1083 + $0x4] sm:$0xff]
    %v1469 = vld [vmem:[%s1083 + $0xc] sm:$0xff]
    %v1470 = vld [vmem:[%s1083 + $0x1c] sm:$0xff]
    %v1471 = vld [vmem:[%s1083 + $0x24] sm:$0xff]
    %v1472 = vld [vmem:[%s1083 + $0x34] sm:$0xff]
    %v1473 = vld [vmem:[%s1083 + $0x3c] sm:$0xff]
    %v1474 = vld [vmem:[%s1083 + $0x4c] sm:$0xff]
    %v1475 = vld [vmem:[%s1083 + $0x54] sm:$0xff]
    %v1476 = vld [vmem:[%s1083 + $0x64] sm:$0xff]
    %v1477 = vld [vmem:[%s1083 + $0x6c] sm:$0xff]
    %v1478 = vld [vmem:[%s1083 + $0x7c] sm:$0xff]
    %v1479 = vld [vmem:[%s1083 + $0x84] sm:$0xff]
    %v1480 = vld [vmem:[%s1083 + $0x94] sm:$0xff]
    %v1481 = vld [vmem:[%s1083 + $0x9c] sm:$0xff]
    %v1482 = vld [vmem:[%s1083 + $0xac] sm:$0xff]
    %v1483 = vld [vmem:[%s1083 + $0xb4] sm:$0xff]
    %v1484 = vld [vmem:[%s1083 + $0xc4] sm:$0xff]
    %v1485 = vld [vmem:[%s1083 + $0xcc] sm:$0xff]
    %v1486 = vld [vmem:[%s1083 + $0xdc] sm:$0xff]
    %v1487 = vld [vmem:[%s1083 + $0xe4] sm:$0xff]
    %v1488 = vld [vmem:[%s1083 + $0xf4] sm:$0xff]
    %v1489 = vld [vmem:[%s1083 + $0xfc] sm:$0xff]
    %v1490 = vld [vmem:[%s1083 + $0x10c] sm:$0xff]
    %v1491 = vld [vmem:[%s1083 + $0x114] sm:$0xff]
    %v1492 = vld [vmem:[%s1083 + $0x124] sm:$0xff]
    %v1493 = vld [vmem:[%s1083 + $0x12c] sm:$0xff]
    %v1494 = vld [vmem:[%s1083 + $0x13c] sm:$0xff]
    %v1495 = vld [vmem:[%s1083 + $0x144] sm:$0xff]
    %v1496 = vld [vmem:[%s1083 + $0x154] sm:$0xff]
    %v1497 = vld [vmem:[%s1083 + $0x15c] sm:$0xff]
    %v1498 = vld [vmem:[%s1083 + $0x16c] sm:$0xff]
    %v1499 = vld [vmem:[%s1083 + $0x174] sm:$0xff]
    %v1500 = vld [vmem:[%s1083 + $0x1e4] sm:$0xff]
    %v1501 = vld [vmem:[%s1083 + $0x1ec] sm:$0xff]
    %v1502 = vld [vmem:[%s1083 + $0x1fc] sm:$0xff]
    %v1503 = vld [vmem:[%s1083 + $0x204] sm:$0xff]
    %v1504 = vld [vmem:[%s1083 + $0x214] sm:$0xff]
    %v1505 = vld [vmem:[%s1083 + $0x21c] sm:$0xff]
    %v1506 = vld [vmem:[%s1083 + $0x22c] sm:$0xff]
    %v1507 = vld [vmem:[%s1083 + $0x234] sm:$0xff]
    %v1508 = vld [vmem:[%s1083 + $0x244] sm:$0xff]
    %v1509 = vld [vmem:[%s1083 + $0x24c] sm:$0xff]
    %v1510 = vld [vmem:[%s1083 + $0x25c] sm:$0xff]
    %v1511 = vld [vmem:[%s1083 + $0x264] sm:$0xff]
    %v1512 = vld [vmem:[%s1083 + $0x274] sm:$0xff]
    %v1513 = vld [vmem:[%s1083 + $0x27c] sm:$0xff]
    %v1514 = vld [vmem:[%s1083 + $0x28c] sm:$0xff]
    %v1515 = vld [vmem:[%s1083 + $0x294] sm:$0xff]
    %v1516 = vld [vmem:[%s1083 + $0x2a4] sm:$0xff]
    %v1517 = vld [vmem:[%s1083 + $0x2ac] sm:$0xff]
    %v1518 = vld [vmem:[%s1083 + $0x2bc] sm:$0xff]
    %v1519 = vld [vmem:[%s1083 + $0x2c4] sm:$0xff]
    %v1520 = vld [vmem:[%s1083 + $0x2d4] sm:$0xff]
    %v1521 = vld [vmem:[%s1083 + $0x2dc] sm:$0xff]
    %v1522 = vld [vmem:[%s1083 + $0x2ec] sm:$0xff]
    %v1523 = vld [vmem:[%s1083 + $0x2f4] sm:$0xff]
    %v1524 = vld [vmem:[%s1083 + $0x304] sm:$0xff]
    %v1525 = vld [vmem:[%s1083 + $0x30c] sm:$0xff]
    %v1526 = vld [vmem:[%s1083 + $0x31c] sm:$0xff]
    %v1527 = vld [vmem:[%s1083 + $0x324] sm:$0xff]
    %v1528 = vld [vmem:[%s1083 + $0x334] sm:$0xff]
    %v1529 = vld [vmem:[%s1083 + $0x33c] sm:$0xff]
    %v1530 = vld [vmem:[%s1083 + $0x34c] sm:$0xff]
    %v1531 = vld [vmem:[%s1083 + $0x354] sm:$0xff]
    %s1532 = scalar_lea.vmem [#allocation2], 96
    %v1533 = vld [vmem:[%s1532] sm:$0xff]
    %v1534 = vld [vmem:[%s1532 + $0x8] sm:$0xff]
    %v1535 = vld [vmem:[%s1532 + $0x18] sm:$0xff]
    %v1536 = vld [vmem:[%s1532 + $0x20] sm:$0xff]
    %v1537 = vld [vmem:[%s1532 + $0x30] sm:$0xff]
    %v1538 = vld [vmem:[%s1532 + $0x38] sm:$0xff]
    %v1539 = vld [vmem:[%s1532 + $0x48] sm:$0xff]
    %v1540 = vld [vmem:[%s1532 + $0x50] sm:$0xff]
    %v1541 = vld [vmem:[%s1532 + $0x60] sm:$0xff]
    %v1542 = vld [vmem:[%s1532 + $0x68] sm:$0xff]
    %v1543 = vld [vmem:[%s1532 + $0x78] sm:$0xff]
    %v1544 = vld [vmem:[%s1532 + $0x80] sm:$0xff]
    %v1545 = vld [vmem:[%s1532 + $0x90] sm:$0xff]
    %v1546 = vld [vmem:[%s1532 + $0x98] sm:$0xff]
    %v1547 = vld [vmem:[%s1532 + $0xa8] sm:$0xff]
    %v1548 = vld [vmem:[%s1532 + $0xb0] sm:$0xff]
    %v1549 = vld [vmem:[%s1532 + $0xc0] sm:$0xff]
    %v1550 = vld [vmem:[%s1532 + $0xc8] sm:$0xff]
    %v1551 = vld [vmem:[%s1532 + $0xd8] sm:$0xff]
    %v1552 = vld [vmem:[%s1532 + $0xe0] sm:$0xff]
    %v1553 = vld [vmem:[%s1532 + $0xf0] sm:$0xff]
    %v1554 = vld [vmem:[%s1532 + $0xf8] sm:$0xff]
    %v1555 = vld [vmem:[%s1532 + $0x108] sm:$0xff]
    %v1556 = vld [vmem:[%s1532 + $0x110] sm:$0xff]
    %v1557 = vld [vmem:[%s1532 + $0x120] sm:$0xff]
    %v1558 = vld [vmem:[%s1532 + $0x128] sm:$0xff]
    %v1559 = vld [vmem:[%s1532 + $0x138] sm:$0xff]
    %v1560 = vld [vmem:[%s1532 + $0x140] sm:$0xff]
    %v1561 = vld [vmem:[%s1532 + $0x150] sm:$0xff]
    %v1562 = vld [vmem:[%s1532 + $0x158] sm:$0xff]
    %v1563 = vld [vmem:[%s1532 + $0x168] sm:$0xff]
    %v1564 = vld [vmem:[%s1532 + $0x170] sm:$0xff]
    %v1565 = vld [vmem:[%s1532 + $0x1e0] sm:$0xff]
    %v1566 = vld [vmem:[%s1532 + $0x1e8] sm:$0xff]
    %v1567 = vld [vmem:[%s1532 + $0x1f8] sm:$0xff]
    %v1568 = vld [vmem:[%s1532 + $0x200] sm:$0xff]
    %v1569 = vld [vmem:[%s1532 + $0x210] sm:$0xff]
    %v1570 = vld [vmem:[%s1532 + $0x218] sm:$0xff]
    %v1571 = vld [vmem:[%s1532 + $0x228] sm:$0xff]
    %v1572 = vld [vmem:[%s1532 + $0x230] sm:$0xff]
    %v1573 = vld [vmem:[%s1532 + $0x240] sm:$0xff]
    %v1574 = vld [vmem:[%s1532 + $0x248] sm:$0xff]
    %v1575 = vld [vmem:[%s1532 + $0x258] sm:$0xff]
    %v1576 = vld [vmem:[%s1532 + $0x260] sm:$0xff]
    %v1577 = vld [vmem:[%s1532 + $0x270] sm:$0xff]
    %v1578 = vld [vmem:[%s1532 + $0x278] sm:$0xff]
    %v1579 = vld [vmem:[%s1532 + $0x288] sm:$0xff]
    %v1580 = vld [vmem:[%s1532 + $0x290] sm:$0xff]
    %v1581 = vld [vmem:[%s1532 + $0x2a0] sm:$0xff]
    %v1582 = vld [vmem:[%s1532 + $0x2a8] sm:$0xff]
    %v1583 = vld [vmem:[%s1532 + $0x2b8] sm:$0xff]
    %v1584 = vld [vmem:[%s1532 + $0x2c0] sm:$0xff]
    %v1585 = vld [vmem:[%s1532 + $0x2d0] sm:$0xff]
    %v1586 = vld [vmem:[%s1532 + $0x2d8] sm:$0xff]
    %v1587 = vld [vmem:[%s1532 + $0x2e8] sm:$0xff]
    %v1588 = vld [vmem:[%s1532 + $0x2f0] sm:$0xff]
    %v1589 = vld [vmem:[%s1532 + $0x300] sm:$0xff]
    %v1590 = vld [vmem:[%s1532 + $0x308] sm:$0xff]
    %v1591 = vld [vmem:[%s1532 + $0x318] sm:$0xff]
    %v1592 = vld [vmem:[%s1532 + $0x320] sm:$0xff]
    %v1593 = vld [vmem:[%s1532 + $0x330] sm:$0xff]
    %v1594 = vld [vmem:[%s1532 + $0x338] sm:$0xff]
    %v1595 = vld [vmem:[%s1532 + $0x348] sm:$0xff]
    %v1596 = vld [vmem:[%s1532 + $0x350] sm:$0xff]
    %v1597 = vld [vmem:[%s1532 + $0x2] sm:$0xff]
    %v1598 = vld [vmem:[%s1532 + $0xa] sm:$0xff]
    %v1599 = vld [vmem:[%s1532 + $0x1a] sm:$0xff]
    %v1600 = vld [vmem:[%s1532 + $0x22] sm:$0xff]
    %v1601 = vld [vmem:[%s1532 + $0x32] sm:$0xff]
    %v1602 = vld [vmem:[%s1532 + $0x3a] sm:$0xff]
    %v1603 = vld [vmem:[%s1532 + $0x4a] sm:$0xff]
    %v1604 = vld [vmem:[%s1532 + $0x52] sm:$0xff]
    %v1605 = vld [vmem:[%s1532 + $0x62] sm:$0xff]
    %v1606 = vld [vmem:[%s1532 + $0x6a] sm:$0xff]
    %v1607 = vld [vmem:[%s1532 + $0x7a] sm:$0xff]
    %v1608 = vld [vmem:[%s1532 + $0x82] sm:$0xff]
    %v1609 = vld [vmem:[%s1532 + $0x92] sm:$0xff]
    %v1610 = vld [vmem:[%s1532 + $0x9a] sm:$0xff]
    %v1611 = vld [vmem:[%s1532 + $0xaa] sm:$0xff]
    %v1612 = vld [vmem:[%s1532 + $0xb2] sm:$0xff]
    %v1613 = vld [vmem:[%s1532 + $0xc2] sm:$0xff]
    %v1614 = vld [vmem:[%s1532 + $0xca] sm:$0xff]
    %v1615 = vld [vmem:[%s1532 + $0xda] sm:$0xff]
    %v1616 = vld [vmem:[%s1532 + $0xe2] sm:$0xff]
    %v1617 = vld [vmem:[%s1532 + $0xf2] sm:$0xff]
    %v1618 = vld [vmem:[%s1532 + $0xfa] sm:$0xff]
    %v1619 = vld [vmem:[%s1532 + $0x10a] sm:$0xff]
    %v1620 = vld [vmem:[%s1532 + $0x112] sm:$0xff]
    %v1621 = vld [vmem:[%s1532 + $0x122] sm:$0xff]
    %v1622 = vld [vmem:[%s1532 + $0x12a] sm:$0xff]
    %v1623 = vld [vmem:[%s1532 + $0x13a] sm:$0xff]
    %v1624 = vld [vmem:[%s1532 + $0x142] sm:$0xff]
    %v1625 = vld [vmem:[%s1532 + $0x152] sm:$0xff]
    %v1626 = vld [vmem:[%s1532 + $0x15a] sm:$0xff]
    %v1627 = vld [vmem:[%s1532 + $0x16a] sm:$0xff]
    %v1628 = vld [vmem:[%s1532 + $0x172] sm:$0xff]
    %v1629 = vld [vmem:[%s1532 + $0x1e2] sm:$0xff]
    %v1630 = vld [vmem:[%s1532 + $0x1ea] sm:$0xff]
    %v1631 = vld [vmem:[%s1532 + $0x1fa] sm:$0xff]
    %v1632 = vld [vmem:[%s1532 + $0x202] sm:$0xff]
    %v1633 = vld [vmem:[%s1532 + $0x212] sm:$0xff]
    %v1634 = vld [vmem:[%s1532 + $0x21a] sm:$0xff]
    %v1635 = vld [vmem:[%s1532 + $0x22a] sm:$0xff]
    %v1636 = vld [vmem:[%s1532 + $0x232] sm:$0xff]
    %v1637 = vld [vmem:[%s1532 + $0x242] sm:$0xff]
    %v1638 = vld [vmem:[%s1532 + $0x24a] sm:$0xff]
    %v1639 = vld [vmem:[%s1532 + $0x25a] sm:$0xff]
    %v1640 = vld [vmem:[%s1532 + $0x262] sm:$0xff]
    %v1641 = vld [vmem:[%s1532 + $0x272] sm:$0xff]
    %v1642 = vld [vmem:[%s1532 + $0x27a] sm:$0xff]
    %v1643 = vld [vmem:[%s1532 + $0x28a] sm:$0xff]
    %v1644 = vld [vmem:[%s1532 + $0x292] sm:$0xff]
    %v1645 = vld [vmem:[%s1532 + $0x2a2] sm:$0xff]
    %v1646 = vld [vmem:[%s1532 + $0x2aa] sm:$0xff]
    %v1647 = vld [vmem:[%s1532 + $0x2ba] sm:$0xff]
    %v1648 = vld [vmem:[%s1532 + $0x2c2] sm:$0xff]
    %v1649 = vld [vmem:[%s1532 + $0x2d2] sm:$0xff]
    %v1650 = vld [vmem:[%s1532 + $0x2da] sm:$0xff]
    %v1651 = vld [vmem:[%s1532 + $0x2ea] sm:$0xff]
    %v1652 = vld [vmem:[%s1532 + $0x2f2] sm:$0xff]
    %v1653 = vld [vmem:[%s1532 + $0x302] sm:$0xff]
    %v1654 = vld [vmem:[%s1532 + $0x30a] sm:$0xff]
    %v1655 = vld [vmem:[%s1532 + $0x31a] sm:$0xff]
    %v1656 = vld [vmem:[%s1532 + $0x322] sm:$0xff]
    %v1657 = vld [vmem:[%s1532 + $0x332] sm:$0xff]
    %v1658 = vld [vmem:[%s1532 + $0x33a] sm:$0xff]
    %v1659 = vld [vmem:[%s1532 + $0x34a] sm:$0xff]
    %v1660 = vld [vmem:[%s1532 + $0x352] sm:$0xff]
    %v1661 = vld [vmem:[%s1532 + $0x4] sm:$0xff]
    %v1662 = vld [vmem:[%s1532 + $0xc] sm:$0xff]
    %v1663 = vld [vmem:[%s1532 + $0x1c] sm:$0xff]
    %v1664 = vld [vmem:[%s1532 + $0x24] sm:$0xff]
    %v1665 = vld [vmem:[%s1532 + $0x34] sm:$0xff]
    %v1666 = vld [vmem:[%s1532 + $0x3c] sm:$0xff]
    %v1667 = vld [vmem:[%s1532 + $0x4c] sm:$0xff]
    %v1668 = vld [vmem:[%s1532 + $0x54] sm:$0xff]
    %v1669 = vld [vmem:[%s1532 + $0x64] sm:$0xff]
    %v1670 = vld [vmem:[%s1532 + $0x6c] sm:$0xff]
    %v1671 = vld [vmem:[%s1532 + $0x7c] sm:$0xff]
    %v1672 = vld [vmem:[%s1532 + $0x84] sm:$0xff]
    %v1673 = vld [vmem:[%s1532 + $0x94] sm:$0xff]
    %v1674 = vld [vmem:[%s1532 + $0x9c] sm:$0xff]
    %v1675 = vld [vmem:[%s1532 + $0xac] sm:$0xff]
    %v1676 = vld [vmem:[%s1532 + $0xb4] sm:$0xff]
    %v1677 = vld [vmem:[%s1532 + $0xc4] sm:$0xff]
    %v1678 = vld [vmem:[%s1532 + $0xcc] sm:$0xff]
    %v1679 = vld [vmem:[%s1532 + $0xdc] sm:$0xff]
    %v1680 = vld [vmem:[%s1532 + $0xe4] sm:$0xff]
    %v1681 = vld [vmem:[%s1532 + $0xf4] sm:$0xff]
    %v1682 = vld [vmem:[%s1532 + $0xfc] sm:$0xff]
    %v1683 = vld [vmem:[%s1532 + $0x10c] sm:$0xff]
    %v1684 = vld [vmem:[%s1532 + $0x114] sm:$0xff]
    %v1685 = vld [vmem:[%s1532 + $0x124] sm:$0xff]
    %v1686 = vld [vmem:[%s1532 + $0x12c] sm:$0xff]
    %v1687 = vld [vmem:[%s1532 + $0x13c] sm:$0xff]
    %v1688 = vld [vmem:[%s1532 + $0x144] sm:$0xff]
    %v1689 = vld [vmem:[%s1532 + $0x154] sm:$0xff]
    %v1690 = vld [vmem:[%s1532 + $0x15c] sm:$0xff]
    %v1691 = vld [vmem:[%s1532 + $0x16c] sm:$0xff]
    %v1692 = vld [vmem:[%s1532 + $0x174] sm:$0xff]
    %v1693 = vld [vmem:[%s1532 + $0x1e4] sm:$0xff]
    %v1694 = vld [vmem:[%s1532 + $0x1ec] sm:$0xff]
    %v1695 = vld [vmem:[%s1532 + $0x1fc] sm:$0xff]
    %v1696 = vld [vmem:[%s1532 + $0x204] sm:$0xff]
    %v1697 = vld [vmem:[%s1532 + $0x214] sm:$0xff]
    %v1698 = vld [vmem:[%s1532 + $0x21c] sm:$0xff]
    %v1699 = vld [vmem:[%s1532 + $0x22c] sm:$0xff]
    %v1700 = vld [vmem:[%s1532 + $0x234] sm:$0xff]
    %v1701 = vld [vmem:[%s1532 + $0x244] sm:$0xff]
    %v1702 = vld [vmem:[%s1532 + $0x24c] sm:$0xff]
    %v1703 = vld [vmem:[%s1532 + $0x25c] sm:$0xff]
    %v1704 = vld [vmem:[%s1532 + $0x264] sm:$0xff]
    %v1705 = vld [vmem:[%s1532 + $0x274] sm:$0xff]
    %v1706 = vld [vmem:[%s1532 + $0x27c] sm:$0xff]
    %v1707 = vld [vmem:[%s1532 + $0x28c] sm:$0xff]
    %v1708 = vld [vmem:[%s1532 + $0x294] sm:$0xff]
    %v1709 = vld [vmem:[%s1532 + $0x2a4] sm:$0xff]
    %v1710 = vld [vmem:[%s1532 + $0x2ac] sm:$0xff]
    %v1711 = vld [vmem:[%s1532 + $0x2bc] sm:$0xff]
    %v1712 = vld [vmem:[%s1532 + $0x2c4] sm:$0xff]
    %v1713 = vld [vmem:[%s1532 + $0x2d4] sm:$0xff]
    %v1714 = vld [vmem:[%s1532 + $0x2dc] sm:$0xff]
    %v1715 = vld [vmem:[%s1532 + $0x2ec] sm:$0xff]
    %v1716 = vld [vmem:[%s1532 + $0x2f4] sm:$0xff]
    %v1717 = vld [vmem:[%s1532 + $0x304] sm:$0xff]
    %v1718 = vld [vmem:[%s1532 + $0x30c] sm:$0xff]
    %v1719 = vld [vmem:[%s1532 + $0x31c] sm:$0xff]
    %v1720 = vld [vmem:[%s1532 + $0x324] sm:$0xff]
    %v1721 = vld [vmem:[%s1532 + $0x334] sm:$0xff]
    %v1722 = vld [vmem:[%s1532 + $0x33c] sm:$0xff]
    %v1723 = vld [vmem:[%s1532 + $0x34c] sm:$0xff]
    %v1724 = vld [vmem:[%s1532 + $0x354] sm:$0xff]
    %v1725 = vpack.c.bf16 %v1149, %v1148
    %v1726 = vpack.c.bf16 %v1213, %v1212
    %v1727 = vpack.c.bf16 %v1277, %v1276
    %v1728 = vpack.c.bf16 %v1341, %v1340
    %v1729 = vpack.c.bf16 %v1405, %v1404
    %v1730 = vpack.c.bf16 %v1469, %v1468
    %v1731 = vpack.c.bf16 %v1534, %v1533
    %v1732 = vpack.c.bf16 %v1598, %v1597
    %v1733 = vpack.c.bf16 %v1662, %v1661
    %v1734 = vpack.c.bf16 %v1151, %v1150
    %v1735 = vpack.c.bf16 %v1215, %v1214
    %v1736 = vpack.c.bf16 %v1279, %v1278
    %v1737 = vpack.c.bf16 %v1343, %v1342
    %v1738 = vpack.c.bf16 %v1407, %v1406
    %v1739 = vpack.c.bf16 %v1471, %v1470
    %v1740 = vpack.c.bf16 %v1536, %v1535
    %v1741 = vpack.c.bf16 %v1600, %v1599
    %v1742 = vpack.c.bf16 %v1664, %v1663
    %v1743 = vpack.c.bf16 %v1153, %v1152
    %v1744 = vpack.c.bf16 %v1217, %v1216
    %v1745 = vpack.c.bf16 %v1281, %v1280
    %v1746 = vpack.c.bf16 %v1345, %v1344
    %v1747 = vpack.c.bf16 %v1409, %v1408
    %v1748 = vpack.c.bf16 %v1473, %v1472
    %v1749 = vpack.c.bf16 %v1538, %v1537
    %v1750 = vpack.c.bf16 %v1602, %v1601
    %v1751 = vpack.c.bf16 %v1666, %v1665
    %v1752 = vpack.c.bf16 %v1155, %v1154
    %v1753 = vpack.c.bf16 %v1219, %v1218
    %v1754 = vpack.c.bf16 %v1283, %v1282
    %v1755 = vpack.c.bf16 %v1347, %v1346
    %v1756 = vpack.c.bf16 %v1411, %v1410
    %v1757 = vpack.c.bf16 %v1475, %v1474
    %v1758 = vpack.c.bf16 %v1540, %v1539
    %v1759 = vpack.c.bf16 %v1604, %v1603
    %v1760 = vpack.c.bf16 %v1668, %v1667
    %v1761 = vpack.c.bf16 %v1157, %v1156
    %v1762 = vpack.c.bf16 %v1221, %v1220
    %v1763 = vpack.c.bf16 %v1285, %v1284
    %v1764 = vpack.c.bf16 %v1349, %v1348
    %v1765 = vpack.c.bf16 %v1413, %v1412
    %v1766 = vpack.c.bf16 %v1477, %v1476
    %v1767 = vpack.c.bf16 %v1542, %v1541
    %v1768 = vpack.c.bf16 %v1606, %v1605
    %v1769 = vpack.c.bf16 %v1670, %v1669
    %v1770 = vpack.c.bf16 %v1159, %v1158
    %v1771 = vpack.c.bf16 %v1223, %v1222
    %v1772 = vpack.c.bf16 %v1287, %v1286
    %v1773 = vpack.c.bf16 %v1351, %v1350
    %v1774 = vpack.c.bf16 %v1415, %v1414
    %v1775 = vpack.c.bf16 %v1479, %v1478
    %v1776 = vpack.c.bf16 %v1544, %v1543
    %v1777 = vpack.c.bf16 %v1608, %v1607
    %v1778 = vpack.c.bf16 %v1672, %v1671
    %v1779 = vpack.c.bf16 %v1161, %v1160
    %v1780 = vpack.c.bf16 %v1225, %v1224
    %v1781 = vpack.c.bf16 %v1289, %v1288
    %v1782 = vpack.c.bf16 %v1353, %v1352
    %v1783 = vpack.c.bf16 %v1417, %v1416
    %v1784 = vpack.c.bf16 %v1481, %v1480
    %v1785 = vpack.c.bf16 %v1546, %v1545
    %v1786 = vpack.c.bf16 %v1610, %v1609
    %v1787 = vpack.c.bf16 %v1674, %v1673
    %v1788 = vpack.c.bf16 %v1163, %v1162
    %v1789 = vpack.c.bf16 %v1227, %v1226
    %v1790 = vpack.c.bf16 %v1291, %v1290
    %v1791 = vpack.c.bf16 %v1355, %v1354
    %v1792 = vpack.c.bf16 %v1419, %v1418
    %v1793 = vpack.c.bf16 %v1483, %v1482
    %v1794 = vpack.c.bf16 %v1548, %v1547
    %v1795 = vpack.c.bf16 %v1612, %v1611
    %v1796 = vpack.c.bf16 %v1676, %v1675
    %v1797 = vpack.c.bf16 %v1165, %v1164
    %v1798 = vpack.c.bf16 %v1229, %v1228
    %v1799 = vpack.c.bf16 %v1293, %v1292
    %v1800 = vpack.c.bf16 %v1357, %v1356
    %v1801 = vpack.c.bf16 %v1421, %v1420
    %v1802 = vpack.c.bf16 %v1485, %v1484
    %v1803 = vpack.c.bf16 %v1550, %v1549
    %v1804 = vpack.c.bf16 %v1614, %v1613
    %v1805 = vpack.c.bf16 %v1678, %v1677
    %v1806 = vpack.c.bf16 %v1167, %v1166
    %v1807 = vpack.c.bf16 %v1231, %v1230
    %v1808 = vpack.c.bf16 %v1295, %v1294
    %v1809 = vpack.c.bf16 %v1359, %v1358
    %v1810 = vpack.c.bf16 %v1423, %v1422
    %v1811 = vpack.c.bf16 %v1487, %v1486
    %v1812 = vpack.c.bf16 %v1552, %v1551
    %v1813 = vpack.c.bf16 %v1616, %v1615
    %v1814 = vpack.c.bf16 %v1680, %v1679
    %v1815 = vpack.c.bf16 %v1169, %v1168
    %v1816 = vpack.c.bf16 %v1233, %v1232
    %v1817 = vpack.c.bf16 %v1297, %v1296
    %v1818 = vpack.c.bf16 %v1361, %v1360
    %v1819 = vpack.c.bf16 %v1425, %v1424
    %v1820 = vpack.c.bf16 %v1489, %v1488
    %v1821 = vpack.c.bf16 %v1554, %v1553
    %v1822 = vpack.c.bf16 %v1618, %v1617
    %v1823 = vpack.c.bf16 %v1682, %v1681
    %v1824 = vpack.c.bf16 %v1171, %v1170
    %v1825 = vpack.c.bf16 %v1235, %v1234
    %v1826 = vpack.c.bf16 %v1299, %v1298
    %v1827 = vpack.c.bf16 %v1363, %v1362
    %v1828 = vpack.c.bf16 %v1427, %v1426
    %v1829 = vpack.c.bf16 %v1491, %v1490
    %v1830 = vpack.c.bf16 %v1556, %v1555
    %v1831 = vpack.c.bf16 %v1620, %v1619
    %v1832 = vpack.c.bf16 %v1684, %v1683
    %v1833 = vpack.c.bf16 %v1173, %v1172
    %v1834 = vpack.c.bf16 %v1237, %v1236
    %v1835 = vpack.c.bf16 %v1301, %v1300
    %v1836 = vpack.c.bf16 %v1365, %v1364
    %v1837 = vpack.c.bf16 %v1429, %v1428
    %v1838 = vpack.c.bf16 %v1493, %v1492
    %v1839 = vpack.c.bf16 %v1558, %v1557
    %v1840 = vpack.c.bf16 %v1622, %v1621
    %v1841 = vpack.c.bf16 %v1686, %v1685
    %v1842 = vpack.c.bf16 %v1175, %v1174
    %v1843 = vpack.c.bf16 %v1239, %v1238
    %v1844 = vpack.c.bf16 %v1303, %v1302
    %v1845 = vpack.c.bf16 %v1367, %v1366
    %v1846 = vpack.c.bf16 %v1431, %v1430
    %v1847 = vpack.c.bf16 %v1495, %v1494
    %v1848 = vpack.c.bf16 %v1560, %v1559
    %v1849 = vpack.c.bf16 %v1624, %v1623
    %v1850 = vpack.c.bf16 %v1688, %v1687
    %v1851 = vpack.c.bf16 %v1177, %v1176
    %v1852 = vpack.c.bf16 %v1241, %v1240
    %v1853 = vpack.c.bf16 %v1305, %v1304
    %v1854 = vpack.c.bf16 %v1369, %v1368
    %v1855 = vpack.c.bf16 %v1433, %v1432
    %v1856 = vpack.c.bf16 %v1497, %v1496
    %v1857 = vpack.c.bf16 %v1562, %v1561
    %v1858 = vpack.c.bf16 %v1626, %v1625
    %v1859 = vpack.c.bf16 %v1690, %v1689
    %v1860 = vpack.c.bf16 %v1179, %v1178
    %v1861 = vpack.c.bf16 %v1243, %v1242
    %v1862 = vpack.c.bf16 %v1307, %v1306
    %v1863 = vpack.c.bf16 %v1371, %v1370
    %v1864 = vpack.c.bf16 %v1435, %v1434
    %v1865 = vpack.c.bf16 %v1499, %v1498
    %v1866 = vpack.c.bf16 %v1564, %v1563
    %v1867 = vpack.c.bf16 %v1628, %v1627
    %v1868 = vpack.c.bf16 %v1692, %v1691
    %v1869 = vpack.c.bf16 %v1181, %v1180
    %v1870 = vpack.c.bf16 %v1245, %v1244
    %v1871 = vpack.c.bf16 %v1309, %v1308
    %v1872 = vpack.c.bf16 %v1373, %v1372
    %v1873 = vpack.c.bf16 %v1437, %v1436
    %v1874 = vpack.c.bf16 %v1501, %v1500
    %v1875 = vpack.c.bf16 %v1566, %v1565
    %v1876 = vpack.c.bf16 %v1630, %v1629
    %v1877 = vpack.c.bf16 %v1694, %v1693
    %v1878 = vpack.c.bf16 %v1183, %v1182
    %v1879 = vpack.c.bf16 %v1247, %v1246
    %v1880 = vpack.c.bf16 %v1311, %v1310
    %v1881 = vpack.c.bf16 %v1375, %v1374
    %v1882 = vpack.c.bf16 %v1439, %v1438
    %v1883 = vpack.c.bf16 %v1503, %v1502
    %v1884 = vpack.c.bf16 %v1568, %v1567
    %v1885 = vpack.c.bf16 %v1632, %v1631
    %v1886 = vpack.c.bf16 %v1696, %v1695
    %v1887 = vpack.c.bf16 %v1185, %v1184
    %v1888 = vpack.c.bf16 %v1249, %v1248
    %v1889 = vpack.c.bf16 %v1313, %v1312
    %v1890 = vpack.c.bf16 %v1377, %v1376
    %v1891 = vpack.c.bf16 %v1441, %v1440
    %v1892 = vpack.c.bf16 %v1505, %v1504
    %v1893 = vpack.c.bf16 %v1570, %v1569
    %v1894 = vpack.c.bf16 %v1634, %v1633
    %v1895 = vpack.c.bf16 %v1698, %v1697
    %v1896 = vpack.c.bf16 %v1187, %v1186
    %v1897 = vpack.c.bf16 %v1251, %v1250
    %v1898 = vpack.c.bf16 %v1315, %v1314
    %v1899 = vpack.c.bf16 %v1379, %v1378
    %v1900 = vpack.c.bf16 %v1443, %v1442
    %v1901 = vpack.c.bf16 %v1507, %v1506
    %v1902 = vpack.c.bf16 %v1572, %v1571
    %v1903 = vpack.c.bf16 %v1636, %v1635
    %v1904 = vpack.c.bf16 %v1700, %v1699
    %v1905 = vpack.c.bf16 %v1189, %v1188
    %v1906 = vpack.c.bf16 %v1253, %v1252
    %v1907 = vpack.c.bf16 %v1317, %v1316
    %v1908 = vpack.c.bf16 %v1381, %v1380
    %v1909 = vpack.c.bf16 %v1445, %v1444
    %v1910 = vpack.c.bf16 %v1509, %v1508
    %v1911 = vpack.c.bf16 %v1574, %v1573
    %v1912 = vpack.c.bf16 %v1638, %v1637
    %v1913 = vpack.c.bf16 %v1702, %v1701
    %v1914 = vpack.c.bf16 %v1191, %v1190
    %v1915 = vpack.c.bf16 %v1255, %v1254
    %v1916 = vpack.c.bf16 %v1319, %v1318
    %v1917 = vpack.c.bf16 %v1383, %v1382
    %v1918 = vpack.c.bf16 %v1447, %v1446
    %v1919 = vpack.c.bf16 %v1511, %v1510
    %v1920 = vpack.c.bf16 %v1576, %v1575
    %v1921 = vpack.c.bf16 %v1640, %v1639
    %v1922 = vpack.c.bf16 %v1704, %v1703
    %v1923 = vpack.c.bf16 %v1193, %v1192
    %v1924 = vpack.c.bf16 %v1257, %v1256
    %v1925 = vpack.c.bf16 %v1321, %v1320
    %v1926 = vpack.c.bf16 %v1385, %v1384
    %v1927 = vpack.c.bf16 %v1449, %v1448
    %v1928 = vpack.c.bf16 %v1513, %v1512
    %v1929 = vpack.c.bf16 %v1578, %v1577
    %v1930 = vpack.c.bf16 %v1642, %v1641
    %v1931 = vpack.c.bf16 %v1706, %v1705
    %v1932 = vpack.c.bf16 %v1195, %v1194
    %v1933 = vpack.c.bf16 %v1259, %v1258
    %v1934 = vpack.c.bf16 %v1323, %v1322
    %v1935 = vpack.c.bf16 %v1387, %v1386
    %v1936 = vpack.c.bf16 %v1451, %v1450
    %v1937 = vpack.c.bf16 %v1515, %v1514
    %v1938 = vpack.c.bf16 %v1580, %v1579
    %v1939 = vpack.c.bf16 %v1644, %v1643
    %v1940 = vpack.c.bf16 %v1708, %v1707
    %v1941 = vpack.c.bf16 %v1197, %v1196
    %v1942 = vpack.c.bf16 %v1261, %v1260
    %v1943 = vpack.c.bf16 %v1325, %v1324
    %v1944 = vpack.c.bf16 %v1389, %v1388
    %v1945 = vpack.c.bf16 %v1453, %v1452
    %v1946 = vpack.c.bf16 %v1517, %v1516
    %v1947 = vpack.c.bf16 %v1582, %v1581
    %v1948 = vpack.c.bf16 %v1646, %v1645
    %v1949 = vpack.c.bf16 %v1710, %v1709
    %v1950 = vpack.c.bf16 %v1199, %v1198
    %v1951 = vpack.c.bf16 %v1263, %v1262
    %v1952 = vpack.c.bf16 %v1327, %v1326
    %v1953 = vpack.c.bf16 %v1391, %v1390
    %v1954 = vpack.c.bf16 %v1455, %v1454
    %v1955 = vpack.c.bf16 %v1519, %v1518
    %v1956 = vpack.c.bf16 %v1584, %v1583
    %v1957 = vpack.c.bf16 %v1648, %v1647
    %v1958 = vpack.c.bf16 %v1712, %v1711
    %v1959 = vpack.c.bf16 %v1201, %v1200
    %v1960 = vpack.c.bf16 %v1265, %v1264
    %v1961 = vpack.c.bf16 %v1329, %v1328
    %v1962 = vpack.c.bf16 %v1393, %v1392
    %v1963 = vpack.c.bf16 %v1457, %v1456
    %v1964 = vpack.c.bf16 %v1521, %v1520
    %v1965 = vpack.c.bf16 %v1586, %v1585
    %v1966 = vpack.c.bf16 %v1650, %v1649
    %v1967 = vpack.c.bf16 %v1714, %v1713
    %v1968 = vpack.c.bf16 %v1203, %v1202
    %v1969 = vpack.c.bf16 %v1267, %v1266
    %v1970 = vpack.c.bf16 %v1331, %v1330
    %v1971 = vpack.c.bf16 %v1395, %v1394
    %v1972 = vpack.c.bf16 %v1459, %v1458
    %v1973 = vpack.c.bf16 %v1523, %v1522
    %v1974 = vpack.c.bf16 %v1588, %v1587
    %v1975 = vpack.c.bf16 %v1652, %v1651
    %v1976 = vpack.c.bf16 %v1716, %v1715
    %v1977 = vpack.c.bf16 %v1205, %v1204
    %v1978 = vpack.c.bf16 %v1269, %v1268
    %v1979 = vpack.c.bf16 %v1333, %v1332
    %v1980 = vpack.c.bf16 %v1397, %v1396
    %v1981 = vpack.c.bf16 %v1461, %v1460
    %v1982 = vpack.c.bf16 %v1525, %v1524
    %v1983 = vpack.c.bf16 %v1590, %v1589
    %v1984 = vpack.c.bf16 %v1654, %v1653
    %v1985 = vpack.c.bf16 %v1718, %v1717
    %v1986 = vpack.c.bf16 %v1207, %v1206
    %v1987 = vpack.c.bf16 %v1271, %v1270
    %v1988 = vpack.c.bf16 %v1335, %v1334
    %v1989 = vpack.c.bf16 %v1399, %v1398
    %v1990 = vpack.c.bf16 %v1463, %v1462
    %v1991 = vpack.c.bf16 %v1527, %v1526
    %v1992 = vpack.c.bf16 %v1592, %v1591
    %v1993 = vpack.c.bf16 %v1656, %v1655
    %v1994 = vpack.c.bf16 %v1720, %v1719
    %v1995 = vpack.c.bf16 %v1209, %v1208
    %v1996 = vpack.c.bf16 %v1273, %v1272
    %v1997 = vpack.c.bf16 %v1337, %v1336
    %v1998 = vpack.c.bf16 %v1401, %v1400
    %v1999 = vpack.c.bf16 %v1465, %v1464
    %v2000 = vpack.c.bf16 %v1529, %v1528
    %v2001 = vpack.c.bf16 %v1594, %v1593
    %v2002 = vpack.c.bf16 %v1658, %v1657
    %v2003 = vpack.c.bf16 %v1722, %v1721
    %v2004 = vpack.c.bf16 %v1211, %v1210
    %v2005 = vpack.c.bf16 %v1275, %v1274
    %v2006 = vpack.c.bf16 %v1339, %v1338
    %v2007 = vpack.c.bf16 %v1403, %v1402
    %v2008 = vpack.c.bf16 %v1467, %v1466
    %v2009 = vpack.c.bf16 %v1531, %v1530
    %v2010 = vpack.c.bf16 %v1596, %v1595
    %v2011 = vpack.c.bf16 %v1660, %v1659
    %v2012 = vpack.c.bf16 %v1724, %v1723
    %v2013 = vld [vmem:[%s2] sm:$0xf]
    %v2014 = vld [vmem:[%s2 + $0x4] sm:$0xf]
    %v2015 = vld [vmem:[%s2 + $0x8] sm:$0xf]
    %v2016 = vld [vmem:[%s2 + $0xc] sm:$0xf]
    %v2017 = vld [vmem:[%s2 + $0x10] sm:$0xf]
    %v2018 = vld [vmem:[%s2 + $0x14] sm:$0xf]
    %v2019 = vld [vmem:[%s2 + $0x18] sm:$0xf]
    %v2020 = vld [vmem:[%s2 + $0x1c] sm:$0xf]
    %v2021 = vld [vmem:[%s2 + $0x20] sm:$0xf]
    %v2022 = vld [vmem:[%s2 + $0x24] sm:$0xf]
    %v2023 = vld [vmem:[%s2 + $0x28] sm:$0xf]
    %v2024 = vld [vmem:[%s2 + $0x2c] sm:$0xf]
    %v2025 = vld [vmem:[%s2 + $0x30] sm:$0xf]
    %v2026 = vld [vmem:[%s2 + $0x34] sm:$0xf]
    %v2027 = vld [vmem:[%s2 + $0x38] sm:$0xf]
    %v2028 = vld [vmem:[%s2 + $0x3c] sm:$0xf]
    %v2029 = vld [vmem:[%s2 + $0x40] sm:$0xf]
    %v2030 = vld [vmem:[%s2 + $0x44] sm:$0xf]
    %v2031 = vld [vmem:[%s2 + $0x48] sm:$0xf]
    %v2032 = vld [vmem:[%s2 + $0x4c] sm:$0xf]
    %v2033 = vld [vmem:[%s2 + $0x50] sm:$0xf]
    %v2034 = vld [vmem:[%s2 + $0x54] sm:$0xf]
    %v2035 = vld [vmem:[%s2 + $0x58] sm:$0xf]
    %v2036 = vld [vmem:[%s2 + $0x5c] sm:$0xf]
    %v2037 = vld [vmem:[%s2 + $0x60] sm:$0xf]
    %v2038 = vld [vmem:[%s2 + $0x64] sm:$0xf]
    %v2039 = vld [vmem:[%s2 + $0x68] sm:$0xf]
    %v2040 = vld [vmem:[%s2 + $0x6c] sm:$0xf]
    %v2041 = vld [vmem:[%s2 + $0x70] sm:$0xf]
    %v2042 = vld [vmem:[%s2 + $0x74] sm:$0xf]
    %v2043 = vld [vmem:[%s2 + $0x78] sm:$0xf]
    %v2044 = vld [vmem:[%s2 + $0x7c] sm:$0xf]
    %v2045 = vld [vmem:[%s2 + $0x80] sm:$0xf]
    %v2046 = vld [vmem:[%s2 + $0x84] sm:$0xf]
    %v2047 = vld [vmem:[%s2 + $0x88] sm:$0xf]
    %v2048 = vld [vmem:[%s2 + $0x8c] sm:$0xf]
    %v2049 = vld [vmem:[%s2 + $0x90] sm:$0xf]
    %v2050 = vld [vmem:[%s2 + $0x94] sm:$0xf]
    %v2051 = vld [vmem:[%s2 + $0x98] sm:$0xf]
    %v2052 = vld [vmem:[%s2 + $0x9c] sm:$0xf]
    %v2053 = vld [vmem:[%s2 + $0xa0] sm:$0xf]
    %v2054 = vld [vmem:[%s2 + $0xa4] sm:$0xf]
    %v2055 = vld [vmem:[%s2 + $0xa8] sm:$0xf]
    %v2056 = vld [vmem:[%s2 + $0xac] sm:$0xf]
    %v2057 = vld [vmem:[%s2 + $0xb0] sm:$0xf]
    %v2058 = vld [vmem:[%s2 + $0xb4] sm:$0xf]
    %v2059 = vld [vmem:[%s2 + $0xb8] sm:$0xf]
    %v2060 = vld [vmem:[%s2 + $0xbc] sm:$0xf]
    %v2061 = vld [vmem:[%s2 + $0xc0] sm:$0xf]
    %v2062 = vld [vmem:[%s2 + $0xc4] sm:$0xf]
    %v2063 = vld [vmem:[%s2 + $0xc8] sm:$0xf]
    %v2064 = vld [vmem:[%s2 + $0xcc] sm:$0xf]
    %v2065 = vld [vmem:[%s2 + $0xd0] sm:$0xf]
    %v2066 = vld [vmem:[%s2 + $0xd4] sm:$0xf]
    %v2067 = vld [vmem:[%s2 + $0xd8] sm:$0xf]
    %v2068 = vld [vmem:[%s2 + $0xdc] sm:$0xf]
    %v2069 = vld [vmem:[%s2 + $0xe0] sm:$0xf]
    %v2070 = vld [vmem:[%s2 + $0xe4] sm:$0xf]
    %v2071 = vld [vmem:[%s2 + $0xe8] sm:$0xf]
    %v2072 = vld [vmem:[%s2 + $0xec] sm:$0xf]
    %v2073 = vld [vmem:[%s2 + $0xf0] sm:$0xf]
    %v2074 = vld [vmem:[%s2 + $0xf4] sm:$0xf]
    %v2075 = vld [vmem:[%s2 + $0xf8] sm:$0xf]
    %v2076 = vld [vmem:[%s2 + $0xfc] sm:$0xf]
    %v2077 = vld [vmem:[%s2 + $0x100] sm:$0xf]
    %v2078 = vld [vmem:[%s2 + $0x104] sm:$0xf]
    %v2079 = vld [vmem:[%s2 + $0x108] sm:$0xf]
    %v2080 = vld [vmem:[%s2 + $0x10c] sm:$0xf]
    %v2081 = vld [vmem:[%s2 + $0x110] sm:$0xf]
    %v2082 = vld [vmem:[%s2 + $0x114] sm:$0xf]
    %v2083 = vld [vmem:[%s2 + $0x118] sm:$0xf]
    %v2084 = vld [vmem:[%s2 + $0x11c] sm:$0xf]
    %v2085 = vld [vmem:[%s2 + $0x120] sm:$0xf]
    %v2086 = vld [vmem:[%s2 + $0x124] sm:$0xf]
    %v2087 = vld [vmem:[%s2 + $0x128] sm:$0xf]
    %v2088 = vld [vmem:[%s2 + $0x12c] sm:$0xf]
    %v2089 = vld [vmem:[%s2 + $0x130] sm:$0xf]
    %v2090 = vld [vmem:[%s2 + $0x134] sm:$0xf]
    %v2091 = vld [vmem:[%s2 + $0x138] sm:$0xf]
    %v2092 = vld [vmem:[%s2 + $0x13c] sm:$0xf]
    %v2093 = vld [vmem:[%s2 + $0x140] sm:$0xf]
    %v2094 = vld [vmem:[%s2 + $0x144] sm:$0xf]
    %v2095 = vld [vmem:[%s2 + $0x148] sm:$0xf]
    %v2096 = vld [vmem:[%s2 + $0x14c] sm:$0xf]
    %v2097 = vld [vmem:[%s2 + $0x150] sm:$0xf]
    %v2098 = vld [vmem:[%s2 + $0x154] sm:$0xf]
    %v2099 = vld [vmem:[%s2 + $0x158] sm:$0xf]
    %v2100 = vld [vmem:[%s2 + $0x15c] sm:$0xf]
    %v2101 = vld [vmem:[%s2 + $0x160] sm:$0xf]
    %v2102 = vld [vmem:[%s2 + $0x164] sm:$0xf]
    %v2103 = vld [vmem:[%s2 + $0x168] sm:$0xf]
    %v2104 = vld [vmem:[%s2 + $0x16c] sm:$0xf]
    %v2105 = vld [vmem:[%s2 + $0x170] sm:$0xf]
    %v2106 = vld [vmem:[%s2 + $0x174] sm:$0xf]
    %v2107 = vld [vmem:[%s2 + $0x178] sm:$0xf]
    %v2108 = vld [vmem:[%s2 + $0x17c] sm:$0xf]
    %v2109 = vld [vmem:[%s2 + $0x180] sm:$0xf]
    %v2110 = vld [vmem:[%s2 + $0x184] sm:$0xf]
    %v2111 = vld [vmem:[%s2 + $0x188] sm:$0xf]
    %v2112 = vld [vmem:[%s2 + $0x18c] sm:$0xf]
    %v2113 = vld [vmem:[%s2 + $0x190] sm:$0xf]
    %v2114 = vld [vmem:[%s2 + $0x194] sm:$0xf]
    %v2115 = vld [vmem:[%s2 + $0x198] sm:$0xf]
    %v2116 = vld [vmem:[%s2 + $0x19c] sm:$0xf]
    %v2117 = vld [vmem:[%s2 + $0x1a0] sm:$0xf]
    %v2118 = vld [vmem:[%s2 + $0x1a4] sm:$0xf]
    %v2119 = vld [vmem:[%s2 + $0x1a8] sm:$0xf]
    %v2120 = vld [vmem:[%s2 + $0x1ac] sm:$0xf]
    %v2121 = vld [vmem:[%s2 + $0x1b0] sm:$0xf]
    %v2122 = vld [vmem:[%s2 + $0x1b4] sm:$0xf]
    %v2123 = vld [vmem:[%s2 + $0x1b8] sm:$0xf]
    %v2124 = vld [vmem:[%s2 + $0x1bc] sm:$0xf]
    %v2125 = vld [vmem:[%s2 + $0x1c0] sm:$0xf]
    %v2126 = vld [vmem:[%s2 + $0x1c4] sm:$0xf]
    %v2127 = vld [vmem:[%s2 + $0x1c8] sm:$0xf]
    %v2128 = vld [vmem:[%s2 + $0x1cc] sm:$0xf]
    %v2129 = vld [vmem:[%s2 + $0x1d0] sm:$0xf]
    %v2130 = vld [vmem:[%s2 + $0x1d4] sm:$0xf]
    %v2131 = vld [vmem:[%s2 + $0x1d8] sm:$0xf]
    %v2132 = vld [vmem:[%s2 + $0x1dc] sm:$0xf]
    %v2133 = vld [vmem:[%s2 + $0x1e0] sm:$0xf]
    %v2134 = vld [vmem:[%s2 + $0x1e4] sm:$0xf]
    %v2135 = vld [vmem:[%s2 + $0x1e8] sm:$0xf]
    %v2136 = vld [vmem:[%s2 + $0x1ec] sm:$0xf]
    %v2137 = vld [vmem:[%s2 + $0x1f0] sm:$0xf]
    %v2138 = vld [vmem:[%s2 + $0x1f4] sm:$0xf]
    %v2139 = vld [vmem:[%s2 + $0x1f8] sm:$0xf]
    %v2140 = vld [vmem:[%s2 + $0x1fc] sm:$0xf]
    %v2141 = vld [vmem:[%s2 + $0x200] sm:$0xf]
    %v2142 = vld [vmem:[%s2 + $0x204] sm:$0xf]
    %v2143 = vld [vmem:[%s2 + $0x208] sm:$0xf]
    %v2144 = vld [vmem:[%s2 + $0x20c] sm:$0xf]
    %v2145 = vld [vmem:[%s2 + $0x210] sm:$0xf]
    %v2146 = vld [vmem:[%s2 + $0x214] sm:$0xf]
    %v2147 = vld [vmem:[%s2 + $0x218] sm:$0xf]
    %v2148 = vld [vmem:[%s2 + $0x21c] sm:$0xf]
    %v2149 = vld [vmem:[%s2 + $0x220] sm:$0xf]
    %v2150 = vld [vmem:[%s2 + $0x224] sm:$0xf]
    %v2151 = vld [vmem:[%s2 + $0x228] sm:$0xf]
    %v2152 = vld [vmem:[%s2 + $0x22c] sm:$0xf]
    %v2153 = vld [vmem:[%s2 + $0x230] sm:$0xf]
    %v2154 = vld [vmem:[%s2 + $0x234] sm:$0xf]
    %v2155 = vld [vmem:[%s2 + $0x238] sm:$0xf]
    %v2156 = vld [vmem:[%s2 + $0x23c] sm:$0xf]
    %v2301 = vunpack.c.l.b16 %v2013
    %v2302 = vunpack.c.l.b16 %v2014
    %v2303 = vunpack.c.l.b16 %v2015
    %v2304 = vunpack.c.l.b16 %v2016
    %v2305 = vunpack.c.l.b16 %v2017
    %v2306 = vunpack.c.l.b16 %v2018
    %v2307 = vunpack.c.l.b16 %v2019
    %v2308 = vunpack.c.l.b16 %v2020
    %v2309 = vunpack.c.l.b16 %v2021
    %v2310 = vunpack.c.l.b16 %v2022
    %v2311 = vunpack.c.l.b16 %v2023
    %v2312 = vunpack.c.l.b16 %v2024
    %v2313 = vunpack.c.l.b16 %v2025
    %v2314 = vunpack.c.l.b16 %v2026
    %v2315 = vunpack.c.l.b16 %v2027
    %v2316 = vunpack.c.l.b16 %v2028
    %v2317 = vunpack.c.l.b16 %v2029
    %v2318 = vunpack.c.l.b16 %v2030
    %v2319 = vunpack.c.l.b16 %v2031
    %v2320 = vunpack.c.l.b16 %v2032
    %v2321 = vunpack.c.l.b16 %v2033
    %v2322 = vunpack.c.l.b16 %v2034
    %v2323 = vunpack.c.l.b16 %v2035
    %v2324 = vunpack.c.l.b16 %v2036
    %v2325 = vunpack.c.l.b16 %v2037
    %v2326 = vunpack.c.l.b16 %v2038
    %v2327 = vunpack.c.l.b16 %v2039
    %v2328 = vunpack.c.l.b16 %v2040
    %v2329 = vunpack.c.l.b16 %v2041
    %v2330 = vunpack.c.l.b16 %v2042
    %v2331 = vunpack.c.l.b16 %v2043
    %v2332 = vunpack.c.l.b16 %v2044
    %v2333 = vunpack.c.l.b16 %v2045
    %v2334 = vunpack.c.l.b16 %v2046
    %v2335 = vunpack.c.l.b16 %v2047
    %v2336 = vunpack.c.l.b16 %v2048
    %v2337 = vunpack.c.l.b16 %v2049
    %v2338 = vunpack.c.l.b16 %v2050
    %v2339 = vunpack.c.l.b16 %v2051
    %v2340 = vunpack.c.l.b16 %v2052
    %v2341 = vunpack.c.l.b16 %v2053
    %v2342 = vunpack.c.l.b16 %v2054
    %v2343 = vunpack.c.l.b16 %v2055
    %v2344 = vunpack.c.l.b16 %v2056
    %v2345 = vunpack.c.l.b16 %v2057
    %v2346 = vunpack.c.l.b16 %v2058
    %v2347 = vunpack.c.l.b16 %v2059
    %v2348 = vunpack.c.l.b16 %v2060
    %v2349 = vunpack.c.l.b16 %v2061
    %v2350 = vunpack.c.l.b16 %v2062
    %v2351 = vunpack.c.l.b16 %v2063
    %v2352 = vunpack.c.l.b16 %v2064
    %v2353 = vunpack.c.l.b16 %v2065
    %v2354 = vunpack.c.l.b16 %v2066
    %v2355 = vunpack.c.l.b16 %v2067
    %v2356 = vunpack.c.l.b16 %v2068
    %v2357 = vunpack.c.l.b16 %v2069
    %v2358 = vunpack.c.l.b16 %v2070
    %v2359 = vunpack.c.l.b16 %v2071
    %v2360 = vunpack.c.l.b16 %v2072
    %v2361 = vunpack.c.l.b16 %v2073
    %v2362 = vunpack.c.l.b16 %v2074
    %v2363 = vunpack.c.l.b16 %v2075
    %v2364 = vunpack.c.l.b16 %v2076
    %v2365 = vunpack.c.l.b16 %v2077
    %v2366 = vunpack.c.l.b16 %v2078
    %v2367 = vunpack.c.l.b16 %v2079
    %v2368 = vunpack.c.l.b16 %v2080
    %v2369 = vunpack.c.l.b16 %v2081
    %v2370 = vunpack.c.l.b16 %v2082
    %v2371 = vunpack.c.l.b16 %v2083
    %v2372 = vunpack.c.l.b16 %v2084
    %v2373 = vunpack.c.l.b16 %v2085
    %v2374 = vunpack.c.l.b16 %v2086
    %v2375 = vunpack.c.l.b16 %v2087
    %v2376 = vunpack.c.l.b16 %v2088
    %v2377 = vunpack.c.l.b16 %v2089
    %v2378 = vunpack.c.l.b16 %v2090
    %v2379 = vunpack.c.l.b16 %v2091
    %v2380 = vunpack.c.l.b16 %v2092
    %v2381 = vunpack.c.l.b16 %v2093
    %v2382 = vunpack.c.l.b16 %v2094
    %v2383 = vunpack.c.l.b16 %v2095
    %v2384 = vunpack.c.l.b16 %v2096
    %v2385 = vunpack.c.l.b16 %v2097
    %v2386 = vunpack.c.l.b16 %v2098
    %v2387 = vunpack.c.l.b16 %v2099
    %v2388 = vunpack.c.l.b16 %v2100
    %v2389 = vunpack.c.l.b16 %v2101
    %v2390 = vunpack.c.l.b16 %v2102
    %v2391 = vunpack.c.l.b16 %v2103
    %v2392 = vunpack.c.l.b16 %v2104
    %v2393 = vunpack.c.l.b16 %v2105
    %v2394 = vunpack.c.l.b16 %v2106
    %v2395 = vunpack.c.l.b16 %v2107
    %v2396 = vunpack.c.l.b16 %v2108
    %v2397 = vunpack.c.l.b16 %v2109
    %v2398 = vunpack.c.l.b16 %v2110
    %v2399 = vunpack.c.l.b16 %v2111
    %v2400 = vunpack.c.l.b16 %v2112
    %v2401 = vunpack.c.l.b16 %v2113
    %v2402 = vunpack.c.l.b16 %v2114
    %v2403 = vunpack.c.l.b16 %v2115
    %v2404 = vunpack.c.l.b16 %v2116
    %v2405 = vunpack.c.l.b16 %v2117
    %v2406 = vunpack.c.l.b16 %v2118
    %v2407 = vunpack.c.l.b16 %v2119
    %v2408 = vunpack.c.l.b16 %v2120
    %v2409 = vunpack.c.l.b16 %v2121
    %v2410 = vunpack.c.l.b16 %v2122
    %v2411 = vunpack.c.l.b16 %v2123
    %v2412 = vunpack.c.l.b16 %v2124
    %v2413 = vunpack.c.l.b16 %v2125
    %v2414 = vunpack.c.l.b16 %v2126
    %v2415 = vunpack.c.l.b16 %v2127
    %v2416 = vunpack.c.l.b16 %v2128
    %v2417 = vunpack.c.l.b16 %v2129
    %v2418 = vunpack.c.l.b16 %v2130
    %v2419 = vunpack.c.l.b16 %v2131
    %v2420 = vunpack.c.l.b16 %v2132
    %v2421 = vunpack.c.l.b16 %v2133
    %v2422 = vunpack.c.l.b16 %v2134
    %v2423 = vunpack.c.l.b16 %v2135
    %v2424 = vunpack.c.l.b16 %v2136
    %v2425 = vunpack.c.l.b16 %v2137
    %v2426 = vunpack.c.l.b16 %v2138
    %v2427 = vunpack.c.l.b16 %v2139
    %v2428 = vunpack.c.l.b16 %v2140
    %v2429 = vunpack.c.l.b16 %v2141
    %v2430 = vunpack.c.l.b16 %v2142
    %v2431 = vunpack.c.l.b16 %v2143
    %v2432 = vunpack.c.l.b16 %v2144
    %v2433 = vunpack.c.l.b16 %v2145
    %v2434 = vunpack.c.l.b16 %v2146
    %v2435 = vunpack.c.l.b16 %v2147
    %v2436 = vunpack.c.l.b16 %v2148
    %v2437 = vunpack.c.l.b16 %v2149
    %v2438 = vunpack.c.l.b16 %v2150
    %v2439 = vunpack.c.l.b16 %v2151
    %v2440 = vunpack.c.l.b16 %v2152
    %v2441 = vunpack.c.l.b16 %v2153
    %v2442 = vunpack.c.l.b16 %v2154
    %v2443 = vunpack.c.l.b16 %v2155
    %v2444 = vunpack.c.l.b16 %v2156
    %v2445 = vpack.c.b16 %v2302, %v2301
    %v2446 = vpack.c.b16 %v2304, %v2303
    %v2447 = vpack.c.b16 %v2306, %v2305
    %v2448 = vpack.c.b16 %v2308, %v2307
    %v2449 = vpack.c.b16 %v2310, %v2309
    %v2450 = vpack.c.b16 %v2312, %v2311
    %v2451 = vpack.c.b16 %v2314, %v2313
    %v2452 = vpack.c.b16 %v2316, %v2315
    %v2453 = vpack.c.b16 %v2318, %v2317
    %v2454 = vpack.c.b16 %v2320, %v2319
    %v2455 = vpack.c.b16 %v2322, %v2321
    %v2456 = vpack.c.b16 %v2324, %v2323
    %v2457 = vpack.c.b16 %v2326, %v2325
    %v2458 = vpack.c.b16 %v2328, %v2327
    %v2459 = vpack.c.b16 %v2330, %v2329
    %v2460 = vpack.c.b16 %v2332, %v2331
    %v2461 = vpack.c.b16 %v2334, %v2333
    %v2462 = vpack.c.b16 %v2336, %v2335
    %v2463 = vpack.c.b16 %v2338, %v2337
    %v2464 = vpack.c.b16 %v2340, %v2339
    %v2465 = vpack.c.b16 %v2342, %v2341
    %v2466 = vpack.c.b16 %v2344, %v2343
    %v2467 = vpack.c.b16 %v2346, %v2345
    %v2468 = vpack.c.b16 %v2348, %v2347
    %v2469 = vpack.c.b16 %v2350, %v2349
    %v2470 = vpack.c.b16 %v2352, %v2351
    %v2471 = vpack.c.b16 %v2354, %v2353
    %v2472 = vpack.c.b16 %v2356, %v2355
    %v2473 = vpack.c.b16 %v2358, %v2357
    %v2474 = vpack.c.b16 %v2360, %v2359
    %v2475 = vpack.c.b16 %v2362, %v2361
    %v2476 = vpack.c.b16 %v2364, %v2363
    %v2477 = vpack.c.b16 %v2366, %v2365
    %v2478 = vpack.c.b16 %v2368, %v2367
    %v2479 = vpack.c.b16 %v2370, %v2369
    %v2480 = vpack.c.b16 %v2372, %v2371
    %v2481 = vpack.c.b16 %v2374, %v2373
    %v2482 = vpack.c.b16 %v2376, %v2375
    %v2483 = vpack.c.b16 %v2378, %v2377
    %v2484 = vpack.c.b16 %v2380, %v2379
    %v2485 = vpack.c.b16 %v2382, %v2381
    %v2486 = vpack.c.b16 %v2384, %v2383
    %v2487 = vpack.c.b16 %v2386, %v2385
    %v2488 = vpack.c.b16 %v2388, %v2387
    %v2489 = vpack.c.b16 %v2390, %v2389
    %v2490 = vpack.c.b16 %v2392, %v2391
    %v2491 = vpack.c.b16 %v2394, %v2393
    %v2492 = vpack.c.b16 %v2396, %v2395
    %v2493 = vpack.c.b16 %v2398, %v2397
    %v2494 = vpack.c.b16 %v2400, %v2399
    %v2495 = vpack.c.b16 %v2402, %v2401
    %v2496 = vpack.c.b16 %v2404, %v2403
    %v2497 = vpack.c.b16 %v2406, %v2405
    %v2498 = vpack.c.b16 %v2408, %v2407
    %v2499 = vpack.c.b16 %v2410, %v2409
    %v2500 = vpack.c.b16 %v2412, %v2411
    %v2501 = vpack.c.b16 %v2414, %v2413
    %v2502 = vpack.c.b16 %v2416, %v2415
    %v2503 = vpack.c.b16 %v2418, %v2417
    %v2504 = vpack.c.b16 %v2420, %v2419
    %v2505 = vpack.c.b16 %v2422, %v2421
    %v2506 = vpack.c.b16 %v2424, %v2423
    %v2507 = vpack.c.b16 %v2426, %v2425
    %v2508 = vpack.c.b16 %v2428, %v2427
    %v2509 = vpack.c.b16 %v2430, %v2429
    %v2510 = vpack.c.b16 %v2432, %v2431
    %v2511 = vpack.c.b16 %v2434, %v2433
    %v2512 = vpack.c.b16 %v2436, %v2435
    %v2513 = vpack.c.b16 %v2438, %v2437
    %v2514 = vpack.c.b16 %v2440, %v2439
    %v2515 = vpack.c.b16 %v2442, %v2441
    %v2516 = vpack.c.b16 %v2444, %v2443
    %2589 = vmatprep.subr.bf16.mxu0 0
    %2590 = vmatpush1.bf16.msra.mxu0 %v2445
    %2591 = vmatprep.subr.bf16.mxu0 0
    %2592 = vmatpush1.bf16.msra.mxu0 %v2446
    %2593 = vmatprep.subr.bf16.mxu0 0
    %2594 = vmatpush1.bf16.msra.mxu0 %v2447
    %2595 = vmatprep.subr.bf16.mxu0 0
    %2596 = vmatpush1.bf16.msra.mxu0 %v2448
    %2597 = vmatprep.subr.bf16.mxu0 0
    %2598 = vmatpush1.bf16.msra.mxu0 %v2449
    %2599 = vmatprep.subr.bf16.mxu0 0
    %2600 = vmatpush1.bf16.msra.mxu0 %v2450
    %2601 = vmatprep.subr.bf16.mxu0 0
    %2602 = vmatpush1.bf16.msra.mxu0 %v2451
    %2603 = vmatprep.subr.bf16.mxu0 0
    %2604 = vmatpush1.bf16.msra.mxu0 %v2452
    %2605 = vmatprep.subr.bf16.mxu0 0
    %2606 = vmatpush1.bf16.msra.mxu0 %v2453
    %2607 = vmatprep.subr.bf16.mxu0 0
    %2608 = vmatpush1.bf16.msra.mxu0 %v2454
    %2609 = vmatprep.subr.bf16.mxu0 0
    %2610 = vmatpush1.bf16.msra.mxu0 %v2455
    %2611 = vmatprep.subr.bf16.mxu0 0
    %2612 = vmatpush1.bf16.msra.mxu0 %v2456
    %2613 = vmatprep.subr.bf16.mxu0 0
    %2614 = vmatpush1.bf16.msra.mxu0 %v2457
    %2615 = vmatprep.subr.bf16.mxu0 0
    %2616 = vmatpush1.bf16.msra.mxu0 %v2458
    %2617 = vmatprep.subr.bf16.mxu0 0
    %2618 = vmatpush1.bf16.msra.mxu0 %v2459
    %2619 = vmatprep.subr.bf16.mxu0 0
    %2620 = vmatpush1.bf16.msra.mxu0 %v2460
    %2621 = vmatprep.mubr.bf16.mxu0 %v1726
    %2622 = vmatmul.mubr.bf16.gmra.mrb[0].mxu0 %v1725
    %v2623 = vpop.f32.mrb[0].mxu0
    %v2624 = vadd.f32 0.0, %v2623
    %v2625 = vpop.f32.mrb[0].mxu0
    %v2626 = vpop.f32.mrb[0].mxu0
    %v2627 = vadd.f32 0.0, %v2626
    %v2628 = vpop.f32.mrb[0].mxu0
    %2629 = vmatprep.mubr.bf16.mxu0 %v1735
    %2630 = vmatmul.mubr.bf16.gmra.mrb[0].mxu0 %v1734
    %v2631 = vpop.f32.mrb[0].mxu0
    %v2632 = vadd.f32 0.0, %v2631
    %v2633 = vpop.f32.mrb[0].mxu0
    %v2634 = vpop.f32.mrb[0].mxu0
    %v2635 = vadd.f32 0.0, %v2634
    %v2636 = vpop.f32.mrb[0].mxu0
    %2637 = vmatprep.mubr.bf16.mxu0 %v1744
    %2638 = vmatmul.mubr.bf16.gmra.mrb[0].mxu0 %v1743
    %v2639 = vpop.f32.mrb[0].mxu0
    %v2640 = vadd.f32 0.0, %v2639
    %v2641 = vpop.f32.mrb[0].mxu0
    %v2642 = vpop.f32.mrb[0].mxu0
    %v2643 = vadd.f32 0.0, %v2642
    %v2644 = vpop.f32.mrb[0].mxu0
    %2645 = vmatprep.mubr.bf16.mxu0 %v1753
    %2646 = vmatmul.mubr.bf16.gmra.mrb[0].mxu0 %v1752
    %v2647 = vpop.f32.mrb[0].mxu0
    %v2648 = vadd.f32 0.0, %v2647
    %v2649 = vpop.f32.mrb[0].mxu0
    %v2650 = vpop.f32.mrb[0].mxu0
    %v2651 = vadd.f32 0.0, %v2650
    %v2652 = vpop.f32.mrb[0].mxu0
    %2653 = vmatprep.mubr.bf16.mxu0 %v1762
    %2654 = vmatmul.mubr.bf16.gmra.mrb[0].mxu0 %v1761
    %v2655 = vpop.f32.mrb[0].mxu0
    %v2656 = vadd.f32 0.0, %v2655
    %v2657 = vpop.f32.mrb[0].mxu0
    %v2658 = vpop.f32.mrb[0].mxu0
    %v2659 = vadd.f32 0.0, %v2658
    %v2660 = vpop.f32.mrb[0].mxu0
    %2661 = vmatprep.mubr.bf16.mxu0 %v1771
    %2662 = vmatmul.mubr.bf16.gmra.mrb[0].mxu0 %v1770
    %v2663 = vpop.f32.mrb[0].mxu0
    %v2664 = vadd.f32 0.0, %v2663
    %v2665 = vpop.f32.mrb[0].mxu0
    %v2666 = vpop.f32.mrb[0].mxu0
    %v2667 = vadd.f32 0.0, %v2666
    %v2668 = vpop.f32.mrb[0].mxu0
    %2669 = vmatprep.mubr.bf16.mxu0 %v1780
    %2670 = vmatmul.mubr.bf16.gmra.mrb[0].mxu0 %v1779
    %v2671 = vpop.f32.mrb[0].mxu0
    %v2672 = vadd.f32 0.0, %v2671
    %v2673 = vpop.f32.mrb[0].mxu0
    %v2674 = vpop.f32.mrb[0].mxu0
    %v2675 = vadd.f32 0.0, %v2674
    %v2676 = vpop.f32.mrb[0].mxu0
    %2677 = vmatprep.mubr.bf16.mxu0 %v1789
    %2678 = vmatmul.mubr.bf16.gmra.mrb[0].mxu0 %v1788
    %v2679 = vpop.f32.mrb[0].mxu0
    %v2680 = vadd.f32 0.0, %v2679
    %v2681 = vpop.f32.mrb[0].mxu0
    %v2682 = vpop.f32.mrb[0].mxu0
    %v2683 = vadd.f32 0.0, %v2682
    %v2684 = vpop.f32.mrb[0].mxu0
    %2685 = vmatprep.mubr.bf16.mxu0 %v1798
    %2686 = vmatmul.mubr.bf16.gmra.mrb[0].mxu0 %v1797
    %v2687 = vpop.f32.mrb[0].mxu0
    %v2688 = vadd.f32 0.0, %v2687
    %v2689 = vpop.f32.mrb[0].mxu0
    %v2690 = vpop.f32.mrb[0].mxu0
    %v2691 = vadd.f32 0.0, %v2690
    %v2692 = vpop.f32.mrb[0].mxu0
    %2693 = vmatprep.mubr.bf16.mxu0 %v1807
    %2694 = vmatmul.mubr.bf16.gmra.mrb[0].mxu0 %v1806
    %v2695 = vpop.f32.mrb[0].mxu0
    %v2696 = vadd.f32 0.0, %v2695
    %v2697 = vpop.f32.mrb[0].mxu0
    %v2698 = vpop.f32.mrb[0].mxu0
    %v2699 = vadd.f32 0.0, %v2698
    %v2700 = vpop.f32.mrb[0].mxu0
    %2701 = vmatprep.mubr.bf16.mxu0 %v1816
    %2702 = vmatmul.mubr.bf16.gmra.mrb[0].mxu0 %v1815
    %v2703 = vpop.f32.mrb[0].mxu0
    %v2704 = vadd.f32 0.0, %v2703
    %v2705 = vpop.f32.mrb[0].mxu0
    %v2706 = vpop.f32.mrb[0].mxu0
    %v2707 = vadd.f32 0.0, %v2706
    %v2708 = vpop.f32.mrb[0].mxu0
    %2709 = vmatprep.mubr.bf16.mxu0 %v1825
    %2710 = vmatmul.mubr.bf16.gmra.mrb[0].mxu0 %v1824
    %v2711 = vpop.f32.mrb[0].mxu0
    %v2712 = vadd.f32 0.0, %v2711
    %v2713 = vpop.f32.mrb[0].mxu0
    %v2714 = vpop.f32.mrb[0].mxu0
    %v2715 = vadd.f32 0.0, %v2714
    %v2716 = vpop.f32.mrb[0].mxu0
    %2717 = vmatprep.mubr.bf16.mxu0 %v1834
    %2718 = vmatmul.mubr.bf16.gmra.mrb[0].mxu0 %v1833
    %v2719 = vpop.f32.mrb[0].mxu0
    %v2720 = vadd.f32 0.0, %v2719
    %v2721 = vpop.f32.mrb[0].mxu0
    %v2722 = vpop.f32.mrb[0].mxu0
    %v2723 = vadd.f32 0.0, %v2722
    %v2724 = vpop.f32.mrb[0].mxu0
    %2725 = vmatprep.mubr.bf16.mxu0 %v1843
    %2726 = vmatmul.mubr.bf16.gmra.mrb[0].mxu0 %v1842
    %v2727 = vpop.f32.mrb[0].mxu0
    %v2728 = vadd.f32 0.0, %v2727
    %v2729 = vpop.f32.mrb[0].mxu0
    %v2730 = vpop.f32.mrb[0].mxu0
    %v2731 = vadd.f32 0.0, %v2730
    %v2732 = vpop.f32.mrb[0].mxu0
    %2733 = vmatprep.mubr.bf16.mxu0 %v1852
    %2734 = vmatmul.mubr.bf16.gmra.mrb[0].mxu0 %v1851
    %v2735 = vpop.f32.mrb[0].mxu0
    %v2736 = vadd.f32 0.0, %v2735
    %v2737 = vpop.f32.mrb[0].mxu0
    %v2738 = vpop.f32.mrb[0].mxu0
    %v2739 = vadd.f32 0.0, %v2738
    %v2740 = vpop.f32.mrb[0].mxu0
    %2741 = vmatprep.mubr.bf16.mxu0 %v1861
    %2742 = vmatmul.mubr.bf16.gmra.mrb[0].mxu0 %v1860
    %v2743 = vpop.f32.mrb[0].mxu0
    %v2744 = vadd.f32 0.0, %v2743
    %v2745 = vpop.f32.mrb[0].mxu0
    %v2746 = vpop.f32.mrb[0].mxu0
    %v2747 = vadd.f32 0.0, %v2746
    %v2748 = vpop.f32.mrb[0].mxu0
    %2749 = vmatprep.mubr.bf16.mxu0 %v1870
    %2750 = vmatmul.mubr.bf16.gmra.mrb[0].mxu0 %v1869
    %v2751 = vpop.f32.mrb[0].mxu0
    %v2752 = vadd.f32 0.0, %v2751
    %v2753 = vpop.f32.mrb[0].mxu0
    %v2754 = vpop.f32.mrb[0].mxu0
    %v2755 = vadd.f32 0.0, %v2754
    %v2756 = vpop.f32.mrb[0].mxu0
    %2757 = vmatprep.mubr.bf16.mxu0 %v1879
    %2758 = vmatmul.mubr.bf16.gmra.mrb[0].mxu0 %v1878
    %v2759 = vpop.f32.mrb[0].mxu0
    %v2760 = vadd.f32 0.0, %v2759
    %v2761 = vpop.f32.mrb[0].mxu0
    %v2762 = vpop.f32.mrb[0].mxu0
    %v2763 = vadd.f32 0.0, %v2762
    %v2764 = vpop.f32.mrb[0].mxu0
    %2765 = vmatprep.mubr.bf16.mxu0 %v1888
    %2766 = vmatmul.mubr.bf16.gmra.mrb[0].mxu0 %v1887
    %v2767 = vpop.f32.mrb[0].mxu0
    %v2768 = vadd.f32 0.0, %v2767
    %v2769 = vpop.f32.mrb[0].mxu0
    %v2770 = vpop.f32.mrb[0].mxu0
    %v2771 = vadd.f32 0.0, %v2770
    %v2772 = vpop.f32.mrb[0].mxu0
    %2773 = vmatprep.mubr.bf16.mxu0 %v1897
    %2774 = vmatmul.mubr.bf16.gmra.mrb[0].mxu0 %v1896
    %v2775 = vpop.f32.mrb[0].mxu0
    %v2776 = vadd.f32 0.0, %v2775
    %v2777 = vpop.f32.mrb[0].mxu0
    %v2778 = vpop.f32.mrb[0].mxu0
    %v2779 = vadd.f32 0.0, %v2778
    %v2780 = vpop.f32.mrb[0].mxu0
    %2781 = vmatprep.mubr.bf16.mxu0 %v1906
    %2782 = vmatmul.mubr.bf16.gmra.mrb[0].mxu0 %v1905
    %v2783 = vpop.f32.mrb[0].mxu0
    %v2784 = vadd.f32 0.0, %v2783
    %v2785 = vpop.f32.mrb[0].mxu0
    %v2786 = vpop.f32.mrb[0].mxu0
    %v2787 = vadd.f32 0.0, %v2786
    %v2788 = vpop.f32.mrb[0].mxu0
    %2789 = vmatprep.mubr.bf16.mxu0 %v1915
    %2790 = vmatmul.mubr.bf16.gmra.mrb[0].mxu0 %v1914
    %v2791 = vpop.f32.mrb[0].mxu0
    %v2792 = vadd.f32 0.0, %v2791
    %v2793 = vpop.f32.mrb[0].mxu0
    %v2794 = vpop.f32.mrb[0].mxu0
    %v2795 = vadd.f32 0.0, %v2794
    %v2796 = vpop.f32.mrb[0].mxu0
    %2797 = vmatprep.mubr.bf16.mxu0 %v1924
    %2798 = vmatmul.mubr.bf16.gmra.mrb[0].mxu0 %v1923
    %v2799 = vpop.f32.mrb[0].mxu0
    %v2800 = vadd.f32 0.0, %v2799
    %v2801 = vpop.f32.mrb[0].mxu0
    %v2802 = vpop.f32.mrb[0].mxu0
    %v2803 = vadd.f32 0.0, %v2802
    %v2804 = vpop.f32.mrb[0].mxu0
    %2805 = vmatprep.mubr.bf16.mxu0 %v1933
    %2806 = vmatmul.mubr.bf16.gmra.mrb[0].mxu0 %v1932
    %v2807 = vpop.f32.mrb[0].mxu0
    %v2808 = vadd.f32 0.0, %v2807
    %v2809 = vpop.f32.mrb[0].mxu0
    %v2810 = vpop.f32.mrb[0].mxu0
    %v2811 = vadd.f32 0.0, %v2810
    %v2812 = vpop.f32.mrb[0].mxu0
    %2813 = vmatprep.mubr.bf16.mxu0 %v1942
    %2814 = vmatmul.mubr.bf16.gmra.mrb[0].mxu0 %v1941
    %v2815 = vpop.f32.mrb[0].mxu0
    %v2816 = vadd.f32 0.0, %v2815
    %v2817 = vpop.f32.mrb[0].mxu0
    %v2818 = vpop.f32.mrb[0].mxu0
    %v2819 = vadd.f32 0.0, %v2818
    %v2820 = vpop.f32.mrb[0].mxu0
    %2821 = vmatprep.mubr.bf16.mxu0 %v1951
    %2822 = vmatmul.mubr.bf16.gmra.mrb[0].mxu0 %v1950
    %v2823 = vpop.f32.mrb[0].mxu0
    %v2824 = vadd.f32 0.0, %v2823
    %v2825 = vpop.f32.mrb[0].mxu0
    %v2826 = vpop.f32.mrb[0].mxu0
    %v2827 = vadd.f32 0.0, %v2826
    %v2828 = vpop.f32.mrb[0].mxu0
    %2829 = vmatprep.mubr.bf16.mxu0 %v1960
    %2830 = vmatmul.mubr.bf16.gmra.mrb[0].mxu0 %v1959
    %v2831 = vpop.f32.mrb[0].mxu0
    %v2832 = vadd.f32 0.0, %v2831
    %v2833 = vpop.f32.mrb[0].mxu0
    %v2834 = vpop.f32.mrb[0].mxu0
    %v2835 = vadd.f32 0.0, %v2834
    %v2836 = vpop.f32.mrb[0].mxu0
    %2837 = vmatprep.mubr.bf16.mxu0 %v1969
    %2838 = vmatmul.mubr.bf16.gmra.mrb[0].mxu0 %v1968
    %v2839 = vpop.f32.mrb[0].mxu0
    %v2840 = vadd.f32 0.0, %v2839
    %v2841 = vpop.f32.mrb[0].mxu0
    %v2842 = vpop.f32.mrb[0].mxu0
    %v2843 = vadd.f32 0.0, %v2842
    %v2844 = vpop.f32.mrb[0].mxu0
    %2845 = vmatprep.mubr.bf16.mxu0 %v1978
    %2846 = vmatmul.mubr.bf16.gmra.mrb[0].mxu0 %v1977
    %v2847 = vpop.f32.mrb[0].mxu0
    %v2848 = vadd.f32 0.0, %v2847
    %v2849 = vpop.f32.mrb[0].mxu0
    %v2850 = vpop.f32.mrb[0].mxu0
    %v2851 = vadd.f32 0.0, %v2850
    %v2852 = vpop.f32.mrb[0].mxu0
    %2853 = vmatprep.mubr.bf16.mxu0 %v1987
    %2854 = vmatmul.mubr.bf16.gmra.mrb[0].mxu0 %v1986
    %v2855 = vpop.f32.mrb[0].mxu0
    %v2856 = vadd.f32 0.0, %v2855
    %v2857 = vpop.f32.mrb[0].mxu0
    %v2858 = vpop.f32.mrb[0].mxu0
    %v2859 = vadd.f32 0.0, %v2858
    %v2860 = vpop.f32.mrb[0].mxu0
    %2861 = vmatprep.mubr.bf16.mxu0 %v1996
    %2862 = vmatmul.mubr.bf16.gmra.mrb[0].mxu0 %v1995
    %v2863 = vpop.f32.mrb[0].mxu0
    %v2864 = vadd.f32 0.0, %v2863
    %v2865 = vpop.f32.mrb[0].mxu0
    %v2866 = vpop.f32.mrb[0].mxu0
    %v2867 = vadd.f32 0.0, %v2866
    %v2868 = vpop.f32.mrb[0].mxu0
    %2869 = vmatprep.mubr.bf16.mxu0 %v2005
    %2870 = vmatmul.mubr.bf16.gmra.mrb[0].mxu0 %v2004
    %v2871 = vpop.f32.mrb[0].mxu0
    %v2872 = vadd.f32 0.0, %v2871
    %v2873 = vpop.f32.mrb[0].mxu0
    %v2874 = vpop.f32.mrb[0].mxu0
    %v2875 = vadd.f32 0.0, %v2874
    %v2876 = vpop.f32.mrb[0].mxu0
    %2877 = vdwg.mxu0
    %2878 = vmatprep.subr.bf16.mxu0 0
    %2879 = vmatpush1.bf16.msra.mxu0 %v2461
    %2880 = vmatprep.subr.bf16.mxu0 0
    %2881 = vmatpush1.bf16.msra.mxu0 %v2462
    %2882 = vmatprep.subr.bf16.mxu0 0
    %2883 = vmatpush1.bf16.msra.mxu0 %v2463
    %2884 = vmatprep.subr.bf16.mxu0 0
    %2885 = vmatpush1.bf16.msra.mxu0 %v2464
    %2886 = vmatprep.subr.bf16.mxu0 0
    %2887 = vmatpush1.bf16.msra.mxu0 %v2465
    %2888 = vmatprep.subr.bf16.mxu0 0
    %2889 = vmatpush1.bf16.msra.mxu0 %v2466
    %2890 = vmatprep.subr.bf16.mxu0 0
    %2891 = vmatpush1.bf16.msra.mxu0 %v2467
    %2892 = vmatprep.subr.bf16.mxu0 0
    %2893 = vmatpush1.bf16.msra.mxu0 %v2468
    %2894 = vmatprep.subr.bf16.mxu0 0
    %2895 = vmatpush1.bf16.msra.mxu0 %v2469
    %2896 = vmatprep.subr.bf16.mxu0 0
    %2897 = vmatpush1.bf16.msra.mxu0 %v2470
    %2898 = vmatprep.subr.bf16.mxu0 0
    %2899 = vmatpush1.bf16.msra.mxu0 %v2471
    %2900 = vmatprep.subr.bf16.mxu0 0
    %2901 = vmatpush1.bf16.msra.mxu0 %v2472
    %2902 = vmatprep.subr.bf16.mxu0 0
    %2903 = vmatpush1.bf16.msra.mxu0 %v2473
    %2904 = vmatprep.subr.bf16.mxu0 0
    %2905 = vmatpush1.bf16.msra.mxu0 %v2474
    %2906 = vmatprep.subr.bf16.mxu0 0
    %2907 = vmatpush1.bf16.msra.mxu0 %v2475
    %2908 = vmatprep.subr.bf16.mxu0 0
    %2909 = vmatpush1.bf16.msra.mxu0 %v2476
    %2910 = vmatprep.mubr.bf16.mxu0 %v1728
    %2911 = vmatmul.mubr.bf16.gmra.mrb[0].mxu0 %v1727
    %v2912 = vpop.f32.mrb[0].mxu0
    %v2913 = vadd.f32 %v2624, %v2912
    %v2914 = vpop.f32.mrb[0].mxu0
    %v2915 = vpop.f32.mrb[0].mxu0
    %v2916 = vadd.f32 %v2627, %v2915
    %v2917 = vpop.f32.mrb[0].mxu0
    %2918 = vmatprep.mubr.bf16.mxu0 %v1737
    %2919 = vmatmul.mubr.bf16.gmra.mrb[0].mxu0 %v1736
    %v2920 = vpop.f32.mrb[0].mxu0
    %v2921 = vadd.f32 %v2632, %v2920
    %v2922 = vpop.f32.mrb[0].mxu0
    %v2923 = vpop.f32.mrb[0].mxu0
    %v2924 = vadd.f32 %v2635, %v2923
    %v2925 = vpop.f32.mrb[0].mxu0
    %2926 = vmatprep.mubr.bf16.mxu0 %v1746
    %2927 = vmatmul.mubr.bf16.gmra.mrb[0].mxu0 %v1745
    %v2928 = vpop.f32.mrb[0].mxu0
    %v2929 = vadd.f32 %v2640, %v2928
    %v2930 = vpop.f32.mrb[0].mxu0
    %v2931 = vpop.f32.mrb[0].mxu0
    %v2932 = vadd.f32 %v2643, %v2931
    %v2933 = vpop.f32.mrb[0].mxu0
    %2934 = vmatprep.mubr.bf16.mxu0 %v1755
    %2935 = vmatmul.mubr.bf16.gmra.mrb[0].mxu0 %v1754
    %v2936 = vpop.f32.mrb[0].mxu0
    %v2937 = vadd.f32 %v2648, %v2936
    %v2938 = vpop.f32.mrb[0].mxu0
    %v2939 = vpop.f32.mrb[0].mxu0
    %v2940 = vadd.f32 %v2651, %v2939
    %v2941 = vpop.f32.mrb[0].mxu0
    %2942 = vmatprep.mubr.bf16.mxu0 %v1764
    %2943 = vmatmul.mubr.bf16.gmra.mrb[0].mxu0 %v1763
    %v2944 = vpop.f32.mrb[0].mxu0
    %v2945 = vadd.f32 %v2656, %v2944
    %v2946 = vpop.f32.mrb[0].mxu0
    %v2947 = vpop.f32.mrb[0].mxu0
    %v2948 = vadd.f32 %v2659, %v2947
    %v2949 = vpop.f32.mrb[0].mxu0
    %2950 = vmatprep.mubr.bf16.mxu0 %v1773
    %2951 = vmatmul.mubr.bf16.gmra.mrb[0].mxu0 %v1772
    %v2952 = vpop.f32.mrb[0].mxu0
    %v2953 = vadd.f32 %v2664, %v2952
    %v2954 = vpop.f32.mrb[0].mxu0
    %v2955 = vpop.f32.mrb[0].mxu0
    %v2956 = vadd.f32 %v2667, %v2955
    %v2957 = vpop.f32.mrb[0].mxu0
    %2958 = vmatprep.mubr.bf16.mxu0 %v1782
    %2959 = vmatmul.mubr.bf16.gmra.mrb[0].mxu0 %v1781
    %v2960 = vpop.f32.mrb[0].mxu0
    %v2961 = vadd.f32 %v2672, %v2960
    %v2962 = vpop.f32.mrb[0].mxu0
    %v2963 = vpop.f32.mrb[0].mxu0
    %v2964 = vadd.f32 %v2675, %v2963
    %v2965 = vpop.f32.mrb[0].mxu0
    %2966 = vmatprep.mubr.bf16.mxu0 %v1791
    %2967 = vmatmul.mubr.bf16.gmra.mrb[0].mxu0 %v1790
    %v2968 = vpop.f32.mrb[0].mxu0
    %v2969 = vadd.f32 %v2680, %v2968
    %v2970 = vpop.f32.mrb[0].mxu0
    %v2971 = vpop.f32.mrb[0].mxu0
    %v2972 = vadd.f32 %v2683, %v2971
    %v2973 = vpop.f32.mrb[0].mxu0
    %2974 = vmatprep.mubr.bf16.mxu0 %v1800
    %2975 = vmatmul.mubr.bf16.gmra.mrb[0].mxu0 %v1799
    %v2976 = vpop.f32.mrb[0].mxu0
    %v2977 = vadd.f32 %v2688, %v2976
    %v2978 = vpop.f32.mrb[0].mxu0
    %v2979 = vpop.f32.mrb[0].mxu0
    %v2980 = vadd.f32 %v2691, %v2979
    %v2981 = vpop.f32.mrb[0].mxu0
    %2982 = vmatprep.mubr.bf16.mxu0 %v1809
    %2983 = vmatmul.mubr.bf16.gmra.mrb[0].mxu0 %v1808
    %v2984 = vpop.f32.mrb[0].mxu0
    %v2985 = vadd.f32 %v2696, %v2984
    %v2986 = vpop.f32.mrb[0].mxu0
    %v2987 = vpop.f32.mrb[0].mxu0
    %v2988 = vadd.f32 %v2699, %v2987
    %v2989 = vpop.f32.mrb[0].mxu0
    %2990 = vmatprep.mubr.bf16.mxu0 %v1818
    %2991 = vmatmul.mubr.bf16.gmra.mrb[0].mxu0 %v1817
    %v2992 = vpop.f32.mrb[0].mxu0
    %v2993 = vadd.f32 %v2704, %v2992
    %v2994 = vpop.f32.mrb[0].mxu0
    %v2995 = vpop.f32.mrb[0].mxu0
    %v2996 = vadd.f32 %v2707, %v2995
    %v2997 = vpop.f32.mrb[0].mxu0
    %2998 = vmatprep.mubr.bf16.mxu0 %v1827
    %2999 = vmatmul.mubr.bf16.gmra.mrb[0].mxu0 %v1826
    %v3000 = vpop.f32.mrb[0].mxu0
    %v3001 = vadd.f32 %v2712, %v3000
    %v3002 = vpop.f32.mrb[0].mxu0
    %v3003 = vpop.f32.mrb[0].mxu0
    %v3004 = vadd.f32 %v2715, %v3003
    %v3005 = vpop.f32.mrb[0].mxu0
    %3006 = vmatprep.mubr.bf16.mxu0 %v1836
    %3007 = vmatmul.mubr.bf16.gmra.mrb[0].mxu0 %v1835
    %v3008 = vpop.f32.mrb[0].mxu0
    %v3009 = vadd.f32 %v2720, %v3008
    %v3010 = vpop.f32.mrb[0].mxu0
    %v3011 = vpop.f32.mrb[0].mxu0
    %v3012 = vadd.f32 %v2723, %v3011
    %v3013 = vpop.f32.mrb[0].mxu0
    %3014 = vmatprep.mubr.bf16.mxu0 %v1845
    %3015 = vmatmul.mubr.bf16.gmra.mrb[0].mxu0 %v1844
    %v3016 = vpop.f32.mrb[0].mxu0
    %v3017 = vadd.f32 %v2728, %v3016
    %v3018 = vpop.f32.mrb[0].mxu0
    %v3019 = vpop.f32.mrb[0].mxu0
    %v3020 = vadd.f32 %v2731, %v3019
    %v3021 = vpop.f32.mrb[0].mxu0
    %3022 = vmatprep.mubr.bf16.mxu0 %v1854
    %3023 = vmatmul.mubr.bf16.gmra.mrb[0].mxu0 %v1853
    %v3024 = vpop.f32.mrb[0].mxu0
    %v3025 = vadd.f32 %v2736, %v3024
    %v3026 = vpop.f32.mrb[0].mxu0
    %v3027 = vpop.f32.mrb[0].mxu0
    %v3028 = vadd.f32 %v2739, %v3027
    %v3029 = vpop.f32.mrb[0].mxu0
    %3030 = vmatprep.mubr.bf16.mxu0 %v1863
    %3031 = vmatmul.mubr.bf16.gmra.mrb[0].mxu0 %v1862
    %v3032 = vpop.f32.mrb[0].mxu0
    %v3033 = vadd.f32 %v2744, %v3032
    %v3034 = vpop.f32.mrb[0].mxu0
    %v3035 = vpop.f32.mrb[0].mxu0
    %v3036 = vadd.f32 %v2747, %v3035
    %v3037 = vpop.f32.mrb[0].mxu0
    %3038 = vmatprep.mubr.bf16.mxu0 %v1872
    %3039 = vmatmul.mubr.bf16.gmra.mrb[0].mxu0 %v1871
    %v3040 = vpop.f32.mrb[0].mxu0
    %v3041 = vadd.f32 %v2752, %v3040
    %v3042 = vpop.f32.mrb[0].mxu0
    %v3043 = vpop.f32.mrb[0].mxu0
    %v3044 = vadd.f32 %v2755, %v3043
    %v3045 = vpop.f32.mrb[0].mxu0
    %3046 = vmatprep.mubr.bf16.mxu0 %v1881
    %3047 = vmatmul.mubr.bf16.gmra.mrb[0].mxu0 %v1880
    %v3048 = vpop.f32.mrb[0].mxu0
    %v3049 = vadd.f32 %v2760, %v3048
    %v3050 = vpop.f32.mrb[0].mxu0
    %v3051 = vpop.f32.mrb[0].mxu0
    %v3052 = vadd.f32 %v2763, %v3051
    %v3053 = vpop.f32.mrb[0].mxu0
    %3054 = vmatprep.mubr.bf16.mxu0 %v1890
    %3055 = vmatmul.mubr.bf16.gmra.mrb[0].mxu0 %v1889
    %v3056 = vpop.f32.mrb[0].mxu0
    %v3057 = vadd.f32 %v2768, %v3056
    %v3058 = vpop.f32.mrb[0].mxu0
    %v3059 = vpop.f32.mrb[0].mxu0
    %v3060 = vadd.f32 %v2771, %v3059
    %v3061 = vpop.f32.mrb[0].mxu0
    %3062 = vmatprep.mubr.bf16.mxu0 %v1899
    %3063 = vmatmul.mubr.bf16.gmra.mrb[0].mxu0 %v1898
    %v3064 = vpop.f32.mrb[0].mxu0
    %v3065 = vadd.f32 %v2776, %v3064
    %v3066 = vpop.f32.mrb[0].mxu0
    %v3067 = vpop.f32.mrb[0].mxu0
    %v3068 = vadd.f32 %v2779, %v3067
    %v3069 = vpop.f32.mrb[0].mxu0
    %3070 = vmatprep.mubr.bf16.mxu0 %v1908
    %3071 = vmatmul.mubr.bf16.gmra.mrb[0].mxu0 %v1907
    %v3072 = vpop.f32.mrb[0].mxu0
    %v3073 = vadd.f32 %v2784, %v3072
    %v3074 = vpop.f32.mrb[0].mxu0
    %v3075 = vpop.f32.mrb[0].mxu0
    %v3076 = vadd.f32 %v2787, %v3075
    %v3077 = vpop.f32.mrb[0].mxu0
    %3078 = vmatprep.mubr.bf16.mxu0 %v1917
    %3079 = vmatmul.mubr.bf16.gmra.mrb[0].mxu0 %v1916
    %v3080 = vpop.f32.mrb[0].mxu0
    %v3081 = vadd.f32 %v2792, %v3080
    %v3082 = vpop.f32.mrb[0].mxu0
    %v3083 = vpop.f32.mrb[0].mxu0
    %v3084 = vadd.f32 %v2795, %v3083
    %v3085 = vpop.f32.mrb[0].mxu0
    %3086 = vmatprep.mubr.bf16.mxu0 %v1926
    %3087 = vmatmul.mubr.bf16.gmra.mrb[0].mxu0 %v1925
    %v3088 = vpop.f32.mrb[0].mxu0
    %v3089 = vadd.f32 %v2800, %v3088
    %v3090 = vpop.f32.mrb[0].mxu0
    %v3091 = vpop.f32.mrb[0].mxu0
    %v3092 = vadd.f32 %v2803, %v3091
    %v3093 = vpop.f32.mrb[0].mxu0
    %3094 = vmatprep.mubr.bf16.mxu0 %v1935
    %3095 = vmatmul.mubr.bf16.gmra.mrb[0].mxu0 %v1934
    %v3096 = vpop.f32.mrb[0].mxu0
    %v3097 = vadd.f32 %v2808, %v3096
    %v3098 = vpop.f32.mrb[0].mxu0
    %v3099 = vpop.f32.mrb[0].mxu0
    %v3100 = vadd.f32 %v2811, %v3099
    %v3101 = vpop.f32.mrb[0].mxu0
    %3102 = vmatprep.mubr.bf16.mxu0 %v1944
    %3103 = vmatmul.mubr.bf16.gmra.mrb[0].mxu0 %v1943
    %v3104 = vpop.f32.mrb[0].mxu0
    %v3105 = vadd.f32 %v2816, %v3104
    %v3106 = vpop.f32.mrb[0].mxu0
    %v3107 = vpop.f32.mrb[0].mxu0
    %v3108 = vadd.f32 %v2819, %v3107
    %v3109 = vpop.f32.mrb[0].mxu0
    %3110 = vmatprep.mubr.bf16.mxu0 %v1953
    %3111 = vmatmul.mubr.bf16.gmra.mrb[0].mxu0 %v1952
    %v3112 = vpop.f32.mrb[0].mxu0
    %v3113 = vadd.f32 %v2824, %v3112
    %v3114 = vpop.f32.mrb[0].mxu0
    %v3115 = vpop.f32.mrb[0].mxu0
    %v3116 = vadd.f32 %v2827, %v3115
    %v3117 = vpop.f32.mrb[0].mxu0
    %3118 = vmatprep.mubr.bf16.mxu0 %v1962
    %3119 = vmatmul.mubr.bf16.gmra.mrb[0].mxu0 %v1961
    %v3120 = vpop.f32.mrb[0].mxu0
    %v3121 = vadd.f32 %v2832, %v3120
    %v3122 = vpop.f32.mrb[0].mxu0
    %v3123 = vpop.f32.mrb[0].mxu0
    %v3124 = vadd.f32 %v2835, %v3123
    %v3125 = vpop.f32.mrb[0].mxu0
    %3126 = vmatprep.mubr.bf16.mxu0 %v1971
    %3127 = vmatmul.mubr.bf16.gmra.mrb[0].mxu0 %v1970
    %v3128 = vpop.f32.mrb[0].mxu0
    %v3129 = vadd.f32 %v2840, %v3128
    %v3130 = vpop.f32.mrb[0].mxu0
    %v3131 = vpop.f32.mrb[0].mxu0
    %v3132 = vadd.f32 %v2843, %v3131
    %v3133 = vpop.f32.mrb[0].mxu0
    %3134 = vmatprep.mubr.bf16.mxu0 %v1980
    %3135 = vmatmul.mubr.bf16.gmra.mrb[0].mxu0 %v1979
    %v3136 = vpop.f32.mrb[0].mxu0
    %v3137 = vadd.f32 %v2848, %v3136
    %v3138 = vpop.f32.mrb[0].mxu0
    %v3139 = vpop.f32.mrb[0].mxu0
    %v3140 = vadd.f32 %v2851, %v3139
    %v3141 = vpop.f32.mrb[0].mxu0
    %3142 = vmatprep.mubr.bf16.mxu0 %v1989
    %3143 = vmatmul.mubr.bf16.gmra.mrb[0].mxu0 %v1988
    %v3144 = vpop.f32.mrb[0].mxu0
    %v3145 = vadd.f32 %v2856, %v3144
    %v3146 = vpop.f32.mrb[0].mxu0
    %v3147 = vpop.f32.mrb[0].mxu0
    %v3148 = vadd.f32 %v2859, %v3147
    %v3149 = vpop.f32.mrb[0].mxu0
    %3150 = vmatprep.mubr.bf16.mxu0 %v1998
    %3151 = vmatmul.mubr.bf16.gmra.mrb[0].mxu0 %v1997
    %v3152 = vpop.f32.mrb[0].mxu0
    %v3153 = vadd.f32 %v2864, %v3152
    %v3154 = vpop.f32.mrb[0].mxu0
    %v3155 = vpop.f32.mrb[0].mxu0
    %v3156 = vadd.f32 %v2867, %v3155
    %v3157 = vpop.f32.mrb[0].mxu0
    %3158 = vmatprep.mubr.bf16.mxu0 %v2007
    %3159 = vmatmul.mubr.bf16.gmra.mrb[0].mxu0 %v2006
    %v3160 = vpop.f32.mrb[0].mxu0
    %v3161 = vadd.f32 %v2872, %v3160
    %v3162 = vpop.f32.mrb[0].mxu0
    %v3163 = vpop.f32.mrb[0].mxu0
    %v3164 = vadd.f32 %v2875, %v3163
    %v3165 = vpop.f32.mrb[0].mxu0
    %3166 = vdwg.mxu0
    %3167 = vmatprep.subr.bf16.mxu0 0
    %3168 = vmatpush1.bf16.msra.mxu0 %v2477
    %3169 = vmatprep.subr.bf16.mxu0 0
    %3170 = vmatpush1.bf16.msra.mxu0 %v2478
    %3171 = vmatprep.subr.bf16.mxu0 0
    %3172 = vmatpush1.bf16.msra.mxu0 %v2479
    %3173 = vmatprep.subr.bf16.mxu0 0
    %3174 = vmatpush1.bf16.msra.mxu0 %v2480
    %3175 = vmatprep.subr.bf16.mxu0 0
    %3176 = vmatpush1.bf16.msra.mxu0 %v2481
    %3177 = vmatprep.subr.bf16.mxu0 0
    %3178 = vmatpush1.bf16.msra.mxu0 %v2482
    %3179 = vmatprep.subr.bf16.mxu0 0
    %3180 = vmatpush1.bf16.msra.mxu0 %v2483
    %3181 = vmatprep.subr.bf16.mxu0 0
    %3182 = vmatpush1.bf16.msra.mxu0 %v2484
    %3183 = vmatprep.subr.bf16.mxu0 0
    %3184 = vmatpush1.bf16.msra.mxu0 %v2485
    %3185 = vmatprep.subr.bf16.mxu0 0
    %3186 = vmatpush1.bf16.msra.mxu0 %v2486
    %3187 = vmatprep.subr.bf16.mxu0 0
    %3188 = vmatpush1.bf16.msra.mxu0 %v2487
    %3189 = vmatprep.subr.bf16.mxu0 0
    %3190 = vmatpush1.bf16.msra.mxu0 %v2488
    %3191 = vmatprep.subr.bf16.mxu0 0
    %3192 = vmatpush1.bf16.msra.mxu0 %v2489
    %3193 = vmatprep.subr.bf16.mxu0 0
    %3194 = vmatpush1.bf16.msra.mxu0 %v2490
    %3195 = vmatprep.subr.bf16.mxu0 0
    %3196 = vmatpush1.bf16.msra.mxu0 %v2491
    %3197 = vmatprep.subr.bf16.mxu0 0
    %3198 = vmatpush1.bf16.msra.mxu0 %v2492
    %3199 = vmatprep.mubr.bf16.mxu0 %v1730
    %3200 = vmatmul.mubr.bf16.gmra.mrb[0].mxu0 %v1729
    %v3201 = vpop.f32.mrb[0].mxu0
    %v3202 = vadd.f32 %v2913, %v3201
    %v3203 = vpop.f32.mrb[0].mxu0
    %v3204 = vpop.f32.mrb[0].mxu0
    %v3205 = vadd.f32 %v2916, %v3204
    %v3206 = vpop.f32.mrb[0].mxu0
    %3207 = vmatprep.mubr.bf16.mxu0 %v1739
    %3208 = vmatmul.mubr.bf16.gmra.mrb[0].mxu0 %v1738
    %v3209 = vpop.f32.mrb[0].mxu0
    %v3210 = vadd.f32 %v2921, %v3209
    %v3211 = vpop.f32.mrb[0].mxu0
    %v3212 = vpop.f32.mrb[0].mxu0
    %v3213 = vadd.f32 %v2924, %v3212
    %v3214 = vpop.f32.mrb[0].mxu0
    %3215 = vmatprep.mubr.bf16.mxu0 %v1748
    %3216 = vmatmul.mubr.bf16.gmra.mrb[0].mxu0 %v1747
    %v3217 = vpop.f32.mrb[0].mxu0
    %v3218 = vadd.f32 %v2929, %v3217
    %v3219 = vpop.f32.mrb[0].mxu0
    %v3220 = vpop.f32.mrb[0].mxu0
    %v3221 = vadd.f32 %v2932, %v3220
    %v3222 = vpop.f32.mrb[0].mxu0
    %3223 = vmatprep.mubr.bf16.mxu0 %v1757
    %3224 = vmatmul.mubr.bf16.gmra.mrb[0].mxu0 %v1756
    %v3225 = vpop.f32.mrb[0].mxu0
    %v3226 = vadd.f32 %v2937, %v3225
    %v3227 = vpop.f32.mrb[0].mxu0
    %v3228 = vpop.f32.mrb[0].mxu0
    %v3229 = vadd.f32 %v2940, %v3228
    %v3230 = vpop.f32.mrb[0].mxu0
    %3231 = vmatprep.mubr.bf16.mxu0 %v1766
    %3232 = vmatmul.mubr.bf16.gmra.mrb[0].mxu0 %v1765
    %v3233 = vpop.f32.mrb[0].mxu0
    %v3234 = vadd.f32 %v2945, %v3233
    %v3235 = vpop.f32.mrb[0].mxu0
    %v3236 = vpop.f32.mrb[0].mxu0
    %v3237 = vadd.f32 %v2948, %v3236
    %v3238 = vpop.f32.mrb[0].mxu0
    %3239 = vmatprep.mubr.bf16.mxu0 %v1775
    %3240 = vmatmul.mubr.bf16.gmra.mrb[0].mxu0 %v1774
    %v3241 = vpop.f32.mrb[0].mxu0
    %v3242 = vadd.f32 %v2953, %v3241
    %v3243 = vpop.f32.mrb[0].mxu0
    %v3244 = vpop.f32.mrb[0].mxu0
    %v3245 = vadd.f32 %v2956, %v3244
    %v3246 = vpop.f32.mrb[0].mxu0
    %3247 = vmatprep.mubr.bf16.mxu0 %v1784
    %3248 = vmatmul.mubr.bf16.gmra.mrb[0].mxu0 %v1783
    %v3249 = vpop.f32.mrb[0].mxu0
    %v3250 = vadd.f32 %v2961, %v3249
    %v3251 = vpop.f32.mrb[0].mxu0
    %v3252 = vpop.f32.mrb[0].mxu0
    %v3253 = vadd.f32 %v2964, %v3252
    %v3254 = vpop.f32.mrb[0].mxu0
    %3255 = vmatprep.mubr.bf16.mxu0 %v1793
    %3256 = vmatmul.mubr.bf16.gmra.mrb[0].mxu0 %v1792
    %v3257 = vpop.f32.mrb[0].mxu0
    %v3258 = vadd.f32 %v2969, %v3257
    %v3259 = vpop.f32.mrb[0].mxu0
    %v3260 = vpop.f32.mrb[0].mxu0
    %v3261 = vadd.f32 %v2972, %v3260
    %v3262 = vpop.f32.mrb[0].mxu0
    %3263 = vmatprep.mubr.bf16.mxu0 %v1802
    %3264 = vmatmul.mubr.bf16.gmra.mrb[0].mxu0 %v1801
    %v3265 = vpop.f32.mrb[0].mxu0
    %v3266 = vadd.f32 %v2977, %v3265
    %v3267 = vpop.f32.mrb[0].mxu0
    %v3268 = vpop.f32.mrb[0].mxu0
    %v3269 = vadd.f32 %v2980, %v3268
    %v3270 = vpop.f32.mrb[0].mxu0
    %3271 = vmatprep.mubr.bf16.mxu0 %v1811
    %3272 = vmatmul.mubr.bf16.gmra.mrb[0].mxu0 %v1810
    %v3273 = vpop.f32.mrb[0].mxu0
    %v3274 = vadd.f32 %v2985, %v3273
    %v3275 = vpop.f32.mrb[0].mxu0
    %v3276 = vpop.f32.mrb[0].mxu0
    %v3277 = vadd.f32 %v2988, %v3276
    %v3278 = vpop.f32.mrb[0].mxu0
    %3279 = vmatprep.mubr.bf16.mxu0 %v1820
    %3280 = vmatmul.mubr.bf16.gmra.mrb[0].mxu0 %v1819
    %v3281 = vpop.f32.mrb[0].mxu0
    %v3282 = vadd.f32 %v2993, %v3281
    %v3283 = vpop.f32.mrb[0].mxu0
    %v3284 = vpop.f32.mrb[0].mxu0
    %v3285 = vadd.f32 %v2996, %v3284
    %v3286 = vpop.f32.mrb[0].mxu0
    %3287 = vmatprep.mubr.bf16.mxu0 %v1829
    %3288 = vmatmul.mubr.bf16.gmra.mrb[0].mxu0 %v1828
    %v3289 = vpop.f32.mrb[0].mxu0
    %v3290 = vadd.f32 %v3001, %v3289
    %v3291 = vpop.f32.mrb[0].mxu0
    %v3292 = vpop.f32.mrb[0].mxu0
    %v3293 = vadd.f32 %v3004, %v3292
    %v3294 = vpop.f32.mrb[0].mxu0
    %3295 = vmatprep.mubr.bf16.mxu0 %v1838
    %3296 = vmatmul.mubr.bf16.gmra.mrb[0].mxu0 %v1837
    %v3297 = vpop.f32.mrb[0].mxu0
    %v3298 = vadd.f32 %v3009, %v3297
    %v3299 = vpop.f32.mrb[0].mxu0
    %v3300 = vpop.f32.mrb[0].mxu0
    %v3301 = vadd.f32 %v3012, %v3300
    %v3302 = vpop.f32.mrb[0].mxu0
    %3303 = vmatprep.mubr.bf16.mxu0 %v1847
    %3304 = vmatmul.mubr.bf16.gmra.mrb[0].mxu0 %v1846
    %v3305 = vpop.f32.mrb[0].mxu0
    %v3306 = vadd.f32 %v3017, %v3305
    %v3307 = vpop.f32.mrb[0].mxu0
    %v3308 = vpop.f32.mrb[0].mxu0
    %v3309 = vadd.f32 %v3020, %v3308
    %v3310 = vpop.f32.mrb[0].mxu0
    %3311 = vmatprep.mubr.bf16.mxu0 %v1856
    %3312 = vmatmul.mubr.bf16.gmra.mrb[0].mxu0 %v1855
    %v3313 = vpop.f32.mrb[0].mxu0
    %v3314 = vadd.f32 %v3025, %v3313
    %v3315 = vpop.f32.mrb[0].mxu0
    %v3316 = vpop.f32.mrb[0].mxu0
    %v3317 = vadd.f32 %v3028, %v3316
    %v3318 = vpop.f32.mrb[0].mxu0
    %3319 = vmatprep.mubr.bf16.mxu0 %v1865
    %3320 = vmatmul.mubr.bf16.gmra.mrb[0].mxu0 %v1864
    %v3321 = vpop.f32.mrb[0].mxu0
    %v3322 = vadd.f32 %v3033, %v3321
    %v3323 = vpop.f32.mrb[0].mxu0
    %v3324 = vpop.f32.mrb[0].mxu0
    %v3325 = vadd.f32 %v3036, %v3324
    %v3326 = vpop.f32.mrb[0].mxu0
    %3327 = vmatprep.mubr.bf16.mxu0 %v1874
    %3328 = vmatmul.mubr.bf16.gmra.mrb[0].mxu0 %v1873
    %v3329 = vpop.f32.mrb[0].mxu0
    %v3330 = vadd.f32 %v3041, %v3329
    %v3331 = vpop.f32.mrb[0].mxu0
    %v3332 = vpop.f32.mrb[0].mxu0
    %v3333 = vadd.f32 %v3044, %v3332
    %v3334 = vpop.f32.mrb[0].mxu0
    %3335 = vmatprep.mubr.bf16.mxu0 %v1883
    %3336 = vmatmul.mubr.bf16.gmra.mrb[0].mxu0 %v1882
    %v3337 = vpop.f32.mrb[0].mxu0
    %v3338 = vadd.f32 %v3049, %v3337
    %v3339 = vpop.f32.mrb[0].mxu0
    %v3340 = vpop.f32.mrb[0].mxu0
    %v3341 = vadd.f32 %v3052, %v3340
    %v3342 = vpop.f32.mrb[0].mxu0
    %3343 = vmatprep.mubr.bf16.mxu0 %v1892
    %3344 = vmatmul.mubr.bf16.gmra.mrb[0].mxu0 %v1891
    %v3345 = vpop.f32.mrb[0].mxu0
    %v3346 = vadd.f32 %v3057, %v3345
    %v3347 = vpop.f32.mrb[0].mxu0
    %v3348 = vpop.f32.mrb[0].mxu0
    %v3349 = vadd.f32 %v3060, %v3348
    %v3350 = vpop.f32.mrb[0].mxu0
    %3351 = vmatprep.mubr.bf16.mxu0 %v1901
    %3352 = vmatmul.mubr.bf16.gmra.mrb[0].mxu0 %v1900
    %v3353 = vpop.f32.mrb[0].mxu0
    %v3354 = vadd.f32 %v3065, %v3353
    %v3355 = vpop.f32.mrb[0].mxu0
    %v3356 = vpop.f32.mrb[0].mxu0
    %v3357 = vadd.f32 %v3068, %v3356
    %v3358 = vpop.f32.mrb[0].mxu0
    %3359 = vmatprep.mubr.bf16.mxu0 %v1910
    %3360 = vmatmul.mubr.bf16.gmra.mrb[0].mxu0 %v1909
    %v3361 = vpop.f32.mrb[0].mxu0
    %v3362 = vadd.f32 %v3073, %v3361
    %v3363 = vpop.f32.mrb[0].mxu0
    %v3364 = vpop.f32.mrb[0].mxu0
    %v3365 = vadd.f32 %v3076, %v3364
    %v3366 = vpop.f32.mrb[0].mxu0
    %3367 = vmatprep.mubr.bf16.mxu0 %v1919
    %3368 = vmatmul.mubr.bf16.gmra.mrb[0].mxu0 %v1918
    %v3369 = vpop.f32.mrb[0].mxu0
    %v3370 = vadd.f32 %v3081, %v3369
    %v3371 = vpop.f32.mrb[0].mxu0
    %v3372 = vpop.f32.mrb[0].mxu0
    %v3373 = vadd.f32 %v3084, %v3372
    %v3374 = vpop.f32.mrb[0].mxu0
    %3375 = vmatprep.mubr.bf16.mxu0 %v1928
    %3376 = vmatmul.mubr.bf16.gmra.mrb[0].mxu0 %v1927
    %v3377 = vpop.f32.mrb[0].mxu0
    %v3378 = vadd.f32 %v3089, %v3377
    %v3379 = vpop.f32.mrb[0].mxu0
    %v3380 = vpop.f32.mrb[0].mxu0
    %v3381 = vadd.f32 %v3092, %v3380
    %v3382 = vpop.f32.mrb[0].mxu0
    %3383 = vmatprep.mubr.bf16.mxu0 %v1937
    %3384 = vmatmul.mubr.bf16.gmra.mrb[0].mxu0 %v1936
    %v3385 = vpop.f32.mrb[0].mxu0
    %v3386 = vadd.f32 %v3097, %v3385
    %v3387 = vpop.f32.mrb[0].mxu0
    %v3388 = vpop.f32.mrb[0].mxu0
    %v3389 = vadd.f32 %v3100, %v3388
    %v3390 = vpop.f32.mrb[0].mxu0
    %3391 = vmatprep.mubr.bf16.mxu0 %v1946
    %3392 = vmatmul.mubr.bf16.gmra.mrb[0].mxu0 %v1945
    %v3393 = vpop.f32.mrb[0].mxu0
    %v3394 = vadd.f32 %v3105, %v3393
    %v3395 = vpop.f32.mrb[0].mxu0
    %v3396 = vpop.f32.mrb[0].mxu0
    %v3397 = vadd.f32 %v3108, %v3396
    %v3398 = vpop.f32.mrb[0].mxu0
    %3399 = vmatprep.mubr.bf16.mxu0 %v1955
    %3400 = vmatmul.mubr.bf16.gmra.mrb[0].mxu0 %v1954
    %v3401 = vpop.f32.mrb[0].mxu0
    %v3402 = vadd.f32 %v3113, %v3401
    %v3403 = vpop.f32.mrb[0].mxu0
    %v3404 = vpop.f32.mrb[0].mxu0
    %v3405 = vadd.f32 %v3116, %v3404
    %v3406 = vpop.f32.mrb[0].mxu0
    %3407 = vmatprep.mubr.bf16.mxu0 %v1964
    %3408 = vmatmul.mubr.bf16.gmra.mrb[0].mxu0 %v1963
    %v3409 = vpop.f32.mrb[0].mxu0
    %v3410 = vadd.f32 %v3121, %v3409
    %v3411 = vpop.f32.mrb[0].mxu0
    %v3412 = vpop.f32.mrb[0].mxu0
    %v3413 = vadd.f32 %v3124, %v3412
    %v3414 = vpop.f32.mrb[0].mxu0
    %3415 = vmatprep.mubr.bf16.mxu0 %v1973
    %3416 = vmatmul.mubr.bf16.gmra.mrb[0].mxu0 %v1972
    %v3417 = vpop.f32.mrb[0].mxu0
    %v3418 = vadd.f32 %v3129, %v3417
    %v3419 = vpop.f32.mrb[0].mxu0
    %v3420 = vpop.f32.mrb[0].mxu0
    %v3421 = vadd.f32 %v3132, %v3420
    %v3422 = vpop.f32.mrb[0].mxu0
    %3423 = vmatprep.mubr.bf16.mxu0 %v1982
    %3424 = vmatmul.mubr.bf16.gmra.mrb[0].mxu0 %v1981
    %v3425 = vpop.f32.mrb[0].mxu0
    %v3426 = vadd.f32 %v3137, %v3425
    %v3427 = vpop.f32.mrb[0].mxu0
    %v3428 = vpop.f32.mrb[0].mxu0
    %v3429 = vadd.f32 %v3140, %v3428
    %v3430 = vpop.f32.mrb[0].mxu0
    %3431 = vmatprep.mubr.bf16.mxu0 %v1991
    %3432 = vmatmul.mubr.bf16.gmra.mrb[0].mxu0 %v1990
    %v3433 = vpop.f32.mrb[0].mxu0
    %v3434 = vadd.f32 %v3145, %v3433
    %v3435 = vpop.f32.mrb[0].mxu0
    %v3436 = vpop.f32.mrb[0].mxu0
    %v3437 = vadd.f32 %v3148, %v3436
    %v3438 = vpop.f32.mrb[0].mxu0
    %3439 = vmatprep.mubr.bf16.mxu0 %v2000
    %3440 = vmatmul.mubr.bf16.gmra.mrb[0].mxu0 %v1999
    %v3441 = vpop.f32.mrb[0].mxu0
    %v3442 = vadd.f32 %v3153, %v3441
    %v3443 = vpop.f32.mrb[0].mxu0
    %v3444 = vpop.f32.mrb[0].mxu0
    %v3445 = vadd.f32 %v3156, %v3444
    %v3446 = vpop.f32.mrb[0].mxu0
    %3447 = vmatprep.mubr.bf16.mxu0 %v2009
    %3448 = vmatmul.mubr.bf16.gmra.mrb[0].mxu0 %v2008
    %v3449 = vpop.f32.mrb[0].mxu0
    %v3450 = vadd.f32 %v3161, %v3449
    %v3451 = vpop.f32.mrb[0].mxu0
    %v3452 = vpop.f32.mrb[0].mxu0
    %v3453 = vadd.f32 %v3164, %v3452
    %v3454 = vpop.f32.mrb[0].mxu0
    %3455 = vdwg.mxu0
    %3456 = vmatprep.subr.bf16.mxu0 0
    %3457 = vmatpush1.bf16.msra.mxu0 %v2493
    %3458 = vmatprep.subr.bf16.mxu0 0
    %3459 = vmatpush1.bf16.msra.mxu0 %v2494
    %3460 = vmatprep.subr.bf16.mxu0 0
    %3461 = vmatpush1.bf16.msra.mxu0 %v2495
    %3462 = vmatprep.subr.bf16.mxu0 0
    %3463 = vmatpush1.bf16.msra.mxu0 %v2496
    %3464 = vmatprep.subr.bf16.mxu0 0
    %3465 = vmatpush1.bf16.msra.mxu0 %v2497
    %3466 = vmatprep.subr.bf16.mxu0 0
    %3467 = vmatpush1.bf16.msra.mxu0 %v2498
    %3468 = vmatprep.subr.bf16.mxu0 0
    %3469 = vmatpush1.bf16.msra.mxu0 %v2499
    %3470 = vmatprep.subr.bf16.mxu0 0
    %3471 = vmatpush1.bf16.msra.mxu0 %v2500
    %3472 = vmatprep.subr.bf16.mxu0 0
    %3473 = vmatpush1.bf16.msra.mxu0 %v2501
    %3474 = vmatprep.subr.bf16.mxu0 0
    %3475 = vmatpush1.bf16.msra.mxu0 %v2502
    %3476 = vmatprep.subr.bf16.mxu0 0
    %3477 = vmatpush1.bf16.msra.mxu0 %v2503
    %3478 = vmatprep.subr.bf16.mxu0 0
    %3479 = vmatpush1.bf16.msra.mxu0 %v2504
    %3480 = vmatprep.subr.bf16.mxu0 0
    %3481 = vmatpush1.bf16.msra.mxu0 %v2505
    %3482 = vmatprep.subr.bf16.mxu0 0
    %3483 = vmatpush1.bf16.msra.mxu0 %v2506
    %3484 = vmatprep.subr.bf16.mxu0 0
    %3485 = vmatpush1.bf16.msra.mxu0 %v2507
    %3486 = vmatprep.subr.bf16.mxu0 0
    %3487 = vmatpush1.bf16.msra.mxu0 %v2508
    %3488 = vmatprep.mubr.bf16.mxu0 %v1732
    %3489 = vmatmul.mubr.bf16.gmra.mrb[0].mxu0 %v1731
    %v3490 = vpop.f32.mrb[0].mxu0
    %v3491 = vadd.f32 %v3202, %v3490
    %v3492 = vpop.f32.mrb[0].mxu0
    %v3493 = vpop.f32.mrb[0].mxu0
    %v3494 = vadd.f32 %v3205, %v3493
    %v3495 = vpop.f32.mrb[0].mxu0
    %3496 = vmatprep.mubr.bf16.mxu0 %v1741
    %3497 = vmatmul.mubr.bf16.gmra.mrb[0].mxu0 %v1740
    %v3498 = vpop.f32.mrb[0].mxu0
    %v3499 = vadd.f32 %v3210, %v3498
    %v3500 = vpop.f32.mrb[0].mxu0
    %v3501 = vpop.f32.mrb[0].mxu0
    %v3502 = vadd.f32 %v3213, %v3501
    %v3503 = vpop.f32.mrb[0].mxu0
    %3504 = vmatprep.mubr.bf16.mxu0 %v1750
    %3505 = vmatmul.mubr.bf16.gmra.mrb[0].mxu0 %v1749
    %v3506 = vpop.f32.mrb[0].mxu0
    %v3507 = vadd.f32 %v3218, %v3506
    %v3508 = vpop.f32.mrb[0].mxu0
    %v3509 = vpop.f32.mrb[0].mxu0
    %v3510 = vadd.f32 %v3221, %v3509
    %v3511 = vpop.f32.mrb[0].mxu0
    %3512 = vmatprep.mubr.bf16.mxu0 %v1759
    %3513 = vmatmul.mubr.bf16.gmra.mrb[0].mxu0 %v1758
    %v3514 = vpop.f32.mrb[0].mxu0
    %v3515 = vadd.f32 %v3226, %v3514
    %v3516 = vpop.f32.mrb[0].mxu0
    %v3517 = vpop.f32.mrb[0].mxu0
    %v3518 = vadd.f32 %v3229, %v3517
    %v3519 = vpop.f32.mrb[0].mxu0
    %3520 = vmatprep.mubr.bf16.mxu0 %v1768
    %3521 = vmatmul.mubr.bf16.gmra.mrb[0].mxu0 %v1767
    %v3522 = vpop.f32.mrb[0].mxu0
    %v3523 = vadd.f32 %v3234, %v3522
    %v3524 = vpop.f32.mrb[0].mxu0
    %v3525 = vpop.f32.mrb[0].mxu0
    %v3526 = vadd.f32 %v3237, %v3525
    %v3527 = vpop.f32.mrb[0].mxu0
    %3528 = vmatprep.mubr.bf16.mxu0 %v1777
    %3529 = vmatmul.mubr.bf16.gmra.mrb[0].mxu0 %v1776
    %v3530 = vpop.f32.mrb[0].mxu0
    %v3531 = vadd.f32 %v3242, %v3530
    %v3532 = vpop.f32.mrb[0].mxu0
    %v3533 = vpop.f32.mrb[0].mxu0
    %v3534 = vadd.f32 %v3245, %v3533
    %v3535 = vpop.f32.mrb[0].mxu0
    %3536 = vmatprep.mubr.bf16.mxu0 %v1786
    %3537 = vmatmul.mubr.bf16.gmra.mrb[0].mxu0 %v1785
    %v3538 = vpop.f32.mrb[0].mxu0
    %v3539 = vadd.f32 %v3250, %v3538
    %v3540 = vpop.f32.mrb[0].mxu0
    %v3541 = vpop.f32.mrb[0].mxu0
    %v3542 = vadd.f32 %v3253, %v3541
    %v3543 = vpop.f32.mrb[0].mxu0
    %3544 = vmatprep.mubr.bf16.mxu0 %v1795
    %3545 = vmatmul.mubr.bf16.gmra.mrb[0].mxu0 %v1794
    %v3546 = vpop.f32.mrb[0].mxu0
    %v3547 = vadd.f32 %v3258, %v3546
    %v3548 = vpop.f32.mrb[0].mxu0
    %v3549 = vpop.f32.mrb[0].mxu0
    %v3550 = vadd.f32 %v3261, %v3549
    %v3551 = vpop.f32.mrb[0].mxu0
    %3552 = vmatprep.mubr.bf16.mxu0 %v1804
    %3553 = vmatmul.mubr.bf16.gmra.mrb[0].mxu0 %v1803
    %v3554 = vpop.f32.mrb[0].mxu0
    %v3555 = vadd.f32 %v3266, %v3554
    %v3556 = vpop.f32.mrb[0].mxu0
    %v3557 = vpop.f32.mrb[0].mxu0
    %v3558 = vadd.f32 %v3269, %v3557
    %v3559 = vpop.f32.mrb[0].mxu0
    %3560 = vmatprep.mubr.bf16.mxu0 %v1813
    %3561 = vmatmul.mubr.bf16.gmra.mrb[0].mxu0 %v1812
    %v3562 = vpop.f32.mrb[0].mxu0
    %v3563 = vadd.f32 %v3274, %v3562
    %v3564 = vpop.f32.mrb[0].mxu0
    %v3565 = vpop.f32.mrb[0].mxu0
    %v3566 = vadd.f32 %v3277, %v3565
    %v3567 = vpop.f32.mrb[0].mxu0
    %3568 = vmatprep.mubr.bf16.mxu0 %v1822
    %3569 = vmatmul.mubr.bf16.gmra.mrb[0].mxu0 %v1821
    %v3570 = vpop.f32.mrb[0].mxu0
    %v3571 = vadd.f32 %v3282, %v3570
    %v3572 = vpop.f32.mrb[0].mxu0
    %v3573 = vpop.f32.mrb[0].mxu0
    %v3574 = vadd.f32 %v3285, %v3573
    %v3575 = vpop.f32.mrb[0].mxu0
    %3576 = vmatprep.mubr.bf16.mxu0 %v1831
    %3577 = vmatmul.mubr.bf16.gmra.mrb[0].mxu0 %v1830
    %v3578 = vpop.f32.mrb[0].mxu0
    %v3579 = vadd.f32 %v3290, %v3578
    %v3580 = vpop.f32.mrb[0].mxu0
    %v3581 = vpop.f32.mrb[0].mxu0
    %v3582 = vadd.f32 %v3293, %v3581
    %v3583 = vpop.f32.mrb[0].mxu0
    %3584 = vmatprep.mubr.bf16.mxu0 %v1840
    %3585 = vmatmul.mubr.bf16.gmra.mrb[0].mxu0 %v1839
    %v3586 = vpop.f32.mrb[0].mxu0
    %v3587 = vadd.f32 %v3298, %v3586
    %v3588 = vpop.f32.mrb[0].mxu0
    %v3589 = vpop.f32.mrb[0].mxu0
    %v3590 = vadd.f32 %v3301, %v3589
    %v3591 = vpop.f32.mrb[0].mxu0
    %3592 = vmatprep.mubr.bf16.mxu0 %v1849
    %3593 = vmatmul.mubr.bf16.gmra.mrb[0].mxu0 %v1848
    %v3594 = vpop.f32.mrb[0].mxu0
    %v3595 = vadd.f32 %v3306, %v3594
    %v3596 = vpop.f32.mrb[0].mxu0
    %v3597 = vpop.f32.mrb[0].mxu0
    %v3598 = vadd.f32 %v3309, %v3597
    %v3599 = vpop.f32.mrb[0].mxu0
    %3600 = vmatprep.mubr.bf16.mxu0 %v1858
    %3601 = vmatmul.mubr.bf16.gmra.mrb[0].mxu0 %v1857
    %v3602 = vpop.f32.mrb[0].mxu0
    %v3603 = vadd.f32 %v3314, %v3602
    %v3604 = vpop.f32.mrb[0].mxu0
    %v3605 = vpop.f32.mrb[0].mxu0
    %v3606 = vadd.f32 %v3317, %v3605
    %v3607 = vpop.f32.mrb[0].mxu0
    %3608 = vmatprep.mubr.bf16.mxu0 %v1867
    %3609 = vmatmul.mubr.bf16.gmra.mrb[0].mxu0 %v1866
    %v3610 = vpop.f32.mrb[0].mxu0
    %v3611 = vadd.f32 %v3322, %v3610
    %v3612 = vpop.f32.mrb[0].mxu0
    %v3613 = vpop.f32.mrb[0].mxu0
    %v3614 = vadd.f32 %v3325, %v3613
    %v3615 = vpop.f32.mrb[0].mxu0
    %3616 = vmatprep.mubr.bf16.mxu0 %v1876
    %3617 = vmatmul.mubr.bf16.gmra.mrb[0].mxu0 %v1875
    %v3618 = vpop.f32.mrb[0].mxu0
    %v3619 = vadd.f32 %v3330, %v3618
    %v3620 = vpop.f32.mrb[0].mxu0
    %v3621 = vpop.f32.mrb[0].mxu0
    %v3622 = vadd.f32 %v3333, %v3621
    %v3623 = vpop.f32.mrb[0].mxu0
    %3624 = vmatprep.mubr.bf16.mxu0 %v1885
    %3625 = vmatmul.mubr.bf16.gmra.mrb[0].mxu0 %v1884
    %v3626 = vpop.f32.mrb[0].mxu0
    %v3627 = vadd.f32 %v3338, %v3626
    %v3628 = vpop.f32.mrb[0].mxu0
    %v3629 = vpop.f32.mrb[0].mxu0
    %v3630 = vadd.f32 %v3341, %v3629
    %v3631 = vpop.f32.mrb[0].mxu0
    %3632 = vmatprep.mubr.bf16.mxu0 %v1894
    %3633 = vmatmul.mubr.bf16.gmra.mrb[0].mxu0 %v1893
    %v3634 = vpop.f32.mrb[0].mxu0
    %v3635 = vadd.f32 %v3346, %v3634
    %v3636 = vpop.f32.mrb[0].mxu0
    %v3637 = vpop.f32.mrb[0].mxu0
    %v3638 = vadd.f32 %v3349, %v3637
    %v3639 = vpop.f32.mrb[0].mxu0
    %3640 = vmatprep.mubr.bf16.mxu0 %v1903
    %3641 = vmatmul.mubr.bf16.gmra.mrb[0].mxu0 %v1902
    %v3642 = vpop.f32.mrb[0].mxu0
    %v3643 = vadd.f32 %v3354, %v3642
    %v3644 = vpop.f32.mrb[0].mxu0
    %v3645 = vpop.f32.mrb[0].mxu0
    %v3646 = vadd.f32 %v3357, %v3645
    %v3647 = vpop.f32.mrb[0].mxu0
    %3648 = vmatprep.mubr.bf16.mxu0 %v1912
    %3649 = vmatmul.mubr.bf16.gmra.mrb[0].mxu0 %v1911
    %v3650 = vpop.f32.mrb[0].mxu0
    %v3651 = vadd.f32 %v3362, %v3650
    %v3652 = vpop.f32.mrb[0].mxu0
    %v3653 = vpop.f32.mrb[0].mxu0
    %v3654 = vadd.f32 %v3365, %v3653
    %v3655 = vpop.f32.mrb[0].mxu0
    %3656 = vmatprep.mubr.bf16.mxu0 %v1921
    %3657 = vmatmul.mubr.bf16.gmra.mrb[0].mxu0 %v1920
    %v3658 = vpop.f32.mrb[0].mxu0
    %v3659 = vadd.f32 %v3370, %v3658
    %v3660 = vpop.f32.mrb[0].mxu0
    %v3661 = vpop.f32.mrb[0].mxu0
    %v3662 = vadd.f32 %v3373, %v3661
    %v3663 = vpop.f32.mrb[0].mxu0
    %3664 = vmatprep.mubr.bf16.mxu0 %v1930
    %3665 = vmatmul.mubr.bf16.gmra.mrb[0].mxu0 %v1929
    %v3666 = vpop.f32.mrb[0].mxu0
    %v3667 = vadd.f32 %v3378, %v3666
    %v3668 = vpop.f32.mrb[0].mxu0
    %v3669 = vpop.f32.mrb[0].mxu0
    %v3670 = vadd.f32 %v3381, %v3669
    %v3671 = vpop.f32.mrb[0].mxu0
    %3672 = vmatprep.mubr.bf16.mxu0 %v1939
    %3673 = vmatmul.mubr.bf16.gmra.mrb[0].mxu0 %v1938
    %v3674 = vpop.f32.mrb[0].mxu0
    %v3675 = vadd.f32 %v3386, %v3674
    %v3676 = vpop.f32.mrb[0].mxu0
    %v3677 = vpop.f32.mrb[0].mxu0
    %v3678 = vadd.f32 %v3389, %v3677
    %v3679 = vpop.f32.mrb[0].mxu0
    %3680 = vmatprep.mubr.bf16.mxu0 %v1948
    %3681 = vmatmul.mubr.bf16.gmra.mrb[0].mxu0 %v1947
    %v3682 = vpop.f32.mrb[0].mxu0
    %v3683 = vadd.f32 %v3394, %v3682
    %v3684 = vpop.f32.mrb[0].mxu0
    %v3685 = vpop.f32.mrb[0].mxu0
    %v3686 = vadd.f32 %v3397, %v3685
    %v3687 = vpop.f32.mrb[0].mxu0
    %3688 = vmatprep.mubr.bf16.mxu0 %v1957
    %3689 = vmatmul.mubr.bf16.gmra.mrb[0].mxu0 %v1956
    %v3690 = vpop.f32.mrb[0].mxu0
    %v3691 = vadd.f32 %v3402, %v3690
    %v3692 = vpop.f32.mrb[0].mxu0
    %v3693 = vpop.f32.mrb[0].mxu0
    %v3694 = vadd.f32 %v3405, %v3693
    %v3695 = vpop.f32.mrb[0].mxu0
    %3696 = vmatprep.mubr.bf16.mxu0 %v1966
    %3697 = vmatmul.mubr.bf16.gmra.mrb[0].mxu0 %v1965
    %v3698 = vpop.f32.mrb[0].mxu0
    %v3699 = vadd.f32 %v3410, %v3698
    %v3700 = vpop.f32.mrb[0].mxu0
    %v3701 = vpop.f32.mrb[0].mxu0
    %v3702 = vadd.f32 %v3413, %v3701
    %v3703 = vpop.f32.mrb[0].mxu0
    %3704 = vmatprep.mubr.bf16.mxu0 %v1975
    %3705 = vmatmul.mubr.bf16.gmra.mrb[0].mxu0 %v1974
    %v3706 = vpop.f32.mrb[0].mxu0
    %v3707 = vadd.f32 %v3418, %v3706
    %v3708 = vpop.f32.mrb[0].mxu0
    %v3709 = vpop.f32.mrb[0].mxu0
    %v3710 = vadd.f32 %v3421, %v3709
    %v3711 = vpop.f32.mrb[0].mxu0
    %3712 = vmatprep.mubr.bf16.mxu0 %v1984
    %3713 = vmatmul.mubr.bf16.gmra.mrb[0].mxu0 %v1983
    %v3714 = vpop.f32.mrb[0].mxu0
    %v3715 = vadd.f32 %v3426, %v3714
    %v3716 = vpop.f32.mrb[0].mxu0
    %v3717 = vpop.f32.mrb[0].mxu0
    %v3718 = vadd.f32 %v3429, %v3717
    %v3719 = vpop.f32.mrb[0].mxu0
    %3720 = vmatprep.mubr.bf16.mxu0 %v1993
    %3721 = vmatmul.mubr.bf16.gmra.mrb[0].mxu0 %v1992
    %v3722 = vpop.f32.mrb[0].mxu0
    %v3723 = vadd.f32 %v3434, %v3722
    %v3724 = vpop.f32.mrb[0].mxu0
    %v3725 = vpop.f32.mrb[0].mxu0
    %v3726 = vadd.f32 %v3437, %v3725
    %v3727 = vpop.f32.mrb[0].mxu0
    %3728 = vmatprep.mubr.bf16.mxu0 %v2002
    %3729 = vmatmul.mubr.bf16.gmra.mrb[0].mxu0 %v2001
    %v3730 = vpop.f32.mrb[0].mxu0
    %v3731 = vadd.f32 %v3442, %v3730
    %v3732 = vpop.f32.mrb[0].mxu0
    %v3733 = vpop.f32.mrb[0].mxu0
    %v3734 = vadd.f32 %v3445, %v3733
    %v3735 = vpop.f32.mrb[0].mxu0
    %3736 = vmatprep.mubr.bf16.mxu0 %v2011
    %3737 = vmatmul.mubr.bf16.gmra.mrb[0].mxu0 %v2010
    %v3738 = vpop.f32.mrb[0].mxu0
    %v3739 = vadd.f32 %v3450, %v3738
    %v3740 = vpop.f32.mrb[0].mxu0
    %v3741 = vpop.f32.mrb[0].mxu0
    %v3742 = vadd.f32 %v3453, %v3741
    %v3743 = vpop.f32.mrb[0].mxu0
    %3744 = vdwg.mxu0
    %3745 = vmatprep.subr.bf16.mxu0 0
    %3746 = vmatpush1.bf16.msra.mxu0 %v2509
    %3747 = vmatprep.subr.bf16.mxu0 0
    %3748 = vmatpush1.bf16.msra.mxu0 %v2510
    %3749 = vmatprep.subr.bf16.mxu0 0
    %3750 = vmatpush1.bf16.msra.mxu0 %v2511
    %3751 = vmatprep.subr.bf16.mxu0 0
    %3752 = vmatpush1.bf16.msra.mxu0 %v2512
    %3753 = vmatprep.subr.bf16.mxu0 0
    %3754 = vmatpush1.bf16.msra.mxu0 %v2513
    %3755 = vmatprep.subr.bf16.mxu0 0
    %3756 = vmatpush1.bf16.msra.mxu0 %v2514
    %3757 = vmatprep.subr.bf16.mxu0 0
    %3758 = vmatpush1.bf16.msra.mxu0 %v2515
    %3759 = vmatprep.subr.bf16.mxu0 0
    %3760 = vmatpush1.bf16.msra.mxu0 %v2516
    %3761 = vmatprep.subr.bf16.mxu0 0
    %3762 = vmatpush1.bf16.msra.mxu0 0
    %3763 = vmatprep.subr.bf16.mxu0 0
    %3764 = vmatpush1.bf16.msra.mxu0 0
    %3765 = vmatprep.subr.bf16.mxu0 0
    %3766 = vmatpush1.bf16.msra.mxu0 0
    %3767 = vmatprep.subr.bf16.mxu0 0
    %3768 = vmatpush1.bf16.msra.mxu0 0
    %3769 = vmatprep.subr.bf16.mxu0 0
    %3770 = vmatpush1.bf16.msra.mxu0 0
    %3771 = vmatprep.subr.bf16.mxu0 0
    %3772 = vmatpush1.bf16.msra.mxu0 0
    %3773 = vmatprep.subr.bf16.mxu0 0
    %3774 = vmatpush1.bf16.msra.mxu0 0
    %3775 = vmatprep.subr.bf16.mxu0 0
    %3776 = vmatpush1.bf16.msra.mxu0 0
    %3777 = vmatprep.mubr.bf16.mxu0 0
    %3778 = vmatmul.mubr.bf16.gmra.mrb[0].mxu0 %v1733
    %v3779 = vpop.f32.mrb[0].mxu0
    %v3780 = vadd.f32 %v3491, %v3779
    %v3781 = vpop.f32.mrb[0].mxu0
    %v3782 = vpop.f32.mrb[0].mxu0
    %v3783 = vadd.f32 %v3494, %v3782
    %v3784 = vpop.f32.mrb[0].mxu0
    %3785 = vmatprep.mubr.bf16.mxu0 0
    %3786 = vmatmul.mubr.bf16.gmra.mrb[0].mxu0 %v1742
    %v3787 = vpop.f32.mrb[0].mxu0
    %v3788 = vadd.f32 %v3499, %v3787
    %v3789 = vpop.f32.mrb[0].mxu0
    %v3790 = vpop.f32.mrb[0].mxu0
    %v3791 = vadd.f32 %v3502, %v3790
    %v3792 = vpop.f32.mrb[0].mxu0
    %3793 = vmatprep.mubr.bf16.mxu0 0
    %3794 = vmatmul.mubr.bf16.gmra.mrb[0].mxu0 %v1751
    %v3795 = vpop.f32.mrb[0].mxu0
    %v3796 = vadd.f32 %v3507, %v3795
    %v3797 = vpop.f32.mrb[0].mxu0
    %v3798 = vpop.f32.mrb[0].mxu0
    %v3799 = vadd.f32 %v3510, %v3798
    %v3800 = vpop.f32.mrb[0].mxu0
    %3801 = vmatprep.mubr.bf16.mxu0 0
    %3802 = vmatmul.mubr.bf16.gmra.mrb[0].mxu0 %v1760
    %v3803 = vpop.f32.mrb[0].mxu0
    %v3804 = vadd.f32 %v3515, %v3803
    %v3805 = vpop.f32.mrb[0].mxu0
    %v3806 = vpop.f32.mrb[0].mxu0
    %v3807 = vadd.f32 %v3518, %v3806
    %v3808 = vpop.f32.mrb[0].mxu0
    %3809 = vmatprep.mubr.bf16.mxu0 0
    %3810 = vmatmul.mubr.bf16.gmra.mrb[0].mxu0 %v1769
    %v3811 = vpop.f32.mrb[0].mxu0
    %v3812 = vadd.f32 %v3523, %v3811
    %v3813 = vpop.f32.mrb[0].mxu0
    %v3814 = vpop.f32.mrb[0].mxu0
    %v3815 = vadd.f32 %v3526, %v3814
    %v3816 = vpop.f32.mrb[0].mxu0
    %3817 = vmatprep.mubr.bf16.mxu0 0
    %3818 = vmatmul.mubr.bf16.gmra.mrb[0].mxu0 %v1778
    %v3819 = vpop.f32.mrb[0].mxu0
    %v3820 = vadd.f32 %v3531, %v3819
    %v3821 = vpop.f32.mrb[0].mxu0
    %v3822 = vpop.f32.mrb[0].mxu0
    %v3823 = vadd.f32 %v3534, %v3822
    %v3824 = vpop.f32.mrb[0].mxu0
    %3825 = vmatprep.mubr.bf16.mxu0 0
    %3826 = vmatmul.mubr.bf16.gmra.mrb[0].mxu0 %v1787
    %v3827 = vpop.f32.mrb[0].mxu0
    %v3828 = vadd.f32 %v3539, %v3827
    %v3829 = vpop.f32.mrb[0].mxu0
    %v3830 = vpop.f32.mrb[0].mxu0
    %v3831 = vadd.f32 %v3542, %v3830
    %v3832 = vpop.f32.mrb[0].mxu0
    %3833 = vmatprep.mubr.bf16.mxu0 0
    %3834 = vmatmul.mubr.bf16.gmra.mrb[0].mxu0 %v1796
    %v3835 = vpop.f32.mrb[0].mxu0
    %v3836 = vadd.f32 %v3547, %v3835
    %v3837 = vpop.f32.mrb[0].mxu0
    %v3838 = vpop.f32.mrb[0].mxu0
    %v3839 = vadd.f32 %v3550, %v3838
    %v3840 = vpop.f32.mrb[0].mxu0
    %3841 = vmatprep.mubr.bf16.mxu0 0
    %3842 = vmatmul.mubr.bf16.gmra.mrb[0].mxu0 %v1805
    %v3843 = vpop.f32.mrb[0].mxu0
    %v3844 = vadd.f32 %v3555, %v3843
    %v3845 = vpop.f32.mrb[0].mxu0
    %v3846 = vpop.f32.mrb[0].mxu0
    %v3847 = vadd.f32 %v3558, %v3846
    %v3848 = vpop.f32.mrb[0].mxu0
    %3849 = vmatprep.mubr.bf16.mxu0 0
    %3850 = vmatmul.mubr.bf16.gmra.mrb[0].mxu0 %v1814
    %v3851 = vpop.f32.mrb[0].mxu0
    %v3852 = vadd.f32 %v3563, %v3851
    %v3853 = vpop.f32.mrb[0].mxu0
    %v3854 = vpop.f32.mrb[0].mxu0
    %v3855 = vadd.f32 %v3566, %v3854
    %v3856 = vpop.f32.mrb[0].mxu0
    %3857 = vmatprep.mubr.bf16.mxu0 0
    %3858 = vmatmul.mubr.bf16.gmra.mrb[0].mxu0 %v1823
    %v3859 = vpop.f32.mrb[0].mxu0
    %v3860 = vadd.f32 %v3571, %v3859
    %v3861 = vpop.f32.mrb[0].mxu0
    %v3862 = vpop.f32.mrb[0].mxu0
    %v3863 = vadd.f32 %v3574, %v3862
    %v3864 = vpop.f32.mrb[0].mxu0
    %3865 = vmatprep.mubr.bf16.mxu0 0
    %3866 = vmatmul.mubr.bf16.gmra.mrb[0].mxu0 %v1832
    %v3867 = vpop.f32.mrb[0].mxu0
    %v3868 = vadd.f32 %v3579, %v3867
    %v3869 = vpop.f32.mrb[0].mxu0
    %v3870 = vpop.f32.mrb[0].mxu0
    %v3871 = vadd.f32 %v3582, %v3870
    %v3872 = vpop.f32.mrb[0].mxu0
    %3873 = vmatprep.mubr.bf16.mxu0 0
    %3874 = vmatmul.mubr.bf16.gmra.mrb[0].mxu0 %v1841
    %v3875 = vpop.f32.mrb[0].mxu0
    %v3876 = vadd.f32 %v3587, %v3875
    %v3877 = vpop.f32.mrb[0].mxu0
    %v3878 = vpop.f32.mrb[0].mxu0
    %v3879 = vadd.f32 %v3590, %v3878
    %v3880 = vpop.f32.mrb[0].mxu0
    %3881 = vmatprep.mubr.bf16.mxu0 0
    %3882 = vmatmul.mubr.bf16.gmra.mrb[0].mxu0 %v1850
    %v3883 = vpop.f32.mrb[0].mxu0
    %v3884 = vadd.f32 %v3595, %v3883
    %v3885 = vpop.f32.mrb[0].mxu0
    %v3886 = vpop.f32.mrb[0].mxu0
    %v3887 = vadd.f32 %v3598, %v3886
    %v3888 = vpop.f32.mrb[0].mxu0
    %3889 = vmatprep.mubr.bf16.mxu0 0
    %3890 = vmatmul.mubr.bf16.gmra.mrb[0].mxu0 %v1859
    %v3891 = vpop.f32.mrb[0].mxu0
    %v3892 = vadd.f32 %v3603, %v3891
    %v3893 = vpop.f32.mrb[0].mxu0
    %v3894 = vpop.f32.mrb[0].mxu0
    %v3895 = vadd.f32 %v3606, %v3894
    %v3896 = vpop.f32.mrb[0].mxu0
    %3897 = vmatprep.mubr.bf16.mxu0 0
    %3898 = vmatmul.mubr.bf16.gmra.mrb[0].mxu0 %v1868
    %v3899 = vpop.f32.mrb[0].mxu0
    %v3900 = vadd.f32 %v3611, %v3899
    %v3901 = vpop.f32.mrb[0].mxu0
    %v3902 = vpop.f32.mrb[0].mxu0
    %v3903 = vadd.f32 %v3614, %v3902
    %v3904 = vpop.f32.mrb[0].mxu0
    %3905 = vmatprep.mubr.bf16.mxu0 0
    %3906 = vmatmul.mubr.bf16.gmra.mrb[0].mxu0 %v1877
    %v3907 = vpop.f32.mrb[0].mxu0
    %v3908 = vadd.f32 %v3619, %v3907
    %v3909 = vpop.f32.mrb[0].mxu0
    %v3910 = vpop.f32.mrb[0].mxu0
    %v3911 = vadd.f32 %v3622, %v3910
    %v3912 = vpop.f32.mrb[0].mxu0
    %3913 = vmatprep.mubr.bf16.mxu0 0
    %3914 = vmatmul.mubr.bf16.gmra.mrb[0].mxu0 %v1886
    %v3915 = vpop.f32.mrb[0].mxu0
    %v3916 = vadd.f32 %v3627, %v3915
    %v3917 = vpop.f32.mrb[0].mxu0
    %v3918 = vpop.f32.mrb[0].mxu0
    %v3919 = vadd.f32 %v3630, %v3918
    %v3920 = vpop.f32.mrb[0].mxu0
    %3921 = vmatprep.mubr.bf16.mxu0 0
    %3922 = vmatmul.mubr.bf16.gmra.mrb[0].mxu0 %v1895
    %v3923 = vpop.f32.mrb[0].mxu0
    %v3924 = vadd.f32 %v3635, %v3923
    %v3925 = vpop.f32.mrb[0].mxu0
    %v3926 = vpop.f32.mrb[0].mxu0
    %v3927 = vadd.f32 %v3638, %v3926
    %v3928 = vpop.f32.mrb[0].mxu0
    %3929 = vmatprep.mubr.bf16.mxu0 0
    %3930 = vmatmul.mubr.bf16.gmra.mrb[0].mxu0 %v1904
    %v3931 = vpop.f32.mrb[0].mxu0
    %v3932 = vadd.f32 %v3643, %v3931
    %v3933 = vpop.f32.mrb[0].mxu0
    %v3934 = vpop.f32.mrb[0].mxu0
    %v3935 = vadd.f32 %v3646, %v3934
    %v3936 = vpop.f32.mrb[0].mxu0
    %3937 = vmatprep.mubr.bf16.mxu0 0
    %3938 = vmatmul.mubr.bf16.gmra.mrb[0].mxu0 %v1913
    %v3939 = vpop.f32.mrb[0].mxu0
    %v3940 = vadd.f32 %v3651, %v3939
    %v3941 = vpop.f32.mrb[0].mxu0
    %v3942 = vpop.f32.mrb[0].mxu0
    %v3943 = vadd.f32 %v3654, %v3942
    %v3944 = vpop.f32.mrb[0].mxu0
    %3945 = vmatprep.mubr.bf16.mxu0 0
    %3946 = vmatmul.mubr.bf16.gmra.mrb[0].mxu0 %v1922
    %v3947 = vpop.f32.mrb[0].mxu0
    %v3948 = vadd.f32 %v3659, %v3947
    %v3949 = vpop.f32.mrb[0].mxu0
    %v3950 = vpop.f32.mrb[0].mxu0
    %v3951 = vadd.f32 %v3662, %v3950
    %v3952 = vpop.f32.mrb[0].mxu0
    %3953 = vmatprep.mubr.bf16.mxu0 0
    %3954 = vmatmul.mubr.bf16.gmra.mrb[0].mxu0 %v1931
    %v3955 = vpop.f32.mrb[0].mxu0
    %v3956 = vadd.f32 %v3667, %v3955
    %v3957 = vpop.f32.mrb[0].mxu0
    %v3958 = vpop.f32.mrb[0].mxu0
    %v3959 = vadd.f32 %v3670, %v3958
    %v3960 = vpop.f32.mrb[0].mxu0
    %3961 = vmatprep.mubr.bf16.mxu0 0
    %3962 = vmatmul.mubr.bf16.gmra.mrb[0].mxu0 %v1940
    %v3963 = vpop.f32.mrb[0].mxu0
    %v3964 = vadd.f32 %v3675, %v3963
    %v3965 = vpop.f32.mrb[0].mxu0
    %v3966 = vpop.f32.mrb[0].mxu0
    %v3967 = vadd.f32 %v3678, %v3966
    %v3968 = vpop.f32.mrb[0].mxu0
    %3969 = vmatprep.mubr.bf16.mxu0 0
    %3970 = vmatmul.mubr.bf16.gmra.mrb[0].mxu0 %v1949
    %v3971 = vpop.f32.mrb[0].mxu0
    %v3972 = vadd.f32 %v3683, %v3971
    %v3973 = vpop.f32.mrb[0].mxu0
    %v3974 = vpop.f32.mrb[0].mxu0
    %v3975 = vadd.f32 %v3686, %v3974
    %v3976 = vpop.f32.mrb[0].mxu0
    %3977 = vmatprep.mubr.bf16.mxu0 0
    %3978 = vmatmul.mubr.bf16.gmra.mrb[0].mxu0 %v1958
    %v3979 = vpop.f32.mrb[0].mxu0
    %v3980 = vadd.f32 %v3691, %v3979
    %v3981 = vpop.f32.mrb[0].mxu0
    %v3982 = vpop.f32.mrb[0].mxu0
    %v3983 = vadd.f32 %v3694, %v3982
    %v3984 = vpop.f32.mrb[0].mxu0
    %3985 = vmatprep.mubr.bf16.mxu0 0
    %3986 = vmatmul.mubr.bf16.gmra.mrb[0].mxu0 %v1967
    %v3987 = vpop.f32.mrb[0].mxu0
    %v3988 = vadd.f32 %v3699, %v3987
    %v3989 = vpop.f32.mrb[0].mxu0
    %v3990 = vpop.f32.mrb[0].mxu0
    %v3991 = vadd.f32 %v3702, %v3990
    %v3992 = vpop.f32.mrb[0].mxu0
    %3993 = vmatprep.mubr.bf16.mxu0 0
    %3994 = vmatmul.mubr.bf16.gmra.mrb[0].mxu0 %v1976
    %v3995 = vpop.f32.mrb[0].mxu0
    %v3996 = vadd.f32 %v3707, %v3995
    %v3997 = vpop.f32.mrb[0].mxu0
    %v3998 = vpop.f32.mrb[0].mxu0
    %v3999 = vadd.f32 %v3710, %v3998
    %v4000 = vpop.f32.mrb[0].mxu0
    %4001 = vmatprep.mubr.bf16.mxu0 0
    %4002 = vmatmul.mubr.bf16.gmra.mrb[0].mxu0 %v1985
    %v4003 = vpop.f32.mrb[0].mxu0
    %v4004 = vadd.f32 %v3715, %v4003
    %v4005 = vpop.f32.mrb[0].mxu0
    %v4006 = vpop.f32.mrb[0].mxu0
    %v4007 = vadd.f32 %v3718, %v4006
    %v4008 = vpop.f32.mrb[0].mxu0
    %4009 = vmatprep.mubr.bf16.mxu0 0
    %4010 = vmatmul.mubr.bf16.gmra.mrb[0].mxu0 %v1994
    %v4011 = vpop.f32.mrb[0].mxu0
    %v4012 = vadd.f32 %v3723, %v4011
    %v4013 = vpop.f32.mrb[0].mxu0
    %v4014 = vpop.f32.mrb[0].mxu0
    %v4015 = vadd.f32 %v3726, %v4014
    %v4016 = vpop.f32.mrb[0].mxu0
    %4017 = vmatprep.mubr.bf16.mxu0 0
    %4018 = vmatmul.mubr.bf16.gmra.mrb[0].mxu0 %v2003
    %v4019 = vpop.f32.mrb[0].mxu0
    %v4020 = vadd.f32 %v3731, %v4019
    %v4021 = vpop.f32.mrb[0].mxu0
    %v4022 = vpop.f32.mrb[0].mxu0
    %v4023 = vadd.f32 %v3734, %v4022
    %v4024 = vpop.f32.mrb[0].mxu0
    %4025 = vmatprep.mubr.bf16.mxu0 0
    %4026 = vmatmul.mubr.bf16.gmra.mrb[0].mxu0 %v2012
    %v4027 = vpop.f32.mrb[0].mxu0
    %v4028 = vadd.f32 %v3739, %v4027
    %v4029 = vpop.f32.mrb[0].mxu0
    %v4030 = vpop.f32.mrb[0].mxu0
    %v4031 = vadd.f32 %v3742, %v4030
    %v4032 = vpop.f32.mrb[0].mxu0
    %4033 = vdwg.mxu0
    %v4034 = vld [vmem:[%s6] sm:$0x1]
    %v4035 = vld [vmem:[%s7] sm:$0x1]
    %v4036 = vadd.f32 %v3780, %v3783
    %v4037 = vadd.f32 %v4036, %v3788
    %v4038 = vadd.f32 %v4037, %v3791
    %v4039 = vadd.f32 %v4038, %v3796
    %v4040 = vadd.f32 %v4039, %v3799
    %v4041 = vadd.f32 %v4040, %v3804
    %v4042 = vadd.f32 %v4041, %v3807
    %v4043 = vadd.f32 %v4042, %v3812
    %v4044 = vadd.f32 %v4043, %v3815
    %v4045 = vadd.f32 %v4044, %v3820
    %v4046 = vadd.f32 %v4045, %v3823
    %v4047 = vadd.f32 %v4046, %v3828
    %v4048 = vadd.f32 %v4047, %v3831
    %v4049 = vadd.f32 %v4048, %v3836
    %v4050 = vadd.f32 %v4049, %v3839
    %v4051 = vadd.f32 %v4050, %v3844
    %v4052 = vadd.f32 %v4051, %v3847
    %v4053 = vadd.f32 %v4052, %v3852
    %v4054 = vadd.f32 %v4053, %v3855
    %v4055 = vadd.f32 %v4054, %v3860
    %v4056 = vadd.f32 %v4055, %v3863
    %v4057 = vadd.f32 %v4056, %v3868
    %v4058 = vadd.f32 %v4057, %v3871
    %v4059 = vadd.f32 %v4058, %v3876
    %v4060 = vadd.f32 %v4059, %v3879
    %v4061 = vadd.f32 %v4060, %v3884
    %v4062 = vadd.f32 %v4061, %v3887
    %v4063 = vadd.f32 %v4062, %v3892
    %v4064 = vadd.f32 %v4063, %v3895
    %v4065 = vadd.f32 %v4064, %v3900
    %v4066 = vadd.f32 %v4065, %v3903
    %v4067 = vadd.f32 %v4066, %v3908
    %v4068 = vadd.f32 %v4067, %v3911
    %v4069 = vadd.f32 %v4068, %v3916
    %v4070 = vadd.f32 %v4069, %v3919
    %v4071 = vadd.f32 %v4070, %v3924
    %v4072 = vadd.f32 %v4071, %v3927
    %v4073 = vadd.f32 %v4072, %v3932
    %v4074 = vadd.f32 %v4073, %v3935
    %v4075 = vadd.f32 %v4074, %v3940
    %v4076 = vadd.f32 %v4075, %v3943
    %v4077 = vadd.f32 %v4076, %v3948
    %v4078 = vadd.f32 %v4077, %v3951
    %v4079 = vadd.f32 %v4078, %v3956
    %v4080 = vadd.f32 %v4079, %v3959
    %v4081 = vadd.f32 %v4080, %v3964
    %v4082 = vadd.f32 %v4081, %v3967
    %v4083 = vadd.f32 %v4082, %v3972
    %v4084 = vadd.f32 %v4083, %v3975
    %v4085 = vadd.f32 %v4084, %v3980
    %v4086 = vadd.f32 %v4085, %v3983
    %v4087 = vadd.f32 %v4086, %v3988
    %v4088 = vadd.f32 %v4087, %v3991
    %v4089 = vadd.f32 %v4088, %v3996
    %v4090 = vadd.f32 %v4089, %v3999
    %v4091 = vadd.f32 %v4090, %v4004
    %v4092 = vadd.f32 %v4091, %v4007
    %v4093 = vadd.f32 %v4092, %v4012
    %v4094 = vadd.f32 %v4093, %v4015
    %v4095 = vadd.f32 %v4094, %v4020
    %v4096 = vadd.f32 %v4095, %v4023
    %v4097 = vadd.f32 %v4096, %v4028
    %v4098 = vadd.f32 %v4097, %v4031
    %v4099 = vrot.slane %v4098, 4
    %v4100 = vadd.f32 %v4098, %v4099
    %v4101 = vrot.slane %v4100, 2
    %v4102 = vadd.f32 %v4100, %v4101
    %v4103 = vrot.slane %v4102, 1
    %v4104 = vadd.f32 %v4102, %v4103
    %v4105 = vmul.f32 %v4104, 0.001953125
    %v4106 = vsub.f32 %v3780, %v4105
    %v4107 = vsub.f32 %v3783, %v4105
    %v4108 = vsub.f32 %v3788, %v4105
    %v4109 = vsub.f32 %v3791, %v4105
    %v4110 = vsub.f32 %v3796, %v4105
    %v4111 = vsub.f32 %v3799, %v4105
    %v4112 = vsub.f32 %v3804, %v4105
    %v4113 = vsub.f32 %v3807, %v4105
    %v4114 = vsub.f32 %v3812, %v4105
    %v4115 = vsub.f32 %v3815, %v4105
    %v4116 = vsub.f32 %v3820, %v4105
    %v4117 = vsub.f32 %v3823, %v4105
    %v4118 = vsub.f32 %v3828, %v4105
    %v4119 = vsub.f32 %v3831, %v4105
    %v4120 = vsub.f32 %v3836, %v4105
    %v4121 = vsub.f32 %v3839, %v4105
    %v4122 = vsub.f32 %v3844, %v4105
    %v4123 = vsub.f32 %v3847, %v4105
    %v4124 = vsub.f32 %v3852, %v4105
    %v4125 = vsub.f32 %v3855, %v4105
    %v4126 = vsub.f32 %v3860, %v4105
    %v4127 = vsub.f32 %v3863, %v4105
    %v4128 = vsub.f32 %v3868, %v4105
    %v4129 = vsub.f32 %v3871, %v4105
    %v4130 = vsub.f32 %v3876, %v4105
    %v4131 = vsub.f32 %v3879, %v4105
    %v4132 = vsub.f32 %v3884, %v4105
    %v4133 = vsub.f32 %v3887, %v4105
    %v4134 = vsub.f32 %v3892, %v4105
    %v4135 = vsub.f32 %v3895, %v4105
    %v4136 = vsub.f32 %v3900, %v4105
    %v4137 = vsub.f32 %v3903, %v4105
    %v4138 = vsub.f32 %v3908, %v4105
    %v4139 = vsub.f32 %v3911, %v4105
    %v4140 = vsub.f32 %v3916, %v4105
    %v4141 = vsub.f32 %v3919, %v4105
    %v4142 = vsub.f32 %v3924, %v4105
    %v4143 = vsub.f32 %v3927, %v4105
    %v4144 = vsub.f32 %v3932, %v4105
    %v4145 = vsub.f32 %v3935, %v4105
    %v4146 = vsub.f32 %v3940, %v4105
    %v4147 = vsub.f32 %v3943, %v4105
    %v4148 = vsub.f32 %v3948, %v4105
    %v4149 = vsub.f32 %v3951, %v4105
    %v4150 = vsub.f32 %v3956, %v4105
    %v4151 = vsub.f32 %v3959, %v4105
    %v4152 = vsub.f32 %v3964, %v4105
    %v4153 = vsub.f32 %v3967, %v4105
    %v4154 = vsub.f32 %v3972, %v4105
    %v4155 = vsub.f32 %v3975, %v4105
    %v4156 = vsub.f32 %v3980, %v4105
    %v4157 = vsub.f32 %v3983, %v4105
    %v4158 = vsub.f32 %v3988, %v4105
    %v4159 = vsub.f32 %v3991, %v4105
    %v4160 = vsub.f32 %v3996, %v4105
    %v4161 = vsub.f32 %v3999, %v4105
    %v4162 = vsub.f32 %v4004, %v4105
    %v4163 = vsub.f32 %v4007, %v4105
    %v4164 = vsub.f32 %v4012, %v4105
    %v4165 = vsub.f32 %v4015, %v4105
    %v4166 = vsub.f32 %v4020, %v4105
    %v4167 = vsub.f32 %v4023, %v4105
    %v4168 = vsub.f32 %v4028, %v4105
    %v4169 = vsub.f32 %v4031, %v4105
    %v4170 = vmul.f32 %v4106, %v4106
    %v4171 = vmul.f32 %v4107, %v4107
    %v4172 = vmul.f32 %v4108, %v4108
    %v4173 = vmul.f32 %v4109, %v4109
    %v4174 = vmul.f32 %v4110, %v4110
    %v4175 = vmul.f32 %v4111, %v4111
    %v4176 = vmul.f32 %v4112, %v4112
    %v4177 = vmul.f32 %v4113, %v4113
    %v4178 = vmul.f32 %v4114, %v4114
    %v4179 = vmul.f32 %v4115, %v4115
    %v4180 = vmul.f32 %v4116, %v4116
    %v4181 = vmul.f32 %v4117, %v4117
    %v4182 = vmul.f32 %v4118, %v4118
    %v4183 = vmul.f32 %v4119, %v4119
    %v4184 = vmul.f32 %v4120, %v4120
    %v4185 = vmul.f32 %v4121, %v4121
    %v4186 = vmul.f32 %v4122, %v4122
    %v4187 = vmul.f32 %v4123, %v4123
    %v4188 = vmul.f32 %v4124, %v4124
    %v4189 = vmul.f32 %v4125, %v4125
    %v4190 = vmul.f32 %v4126, %v4126
    %v4191 = vmul.f32 %v4127, %v4127
    %v4192 = vmul.f32 %v4128, %v4128
    %v4193 = vmul.f32 %v4129, %v4129
    %v4194 = vmul.f32 %v4130, %v4130
    %v4195 = vmul.f32 %v4131, %v4131
    %v4196 = vmul.f32 %v4132, %v4132
    %v4197 = vmul.f32 %v4133, %v4133
    %v4198 = vmul.f32 %v4134, %v4134
    %v4199 = vmul.f32 %v4135, %v4135
    %v4200 = vmul.f32 %v4136, %v4136
    %v4201 = vmul.f32 %v4137, %v4137
    %v4202 = vmul.f32 %v4138, %v4138
    %v4203 = vmul.f32 %v4139, %v4139
    %v4204 = vmul.f32 %v4140, %v4140
    %v4205 = vmul.f32 %v4141, %v4141
    %v4206 = vmul.f32 %v4142, %v4142
    %v4207 = vmul.f32 %v4143, %v4143
    %v4208 = vmul.f32 %v4144, %v4144
    %v4209 = vmul.f32 %v4145, %v4145
    %v4210 = vmul.f32 %v4146, %v4146
    %v4211 = vmul.f32 %v4147, %v4147
    %v4212 = vmul.f32 %v4148, %v4148
    %v4213 = vmul.f32 %v4149, %v4149
    %v4214 = vmul.f32 %v4150, %v4150
    %v4215 = vmul.f32 %v4151, %v4151
    %v4216 = vmul.f32 %v4152, %v4152
    %v4217 = vmul.f32 %v4153, %v4153
    %v4218 = vmul.f32 %v4154, %v4154
    %v4219 = vmul.f32 %v4155, %v4155
    %v4220 = vmul.f32 %v4156, %v4156
    %v4221 = vmul.f32 %v4157, %v4157
    %v4222 = vmul.f32 %v4158, %v4158
    %v4223 = vmul.f32 %v4159, %v4159
    %v4224 = vmul.f32 %v4160, %v4160
    %v4225 = vmul.f32 %v4161, %v4161
    %v4226 = vmul.f32 %v4162, %v4162
    %v4227 = vmul.f32 %v4163, %v4163
    %v4228 = vmul.f32 %v4164, %v4164
    %v4229 = vmul.f32 %v4165, %v4165
    %v4230 = vmul.f32 %v4166, %v4166
    %v4231 = vmul.f32 %v4167, %v4167
    %v4232 = vmul.f32 %v4168, %v4168
    %v4233 = vmul.f32 %v4169, %v4169
    %v4234 = vadd.f32 %v4170, %v4171
    %v4235 = vadd.f32 %v4234, %v4172
    %v4236 = vadd.f32 %v4235, %v4173
    %v4237 = vadd.f32 %v4236, %v4174
    %v4238 = vadd.f32 %v4237, %v4175
    %v4239 = vadd.f32 %v4238, %v4176
    %v4240 = vadd.f32 %v4239, %v4177
    %v4241 = vadd.f32 %v4240, %v4178
    %v4242 = vadd.f32 %v4241, %v4179
    %v4243 = vadd.f32 %v4242, %v4180
    %v4244 = vadd.f32 %v4243, %v4181
    %v4245 = vadd.f32 %v4244, %v4182
    %v4246 = vadd.f32 %v4245, %v4183
    %v4247 = vadd.f32 %v4246, %v4184
    %v4248 = vadd.f32 %v4247, %v4185
    %v4249 = vadd.f32 %v4248, %v4186
    %v4250 = vadd.f32 %v4249, %v4187
    %v4251 = vadd.f32 %v4250, %v4188
    %v4252 = vadd.f32 %v4251, %v4189
    %v4253 = vadd.f32 %v4252, %v4190
    %v4254 = vadd.f32 %v4253, %v4191
    %v4255 = vadd.f32 %v4254, %v4192
    %v4256 = vadd.f32 %v4255, %v4193
    %v4257 = vadd.f32 %v4256, %v4194
    %v4258 = vadd.f32 %v4257, %v4195
    %v4259 = vadd.f32 %v4258, %v4196
    %v4260 = vadd.f32 %v4259, %v4197
    %v4261 = vadd.f32 %v4260, %v4198
    %v4262 = vadd.f32 %v4261, %v4199
    %v4263 = vadd.f32 %v4262, %v4200
    %v4264 = vadd.f32 %v4263, %v4201
    %v4265 = vadd.f32 %v4264, %v4202
    %v4266 = vadd.f32 %v4265, %v4203
    %v4267 = vadd.f32 %v4266, %v4204
    %v4268 = vadd.f32 %v4267, %v4205
    %v4269 = vadd.f32 %v4268, %v4206
    %v4270 = vadd.f32 %v4269, %v4207
    %v4271 = vadd.f32 %v4270, %v4208
    %v4272 = vadd.f32 %v4271, %v4209
    %v4273 = vadd.f32 %v4272, %v4210
    %v4274 = vadd.f32 %v4273, %v4211
    %v4275 = vadd.f32 %v4274, %v4212
    %v4276 = vadd.f32 %v4275, %v4213
    %v4277 = vadd.f32 %v4276, %v4214
    %v4278 = vadd.f32 %v4277, %v4215
    %v4279 = vadd.f32 %v4278, %v4216
    %v4280 = vadd.f32 %v4279, %v4217
    %v4281 = vadd.f32 %v4280, %v4218
    %v4282 = vadd.f32 %v4281, %v4219
    %v4283 = vadd.f32 %v4282, %v4220
    %v4284 = vadd.f32 %v4283, %v4221
    %v4285 = vadd.f32 %v4284, %v4222
    %v4286 = vadd.f32 %v4285, %v4223
    %v4287 = vadd.f32 %v4286, %v4224
    %v4288 = vadd.f32 %v4287, %v4225
    %v4289 = vadd.f32 %v4288, %v4226
    %v4290 = vadd.f32 %v4289, %v4227
    %v4291 = vadd.f32 %v4290, %v4228
    %v4292 = vadd.f32 %v4291, %v4229
    %v4293 = vadd.f32 %v4292, %v4230
    %v4294 = vadd.f32 %v4293, %v4231
    %v4295 = vadd.f32 %v4294, %v4232
    %v4296 = vadd.f32 %v4295, %v4233
    %v4297 = vrot.slane %v4296, 4
    %v4298 = vadd.f32 %v4296, %v4297
    %v4299 = vrot.slane %v4298, 2
    %v4300 = vadd.f32 %v4298, %v4299
    %v4301 = vrot.slane %v4300, 1
    %v4302 = vadd.f32 %v4300, %v4301
    %v4303 = vmul.f32 %v4302, 0.001953125
    %v4304 = vadd.f32 %v4303, 1e-05
    %v4305 = vrsqrt.pop %v4304
    %v4306 = vmul.f32 %v4034, %v4305
    %v4308 = vlaneseq
    %v4309 = vshrl.u32 %v4308, 7
    %v4310 = vsub.s32 0, %v4309
    %v4311 = vrot.slane %v4306, %v4310
    %v4313 = vmul.f32 %v4106, %v4311
    %v4314 = vmul.f32 %v4107, %v4311
    %v4315 = vmul.f32 %v4108, %v4311
    %v4316 = vmul.f32 %v4109, %v4311
    %v4317 = vmul.f32 %v4110, %v4311
    %v4318 = vmul.f32 %v4111, %v4311
    %v4319 = vmul.f32 %v4112, %v4311
    %v4320 = vmul.f32 %v4113, %v4311
    %v4321 = vmul.f32 %v4114, %v4311
    %v4322 = vmul.f32 %v4115, %v4311
    %v4323 = vmul.f32 %v4116, %v4311
    %v4324 = vmul.f32 %v4117, %v4311
    %v4325 = vmul.f32 %v4118, %v4311
    %v4326 = vmul.f32 %v4119, %v4311
    %v4327 = vmul.f32 %v4120, %v4311
    %v4328 = vmul.f32 %v4121, %v4311
    %v4329 = vmul.f32 %v4122, %v4311
    %v4330 = vmul.f32 %v4123, %v4311
    %v4331 = vmul.f32 %v4124, %v4311
    %v4332 = vmul.f32 %v4125, %v4311
    %v4333 = vmul.f32 %v4126, %v4311
    %v4334 = vmul.f32 %v4127, %v4311
    %v4335 = vmul.f32 %v4128, %v4311
    %v4336 = vmul.f32 %v4129, %v4311
    %v4337 = vmul.f32 %v4130, %v4311
    %v4338 = vmul.f32 %v4131, %v4311
    %v4339 = vmul.f32 %v4132, %v4311
    %v4340 = vmul.f32 %v4133, %v4311
    %v4341 = vmul.f32 %v4134, %v4311
    %v4342 = vmul.f32 %v4135, %v4311
    %v4343 = vmul.f32 %v4136, %v4311
    %v4344 = vmul.f32 %v4137, %v4311
    %v4345 = vmul.f32 %v4138, %v4311
    %v4346 = vmul.f32 %v4139, %v4311
    %v4347 = vmul.f32 %v4140, %v4311
    %v4348 = vmul.f32 %v4141, %v4311
    %v4349 = vmul.f32 %v4142, %v4311
    %v4350 = vmul.f32 %v4143, %v4311
    %v4351 = vmul.f32 %v4144, %v4311
    %v4352 = vmul.f32 %v4145, %v4311
    %v4353 = vmul.f32 %v4146, %v4311
    %v4354 = vmul.f32 %v4147, %v4311
    %v4355 = vmul.f32 %v4148, %v4311
    %v4356 = vmul.f32 %v4149, %v4311
    %v4357 = vmul.f32 %v4150, %v4311
    %v4358 = vmul.f32 %v4151, %v4311
    %v4359 = vmul.f32 %v4152, %v4311
    %v4360 = vmul.f32 %v4153, %v4311
    %v4361 = vmul.f32 %v4154, %v4311
    %v4362 = vmul.f32 %v4155, %v4311
    %v4363 = vmul.f32 %v4156, %v4311
    %v4364 = vmul.f32 %v4157, %v4311
    %v4365 = vmul.f32 %v4158, %v4311
    %v4366 = vmul.f32 %v4159, %v4311
    %v4367 = vmul.f32 %v4160, %v4311
    %v4368 = vmul.f32 %v4161, %v4311
    %v4369 = vmul.f32 %v4162, %v4311
    %v4370 = vmul.f32 %v4163, %v4311
    %v4371 = vmul.f32 %v4164, %v4311
    %v4372 = vmul.f32 %v4165, %v4311
    %v4373 = vmul.f32 %v4166, %v4311
    %v4374 = vmul.f32 %v4167, %v4311
    %v4375 = vmul.f32 %v4168, %v4311
    %v4376 = vmul.f32 %v4169, %v4311
    %v4378 = vlaneseq
    %v4379 = vshrl.u32 %v4378, 7
    %v4380 = vsub.s32 0, %v4379
    %v4381 = vrot.slane %v4035, %v4380
    %v4383 = vadd.f32 %v4313, %v4381
    %v4384 = vadd.f32 %v4314, %v4381
    %v4385 = vadd.f32 %v4315, %v4381
    %v4386 = vadd.f32 %v4316, %v4381
    %v4387 = vadd.f32 %v4317, %v4381
    %v4388 = vadd.f32 %v4318, %v4381
    %v4389 = vadd.f32 %v4319, %v4381
    %v4390 = vadd.f32 %v4320, %v4381
    %v4391 = vadd.f32 %v4321, %v4381
    %v4392 = vadd.f32 %v4322, %v4381
    %v4393 = vadd.f32 %v4323, %v4381
    %v4394 = vadd.f32 %v4324, %v4381
    %v4395 = vadd.f32 %v4325, %v4381
    %v4396 = vadd.f32 %v4326, %v4381
    %v4397 = vadd.f32 %v4327, %v4381
    %v4398 = vadd.f32 %v4328, %v4381
    %v4399 = vadd.f32 %v4329, %v4381
    %v4400 = vadd.f32 %v4330, %v4381
    %v4401 = vadd.f32 %v4331, %v4381
    %v4402 = vadd.f32 %v4332, %v4381
    %v4403 = vadd.f32 %v4333, %v4381
    %v4404 = vadd.f32 %v4334, %v4381
    %v4405 = vadd.f32 %v4335, %v4381
    %v4406 = vadd.f32 %v4336, %v4381
    %v4407 = vadd.f32 %v4337, %v4381
    %v4408 = vadd.f32 %v4338, %v4381
    %v4409 = vadd.f32 %v4339, %v4381
    %v4410 = vadd.f32 %v4340, %v4381
    %v4411 = vadd.f32 %v4341, %v4381
    %v4412 = vadd.f32 %v4342, %v4381
    %v4413 = vadd.f32 %v4343, %v4381
    %v4414 = vadd.f32 %v4344, %v4381
    %v4415 = vadd.f32 %v4345, %v4381
    %v4416 = vadd.f32 %v4346, %v4381
    %v4417 = vadd.f32 %v4347, %v4381
    %v4418 = vadd.f32 %v4348, %v4381
    %v4419 = vadd.f32 %v4349, %v4381
    %v4420 = vadd.f32 %v4350, %v4381
    %v4421 = vadd.f32 %v4351, %v4381
    %v4422 = vadd.f32 %v4352, %v4381
    %v4423 = vadd.f32 %v4353, %v4381
    %v4424 = vadd.f32 %v4354, %v4381
    %v4425 = vadd.f32 %v4355, %v4381
    %v4426 = vadd.f32 %v4356, %v4381
    %v4427 = vadd.f32 %v4357, %v4381
    %v4428 = vadd.f32 %v4358, %v4381
    %v4429 = vadd.f32 %v4359, %v4381
    %v4430 = vadd.f32 %v4360, %v4381
    %v4431 = vadd.f32 %v4361, %v4381
    %v4432 = vadd.f32 %v4362, %v4381
    %v4433 = vadd.f32 %v4363, %v4381
    %v4434 = vadd.f32 %v4364, %v4381
    %v4435 = vadd.f32 %v4365, %v4381
    %v4436 = vadd.f32 %v4366, %v4381
    %v4437 = vadd.f32 %v4367, %v4381
    %v4438 = vadd.f32 %v4368, %v4381
    %v4439 = vadd.f32 %v4369, %v4381
    %v4440 = vadd.f32 %v4370, %v4381
    %v4441 = vadd.f32 %v4371, %v4381
    %v4442 = vadd.f32 %v4372, %v4381
    %v4443 = vadd.f32 %v4373, %v4381
    %v4444 = vadd.f32 %v4374, %v4381
    %v4445 = vadd.f32 %v4375, %v4381
    %v4446 = vadd.f32 %v4376, %v4381
    %v4447 = vmax.f32 %v4383, 0.0
    %v4448 = vmax.f32 %v4384, 0.0
    %v4449 = vmax.f32 %v4385, 0.0
    %v4450 = vmax.f32 %v4386, 0.0
    %v4451 = vmax.f32 %v4387, 0.0
    %v4452 = vmax.f32 %v4388, 0.0
    %v4453 = vmax.f32 %v4389, 0.0
    %v4454 = vmax.f32 %v4390, 0.0
    %v4455 = vmax.f32 %v4391, 0.0
    %v4456 = vmax.f32 %v4392, 0.0
    %v4457 = vmax.f32 %v4393, 0.0
    %v4458 = vmax.f32 %v4394, 0.0
    %v4459 = vmax.f32 %v4395, 0.0
    %v4460 = vmax.f32 %v4396, 0.0
    %v4461 = vmax.f32 %v4397, 0.0
    %v4462 = vmax.f32 %v4398, 0.0
    %v4463 = vmax.f32 %v4399, 0.0
    %v4464 = vmax.f32 %v4400, 0.0
    %v4465 = vmax.f32 %v4401, 0.0
    %v4466 = vmax.f32 %v4402, 0.0
    %v4467 = vmax.f32 %v4403, 0.0
    %v4468 = vmax.f32 %v4404, 0.0
    %v4469 = vmax.f32 %v4405, 0.0
    %v4470 = vmax.f32 %v4406, 0.0
    %v4471 = vmax.f32 %v4407, 0.0
    %v4472 = vmax.f32 %v4408, 0.0
    %v4473 = vmax.f32 %v4409, 0.0
    %v4474 = vmax.f32 %v4410, 0.0
    %v4475 = vmax.f32 %v4411, 0.0
    %v4476 = vmax.f32 %v4412, 0.0
    %v4477 = vmax.f32 %v4413, 0.0
    %v4478 = vmax.f32 %v4414, 0.0
    %v4479 = vmax.f32 %v4415, 0.0
    %v4480 = vmax.f32 %v4416, 0.0
    %v4481 = vmax.f32 %v4417, 0.0
    %v4482 = vmax.f32 %v4418, 0.0
    %v4483 = vmax.f32 %v4419, 0.0
    %v4484 = vmax.f32 %v4420, 0.0
    %v4485 = vmax.f32 %v4421, 0.0
    %v4486 = vmax.f32 %v4422, 0.0
    %v4487 = vmax.f32 %v4423, 0.0
    %v4488 = vmax.f32 %v4424, 0.0
    %v4489 = vmax.f32 %v4425, 0.0
    %v4490 = vmax.f32 %v4426, 0.0
    %v4491 = vmax.f32 %v4427, 0.0
    %v4492 = vmax.f32 %v4428, 0.0
    %v4493 = vmax.f32 %v4429, 0.0
    %v4494 = vmax.f32 %v4430, 0.0
    %v4495 = vmax.f32 %v4431, 0.0
    %v4496 = vmax.f32 %v4432, 0.0
    %v4497 = vmax.f32 %v4433, 0.0
    %v4498 = vmax.f32 %v4434, 0.0
    %v4499 = vmax.f32 %v4435, 0.0
    %v4500 = vmax.f32 %v4436, 0.0
    %v4501 = vmax.f32 %v4437, 0.0
    %v4502 = vmax.f32 %v4438, 0.0
    %v4503 = vmax.f32 %v4439, 0.0
    %v4504 = vmax.f32 %v4440, 0.0
    %v4505 = vmax.f32 %v4441, 0.0
    %v4506 = vmax.f32 %v4442, 0.0
    %v4507 = vmax.f32 %v4443, 0.0
    %v4508 = vmax.f32 %v4444, 0.0
    %v4509 = vmax.f32 %v4445, 0.0
    %v4510 = vmax.f32 %v4446, 0.0
    %v4511 = vpack.c.bf16 %v4448, %v4447
    %v4512 = vpack.c.bf16 %v4450, %v4449
    %v4513 = vpack.c.bf16 %v4452, %v4451
    %v4514 = vpack.c.bf16 %v4454, %v4453
    %v4515 = vpack.c.bf16 %v4456, %v4455
    %v4516 = vpack.c.bf16 %v4458, %v4457
    %v4517 = vpack.c.bf16 %v4460, %v4459
    %v4518 = vpack.c.bf16 %v4462, %v4461
    %v4519 = vpack.c.bf16 %v4464, %v4463
    %v4520 = vpack.c.bf16 %v4466, %v4465
    %v4521 = vpack.c.bf16 %v4468, %v4467
    %v4522 = vpack.c.bf16 %v4470, %v4469
    %v4523 = vpack.c.bf16 %v4472, %v4471
    %v4524 = vpack.c.bf16 %v4474, %v4473
    %v4525 = vpack.c.bf16 %v4476, %v4475
    %v4526 = vpack.c.bf16 %v4478, %v4477
    %v4527 = vpack.c.bf16 %v4480, %v4479
    %v4528 = vpack.c.bf16 %v4482, %v4481
    %v4529 = vpack.c.bf16 %v4484, %v4483
    %v4530 = vpack.c.bf16 %v4486, %v4485
    %v4531 = vpack.c.bf16 %v4488, %v4487
    %v4532 = vpack.c.bf16 %v4490, %v4489
    %v4533 = vpack.c.bf16 %v4492, %v4491
    %v4534 = vpack.c.bf16 %v4494, %v4493
    %v4535 = vpack.c.bf16 %v4496, %v4495
    %v4536 = vpack.c.bf16 %v4498, %v4497
    %v4537 = vpack.c.bf16 %v4500, %v4499
    %v4538 = vpack.c.bf16 %v4502, %v4501
    %v4539 = vpack.c.bf16 %v4504, %v4503
    %v4540 = vpack.c.bf16 %v4506, %v4505
    %v4541 = vpack.c.bf16 %v4508, %v4507
    %v4542 = vpack.c.bf16 %v4510, %v4509
    %v4543 = vld [vmem:[%s3] sm:$0xf]
    %v4544 = vld [vmem:[%s3 + $0x4] sm:$0xf]
    %v4545 = vld [vmem:[%s3 + $0x8] sm:$0xf]
    %v4546 = vld [vmem:[%s3 + $0xc] sm:$0xf]
    %v4547 = vld [vmem:[%s3 + $0x10] sm:$0xf]
    %v4548 = vld [vmem:[%s3 + $0x14] sm:$0xf]
    %v4549 = vld [vmem:[%s3 + $0x18] sm:$0xf]
    %v4550 = vld [vmem:[%s3 + $0x1c] sm:$0xf]
    %v4551 = vld [vmem:[%s3 + $0x20] sm:$0xf]
    %v4552 = vld [vmem:[%s3 + $0x24] sm:$0xf]
    %v4553 = vld [vmem:[%s3 + $0x28] sm:$0xf]
    %v4554 = vld [vmem:[%s3 + $0x2c] sm:$0xf]
    %v4555 = vld [vmem:[%s3 + $0x30] sm:$0xf]
    %v4556 = vld [vmem:[%s3 + $0x34] sm:$0xf]
    %v4557 = vld [vmem:[%s3 + $0x38] sm:$0xf]
    %v4558 = vld [vmem:[%s3 + $0x3c] sm:$0xf]
    %v4575 = vunpack.c.l.b16 %v4543
    %v4576 = vunpack.c.l.b16 %v4544
    %v4577 = vunpack.c.l.b16 %v4545
    %v4578 = vunpack.c.l.b16 %v4546
    %v4579 = vunpack.c.l.b16 %v4547
    %v4580 = vunpack.c.l.b16 %v4548
    %v4581 = vunpack.c.l.b16 %v4549
    %v4582 = vunpack.c.l.b16 %v4550
    %v4583 = vunpack.c.l.b16 %v4551
    %v4584 = vunpack.c.l.b16 %v4552
    %v4585 = vunpack.c.l.b16 %v4553
    %v4586 = vunpack.c.l.b16 %v4554
    %v4587 = vunpack.c.l.b16 %v4555
    %v4588 = vunpack.c.l.b16 %v4556
    %v4589 = vunpack.c.l.b16 %v4557
    %v4590 = vunpack.c.l.b16 %v4558
    %v4591 = vpack.c.b16 %v4576, %v4575
    %v4592 = vpack.c.b16 %v4578, %v4577
    %v4593 = vpack.c.b16 %v4580, %v4579
    %v4594 = vpack.c.b16 %v4582, %v4581
    %v4595 = vpack.c.b16 %v4584, %v4583
    %v4596 = vpack.c.b16 %v4586, %v4585
    %v4597 = vpack.c.b16 %v4588, %v4587
    %v4598 = vpack.c.b16 %v4590, %v4589
    %4607 = vmatprep.subr.bf16.mxu0 0
    %4608 = vmatpush1.bf16.msra.mxu0 %v4591
    %4609 = vmatprep.subr.bf16.mxu0 0
    %4610 = vmatpush1.bf16.msra.mxu0 %v4592
    %4611 = vmatprep.subr.bf16.mxu0 0
    %4612 = vmatpush1.bf16.msra.mxu0 %v4593
    %4613 = vmatprep.subr.bf16.mxu0 0
    %4614 = vmatpush1.bf16.msra.mxu0 %v4594
    %4615 = vmatprep.subr.bf16.mxu0 0
    %4616 = vmatpush1.bf16.msra.mxu0 %v4595
    %4617 = vmatprep.subr.bf16.mxu0 0
    %4618 = vmatpush1.bf16.msra.mxu0 %v4596
    %4619 = vmatprep.subr.bf16.mxu0 0
    %4620 = vmatpush1.bf16.msra.mxu0 %v4597
    %4621 = vmatprep.subr.bf16.mxu0 0
    %4622 = vmatpush1.bf16.msra.mxu0 %v4598
    %4623 = vmatprep.subr.bf16.mxu0 0
    %4624 = vmatpush1.bf16.msra.mxu0 0
    %4625 = vmatprep.subr.bf16.mxu0 0
    %4626 = vmatpush1.bf16.msra.mxu0 0
    %4627 = vmatprep.subr.bf16.mxu0 0
    %4628 = vmatpush1.bf16.msra.mxu0 0
    %4629 = vmatprep.subr.bf16.mxu0 0
    %4630 = vmatpush1.bf16.msra.mxu0 0
    %4631 = vmatprep.subr.bf16.mxu0 0
    %4632 = vmatpush1.bf16.msra.mxu0 0
    %4633 = vmatprep.subr.bf16.mxu0 0
    %4634 = vmatpush1.bf16.msra.mxu0 0
    %4635 = vmatprep.subr.bf16.mxu0 0
    %4636 = vmatpush1.bf16.msra.mxu0 0
    %4637 = vmatprep.subr.bf16.mxu0 0
    %4638 = vmatpush1.bf16.msra.mxu0 0
    %4639 = vmatprep.mubr.bf16.mxu0 0
    %4640 = vmatmul.mubr.bf16.gmra.mrb[0].mxu0 %v4511
    %v4641 = vpop.f32.mrb[0].mxu0
    %v4642 = vadd.f32 0.0, %v4641
    %v4643 = vpop.f32.mrb[0].mxu0
    %v4644 = vpop.f32.mrb[0].mxu0
    %v4645 = vadd.f32 0.0, %v4644
    %v4646 = vpop.f32.mrb[0].mxu0
    %4647 = vmatprep.mubr.bf16.mxu0 0
    %4648 = vmatmul.mubr.bf16.gmra.mrb[0].mxu0 %v4512
    %v4649 = vpop.f32.mrb[0].mxu0
    %v4650 = vadd.f32 0.0, %v4649
    %v4651 = vpop.f32.mrb[0].mxu0
    %v4652 = vpop.f32.mrb[0].mxu0
    %v4653 = vadd.f32 0.0, %v4652
    %v4654 = vpop.f32.mrb[0].mxu0
    %4655 = vmatprep.mubr.bf16.mxu0 0
    %4656 = vmatmul.mubr.bf16.gmra.mrb[0].mxu0 %v4513
    %v4657 = vpop.f32.mrb[0].mxu0
    %v4658 = vadd.f32 0.0, %v4657
    %v4659 = vpop.f32.mrb[0].mxu0
    %v4660 = vpop.f32.mrb[0].mxu0
    %v4661 = vadd.f32 0.0, %v4660
    %v4662 = vpop.f32.mrb[0].mxu0
    %4663 = vmatprep.mubr.bf16.mxu0 0
    %4664 = vmatmul.mubr.bf16.gmra.mrb[0].mxu0 %v4514
    %v4665 = vpop.f32.mrb[0].mxu0
    %v4666 = vadd.f32 0.0, %v4665
    %v4667 = vpop.f32.mrb[0].mxu0
    %v4668 = vpop.f32.mrb[0].mxu0
    %v4669 = vadd.f32 0.0, %v4668
    %v4670 = vpop.f32.mrb[0].mxu0
    %4671 = vmatprep.mubr.bf16.mxu0 0
    %4672 = vmatmul.mubr.bf16.gmra.mrb[0].mxu0 %v4515
    %v4673 = vpop.f32.mrb[0].mxu0
    %v4674 = vadd.f32 0.0, %v4673
    %v4675 = vpop.f32.mrb[0].mxu0
    %v4676 = vpop.f32.mrb[0].mxu0
    %v4677 = vadd.f32 0.0, %v4676
    %v4678 = vpop.f32.mrb[0].mxu0
    %4679 = vmatprep.mubr.bf16.mxu0 0
    %4680 = vmatmul.mubr.bf16.gmra.mrb[0].mxu0 %v4516
    %v4681 = vpop.f32.mrb[0].mxu0
    %v4682 = vadd.f32 0.0, %v4681
    %v4683 = vpop.f32.mrb[0].mxu0
    %v4684 = vpop.f32.mrb[0].mxu0
    %v4685 = vadd.f32 0.0, %v4684
    %v4686 = vpop.f32.mrb[0].mxu0
    %4687 = vmatprep.mubr.bf16.mxu0 0
    %4688 = vmatmul.mubr.bf16.gmra.mrb[0].mxu0 %v4517
    %v4689 = vpop.f32.mrb[0].mxu0
    %v4690 = vadd.f32 0.0, %v4689
    %v4691 = vpop.f32.mrb[0].mxu0
    %v4692 = vpop.f32.mrb[0].mxu0
    %v4693 = vadd.f32 0.0, %v4692
    %v4694 = vpop.f32.mrb[0].mxu0
    %4695 = vmatprep.mubr.bf16.mxu0 0
    %4696 = vmatmul.mubr.bf16.gmra.mrb[0].mxu0 %v4518
    %v4697 = vpop.f32.mrb[0].mxu0
    %v4698 = vadd.f32 0.0, %v4697
    %v4699 = vpop.f32.mrb[0].mxu0
    %v4700 = vpop.f32.mrb[0].mxu0
    %v4701 = vadd.f32 0.0, %v4700
    %v4702 = vpop.f32.mrb[0].mxu0
    %4703 = vmatprep.mubr.bf16.mxu0 0
    %4704 = vmatmul.mubr.bf16.gmra.mrb[0].mxu0 %v4519
    %v4705 = vpop.f32.mrb[0].mxu0
    %v4706 = vadd.f32 0.0, %v4705
    %v4707 = vpop.f32.mrb[0].mxu0
    %v4708 = vpop.f32.mrb[0].mxu0
    %v4709 = vadd.f32 0.0, %v4708
    %v4710 = vpop.f32.mrb[0].mxu0
    %4711 = vmatprep.mubr.bf16.mxu0 0
    %4712 = vmatmul.mubr.bf16.gmra.mrb[0].mxu0 %v4520
    %v4713 = vpop.f32.mrb[0].mxu0
    %v4714 = vadd.f32 0.0, %v4713
    %v4715 = vpop.f32.mrb[0].mxu0
    %v4716 = vpop.f32.mrb[0].mxu0
    %v4717 = vadd.f32 0.0, %v4716
    %v4718 = vpop.f32.mrb[0].mxu0
    %4719 = vmatprep.mubr.bf16.mxu0 0
    %4720 = vmatmul.mubr.bf16.gmra.mrb[0].mxu0 %v4521
    %v4721 = vpop.f32.mrb[0].mxu0
    %v4722 = vadd.f32 0.0, %v4721
    %v4723 = vpop.f32.mrb[0].mxu0
    %v4724 = vpop.f32.mrb[0].mxu0
    %v4725 = vadd.f32 0.0, %v4724
    %v4726 = vpop.f32.mrb[0].mxu0
    %4727 = vmatprep.mubr.bf16.mxu0 0
    %4728 = vmatmul.mubr.bf16.gmra.mrb[0].mxu0 %v4522
    %v4729 = vpop.f32.mrb[0].mxu0
    %v4730 = vadd.f32 0.0, %v4729
    %v4731 = vpop.f32.mrb[0].mxu0
    %v4732 = vpop.f32.mrb[0].mxu0
    %v4733 = vadd.f32 0.0, %v4732
    %v4734 = vpop.f32.mrb[0].mxu0
    %4735 = vmatprep.mubr.bf16.mxu0 0
    %4736 = vmatmul.mubr.bf16.gmra.mrb[0].mxu0 %v4523
    %v4737 = vpop.f32.mrb[0].mxu0
    %v4738 = vadd.f32 0.0, %v4737
    %v4739 = vpop.f32.mrb[0].mxu0
    %v4740 = vpop.f32.mrb[0].mxu0
    %v4741 = vadd.f32 0.0, %v4740
    %v4742 = vpop.f32.mrb[0].mxu0
    %4743 = vmatprep.mubr.bf16.mxu0 0
    %4744 = vmatmul.mubr.bf16.gmra.mrb[0].mxu0 %v4524
    %v4745 = vpop.f32.mrb[0].mxu0
    %v4746 = vadd.f32 0.0, %v4745
    %v4747 = vpop.f32.mrb[0].mxu0
    %v4748 = vpop.f32.mrb[0].mxu0
    %v4749 = vadd.f32 0.0, %v4748
    %v4750 = vpop.f32.mrb[0].mxu0
    %4751 = vmatprep.mubr.bf16.mxu0 0
    %4752 = vmatmul.mubr.bf16.gmra.mrb[0].mxu0 %v4525
    %v4753 = vpop.f32.mrb[0].mxu0
    %v4754 = vadd.f32 0.0, %v4753
    %v4755 = vpop.f32.mrb[0].mxu0
    %v4756 = vpop.f32.mrb[0].mxu0
    %v4757 = vadd.f32 0.0, %v4756
    %v4758 = vpop.f32.mrb[0].mxu0
    %4759 = vmatprep.mubr.bf16.mxu0 0
    %4760 = vmatmul.mubr.bf16.gmra.mrb[0].mxu0 %v4526
    %v4761 = vpop.f32.mrb[0].mxu0
    %v4762 = vadd.f32 0.0, %v4761
    %v4763 = vpop.f32.mrb[0].mxu0
    %v4764 = vpop.f32.mrb[0].mxu0
    %v4765 = vadd.f32 0.0, %v4764
    %v4766 = vpop.f32.mrb[0].mxu0
    %4767 = vmatprep.mubr.bf16.mxu0 0
    %4768 = vmatmul.mubr.bf16.gmra.mrb[0].mxu0 %v4527
    %v4769 = vpop.f32.mrb[0].mxu0
    %v4770 = vadd.f32 0.0, %v4769
    %v4771 = vpop.f32.mrb[0].mxu0
    %v4772 = vpop.f32.mrb[0].mxu0
    %v4773 = vadd.f32 0.0, %v4772
    %v4774 = vpop.f32.mrb[0].mxu0
    %4775 = vmatprep.mubr.bf16.mxu0 0
    %4776 = vmatmul.mubr.bf16.gmra.mrb[0].mxu0 %v4528
    %v4777 = vpop.f32.mrb[0].mxu0
    %v4778 = vadd.f32 0.0, %v4777
    %v4779 = vpop.f32.mrb[0].mxu0
    %v4780 = vpop.f32.mrb[0].mxu0
    %v4781 = vadd.f32 0.0, %v4780
    %v4782 = vpop.f32.mrb[0].mxu0
    %4783 = vmatprep.mubr.bf16.mxu0 0
    %4784 = vmatmul.mubr.bf16.gmra.mrb[0].mxu0 %v4529
    %v4785 = vpop.f32.mrb[0].mxu0
    %v4786 = vadd.f32 0.0, %v4785
    %v4787 = vpop.f32.mrb[0].mxu0
    %v4788 = vpop.f32.mrb[0].mxu0
    %v4789 = vadd.f32 0.0, %v4788
    %v4790 = vpop.f32.mrb[0].mxu0
    %4791 = vmatprep.mubr.bf16.mxu0 0
    %4792 = vmatmul.mubr.bf16.gmra.mrb[0].mxu0 %v4530
    %v4793 = vpop.f32.mrb[0].mxu0
    %v4794 = vadd.f32 0.0, %v4793
    %v4795 = vpop.f32.mrb[0].mxu0
    %v4796 = vpop.f32.mrb[0].mxu0
    %v4797 = vadd.f32 0.0, %v4796
    %v4798 = vpop.f32.mrb[0].mxu0
    %4799 = vmatprep.mubr.bf16.mxu0 0
    %4800 = vmatmul.mubr.bf16.gmra.mrb[0].mxu0 %v4531
    %v4801 = vpop.f32.mrb[0].mxu0
    %v4802 = vadd.f32 0.0, %v4801
    %v4803 = vpop.f32.mrb[0].mxu0
    %v4804 = vpop.f32.mrb[0].mxu0
    %v4805 = vadd.f32 0.0, %v4804
    %v4806 = vpop.f32.mrb[0].mxu0
    %4807 = vmatprep.mubr.bf16.mxu0 0
    %4808 = vmatmul.mubr.bf16.gmra.mrb[0].mxu0 %v4532
    %v4809 = vpop.f32.mrb[0].mxu0
    %v4810 = vadd.f32 0.0, %v4809
    %v4811 = vpop.f32.mrb[0].mxu0
    %v4812 = vpop.f32.mrb[0].mxu0
    %v4813 = vadd.f32 0.0, %v4812
    %v4814 = vpop.f32.mrb[0].mxu0
    %4815 = vmatprep.mubr.bf16.mxu0 0
    %4816 = vmatmul.mubr.bf16.gmra.mrb[0].mxu0 %v4533
    %v4817 = vpop.f32.mrb[0].mxu0
    %v4818 = vadd.f32 0.0, %v4817
    %v4819 = vpop.f32.mrb[0].mxu0
    %v4820 = vpop.f32.mrb[0].mxu0
    %v4821 = vadd.f32 0.0, %v4820
    %v4822 = vpop.f32.mrb[0].mxu0
    %4823 = vmatprep.mubr.bf16.mxu0 0
    %4824 = vmatmul.mubr.bf16.gmra.mrb[0].mxu0 %v4534
    %v4825 = vpop.f32.mrb[0].mxu0
    %v4826 = vadd.f32 0.0, %v4825
    %v4827 = vpop.f32.mrb[0].mxu0
    %v4828 = vpop.f32.mrb[0].mxu0
    %v4829 = vadd.f32 0.0, %v4828
    %v4830 = vpop.f32.mrb[0].mxu0
    %4831 = vmatprep.mubr.bf16.mxu0 0
    %4832 = vmatmul.mubr.bf16.gmra.mrb[0].mxu0 %v4535
    %v4833 = vpop.f32.mrb[0].mxu0
    %v4834 = vadd.f32 0.0, %v4833
    %v4835 = vpop.f32.mrb[0].mxu0
    %v4836 = vpop.f32.mrb[0].mxu0
    %v4837 = vadd.f32 0.0, %v4836
    %v4838 = vpop.f32.mrb[0].mxu0
    %4839 = vmatprep.mubr.bf16.mxu0 0
    %4840 = vmatmul.mubr.bf16.gmra.mrb[0].mxu0 %v4536
    %v4841 = vpop.f32.mrb[0].mxu0
    %v4842 = vadd.f32 0.0, %v4841
    %v4843 = vpop.f32.mrb[0].mxu0
    %v4844 = vpop.f32.mrb[0].mxu0
    %v4845 = vadd.f32 0.0, %v4844
    %v4846 = vpop.f32.mrb[0].mxu0
    %4847 = vmatprep.mubr.bf16.mxu0 0
    %4848 = vmatmul.mubr.bf16.gmra.mrb[0].mxu0 %v4537
    %v4849 = vpop.f32.mrb[0].mxu0
    %v4850 = vadd.f32 0.0, %v4849
    %v4851 = vpop.f32.mrb[0].mxu0
    %v4852 = vpop.f32.mrb[0].mxu0
    %v4853 = vadd.f32 0.0, %v4852
    %v4854 = vpop.f32.mrb[0].mxu0
    %4855 = vmatprep.mubr.bf16.mxu0 0
    %4856 = vmatmul.mubr.bf16.gmra.mrb[0].mxu0 %v4538
    %v4857 = vpop.f32.mrb[0].mxu0
    %v4858 = vadd.f32 0.0, %v4857
    %v4859 = vpop.f32.mrb[0].mxu0
    %v4860 = vpop.f32.mrb[0].mxu0
    %v4861 = vadd.f32 0.0, %v4860
    %v4862 = vpop.f32.mrb[0].mxu0
    %4863 = vmatprep.mubr.bf16.mxu0 0
    %4864 = vmatmul.mubr.bf16.gmra.mrb[0].mxu0 %v4539
    %v4865 = vpop.f32.mrb[0].mxu0
    %v4866 = vadd.f32 0.0, %v4865
    %v4867 = vpop.f32.mrb[0].mxu0
    %v4868 = vpop.f32.mrb[0].mxu0
    %v4869 = vadd.f32 0.0, %v4868
    %v4870 = vpop.f32.mrb[0].mxu0
    %4871 = vmatprep.mubr.bf16.mxu0 0
    %4872 = vmatmul.mubr.bf16.gmra.mrb[0].mxu0 %v4540
    %v4873 = vpop.f32.mrb[0].mxu0
    %v4874 = vadd.f32 0.0, %v4873
    %v4875 = vpop.f32.mrb[0].mxu0
    %v4876 = vpop.f32.mrb[0].mxu0
    %v4877 = vadd.f32 0.0, %v4876
    %v4878 = vpop.f32.mrb[0].mxu0
    %4879 = vmatprep.mubr.bf16.mxu0 0
    %4880 = vmatmul.mubr.bf16.gmra.mrb[0].mxu0 %v4541
    %v4881 = vpop.f32.mrb[0].mxu0
    %v4882 = vadd.f32 0.0, %v4881
    %v4883 = vpop.f32.mrb[0].mxu0
    %v4884 = vpop.f32.mrb[0].mxu0
    %v4885 = vadd.f32 0.0, %v4884
    %v4886 = vpop.f32.mrb[0].mxu0
    %4887 = vmatprep.mubr.bf16.mxu0 0
    %4888 = vmatmul.mubr.bf16.gmra.mrb[0].mxu0 %v4542
    %v4889 = vpop.f32.mrb[0].mxu0
    %v4890 = vadd.f32 0.0, %v4889
    %v4891 = vpop.f32.mrb[0].mxu0
    %v4892 = vpop.f32.mrb[0].mxu0
    %v4893 = vadd.f32 0.0, %v4892
    %v4894 = vpop.f32.mrb[0].mxu0
    %4895 = vdwg.mxu0
    %v4896 = vld [vmem:[%s8] sm:$0x1]
    %v4897 = vld [vmem:[%s9] sm:$0x1]
    %v4898 = vadd.f32 %v4642, %v4645
    %v4899 = vadd.f32 %v4898, %v4650
    %v4900 = vadd.f32 %v4899, %v4653
    %v4901 = vadd.f32 %v4900, %v4658
    %v4902 = vadd.f32 %v4901, %v4661
    %v4903 = vadd.f32 %v4902, %v4666
    %v4904 = vadd.f32 %v4903, %v4669
    %v4905 = vadd.f32 %v4904, %v4674
    %v4906 = vadd.f32 %v4905, %v4677
    %v4907 = vadd.f32 %v4906, %v4682
    %v4908 = vadd.f32 %v4907, %v4685
    %v4909 = vadd.f32 %v4908, %v4690
    %v4910 = vadd.f32 %v4909, %v4693
    %v4911 = vadd.f32 %v4910, %v4698
    %v4912 = vadd.f32 %v4911, %v4701
    %v4913 = vadd.f32 %v4912, %v4706
    %v4914 = vadd.f32 %v4913, %v4709
    %v4915 = vadd.f32 %v4914, %v4714
    %v4916 = vadd.f32 %v4915, %v4717
    %v4917 = vadd.f32 %v4916, %v4722
    %v4918 = vadd.f32 %v4917, %v4725
    %v4919 = vadd.f32 %v4918, %v4730
    %v4920 = vadd.f32 %v4919, %v4733
    %v4921 = vadd.f32 %v4920, %v4738
    %v4922 = vadd.f32 %v4921, %v4741
    %v4923 = vadd.f32 %v4922, %v4746
    %v4924 = vadd.f32 %v4923, %v4749
    %v4925 = vadd.f32 %v4924, %v4754
    %v4926 = vadd.f32 %v4925, %v4757
    %v4927 = vadd.f32 %v4926, %v4762
    %v4928 = vadd.f32 %v4927, %v4765
    %v4929 = vadd.f32 %v4928, %v4770
    %v4930 = vadd.f32 %v4929, %v4773
    %v4931 = vadd.f32 %v4930, %v4778
    %v4932 = vadd.f32 %v4931, %v4781
    %v4933 = vadd.f32 %v4932, %v4786
    %v4934 = vadd.f32 %v4933, %v4789
    %v4935 = vadd.f32 %v4934, %v4794
    %v4936 = vadd.f32 %v4935, %v4797
    %v4937 = vadd.f32 %v4936, %v4802
    %v4938 = vadd.f32 %v4937, %v4805
    %v4939 = vadd.f32 %v4938, %v4810
    %v4940 = vadd.f32 %v4939, %v4813
    %v4941 = vadd.f32 %v4940, %v4818
    %v4942 = vadd.f32 %v4941, %v4821
    %v4943 = vadd.f32 %v4942, %v4826
    %v4944 = vadd.f32 %v4943, %v4829
    %v4945 = vadd.f32 %v4944, %v4834
    %v4946 = vadd.f32 %v4945, %v4837
    %v4947 = vadd.f32 %v4946, %v4842
    %v4948 = vadd.f32 %v4947, %v4845
    %v4949 = vadd.f32 %v4948, %v4850
    %v4950 = vadd.f32 %v4949, %v4853
    %v4951 = vadd.f32 %v4950, %v4858
    %v4952 = vadd.f32 %v4951, %v4861
    %v4953 = vadd.f32 %v4952, %v4866
    %v4954 = vadd.f32 %v4953, %v4869
    %v4955 = vadd.f32 %v4954, %v4874
    %v4956 = vadd.f32 %v4955, %v4877
    %v4957 = vadd.f32 %v4956, %v4882
    %v4958 = vadd.f32 %v4957, %v4885
    %v4959 = vadd.f32 %v4958, %v4890
    %v4960 = vadd.f32 %v4959, %v4893
    %v4961 = vrot.slane %v4960, 4
    %v4962 = vadd.f32 %v4960, %v4961
    %v4963 = vrot.slane %v4962, 2
    %v4964 = vadd.f32 %v4962, %v4963
    %v4965 = vrot.slane %v4964, 1
    %v4966 = vadd.f32 %v4964, %v4965
    %v4967 = vmul.f32 %v4966, 0.001953125
    %v4968 = vsub.f32 %v4642, %v4967
    %v4969 = vsub.f32 %v4645, %v4967
    %v4970 = vsub.f32 %v4650, %v4967
    %v4971 = vsub.f32 %v4653, %v4967
    %v4972 = vsub.f32 %v4658, %v4967
    %v4973 = vsub.f32 %v4661, %v4967
    %v4974 = vsub.f32 %v4666, %v4967
    %v4975 = vsub.f32 %v4669, %v4967
    %v4976 = vsub.f32 %v4674, %v4967
    %v4977 = vsub.f32 %v4677, %v4967
    %v4978 = vsub.f32 %v4682, %v4967
    %v4979 = vsub.f32 %v4685, %v4967
    %v4980 = vsub.f32 %v4690, %v4967
    %v4981 = vsub.f32 %v4693, %v4967
    %v4982 = vsub.f32 %v4698, %v4967
    %v4983 = vsub.f32 %v4701, %v4967
    %v4984 = vsub.f32 %v4706, %v4967
    %v4985 = vsub.f32 %v4709, %v4967
    %v4986 = vsub.f32 %v4714, %v4967
    %v4987 = vsub.f32 %v4717, %v4967
    %v4988 = vsub.f32 %v4722, %v4967
    %v4989 = vsub.f32 %v4725, %v4967
    %v4990 = vsub.f32 %v4730, %v4967
    %v4991 = vsub.f32 %v4733, %v4967
    %v4992 = vsub.f32 %v4738, %v4967
    %v4993 = vsub.f32 %v4741, %v4967
    %v4994 = vsub.f32 %v4746, %v4967
    %v4995 = vsub.f32 %v4749, %v4967
    %v4996 = vsub.f32 %v4754, %v4967
    %v4997 = vsub.f32 %v4757, %v4967
    %v4998 = vsub.f32 %v4762, %v4967
    %v4999 = vsub.f32 %v4765, %v4967
    %v5000 = vsub.f32 %v4770, %v4967
    %v5001 = vsub.f32 %v4773, %v4967
    %v5002 = vsub.f32 %v4778, %v4967
    %v5003 = vsub.f32 %v4781, %v4967
    %v5004 = vsub.f32 %v4786, %v4967
    %v5005 = vsub.f32 %v4789, %v4967
    %v5006 = vsub.f32 %v4794, %v4967
    %v5007 = vsub.f32 %v4797, %v4967
    %v5008 = vsub.f32 %v4802, %v4967
    %v5009 = vsub.f32 %v4805, %v4967
    %v5010 = vsub.f32 %v4810, %v4967
    %v5011 = vsub.f32 %v4813, %v4967
    %v5012 = vsub.f32 %v4818, %v4967
    %v5013 = vsub.f32 %v4821, %v4967
    %v5014 = vsub.f32 %v4826, %v4967
    %v5015 = vsub.f32 %v4829, %v4967
    %v5016 = vsub.f32 %v4834, %v4967
    %v5017 = vsub.f32 %v4837, %v4967
    %v5018 = vsub.f32 %v4842, %v4967
    %v5019 = vsub.f32 %v4845, %v4967
    %v5020 = vsub.f32 %v4850, %v4967
    %v5021 = vsub.f32 %v4853, %v4967
    %v5022 = vsub.f32 %v4858, %v4967
    %v5023 = vsub.f32 %v4861, %v4967
    %v5024 = vsub.f32 %v4866, %v4967
    %v5025 = vsub.f32 %v4869, %v4967
    %v5026 = vsub.f32 %v4874, %v4967
    %v5027 = vsub.f32 %v4877, %v4967
    %v5028 = vsub.f32 %v4882, %v4967
    %v5029 = vsub.f32 %v4885, %v4967
    %v5030 = vsub.f32 %v4890, %v4967
    %v5031 = vsub.f32 %v4893, %v4967
    %v5032 = vmul.f32 %v4968, %v4968
    %v5033 = vmul.f32 %v4969, %v4969
    %v5034 = vmul.f32 %v4970, %v4970
    %v5035 = vmul.f32 %v4971, %v4971
    %v5036 = vmul.f32 %v4972, %v4972
    %v5037 = vmul.f32 %v4973, %v4973
    %v5038 = vmul.f32 %v4974, %v4974
    %v5039 = vmul.f32 %v4975, %v4975
    %v5040 = vmul.f32 %v4976, %v4976
    %v5041 = vmul.f32 %v4977, %v4977
    %v5042 = vmul.f32 %v4978, %v4978
    %v5043 = vmul.f32 %v4979, %v4979
    %v5044 = vmul.f32 %v4980, %v4980
    %v5045 = vmul.f32 %v4981, %v4981
    %v5046 = vmul.f32 %v4982, %v4982
    %v5047 = vmul.f32 %v4983, %v4983
    %v5048 = vmul.f32 %v4984, %v4984
    %v5049 = vmul.f32 %v4985, %v4985
    %v5050 = vmul.f32 %v4986, %v4986
    %v5051 = vmul.f32 %v4987, %v4987
    %v5052 = vmul.f32 %v4988, %v4988
    %v5053 = vmul.f32 %v4989, %v4989
    %v5054 = vmul.f32 %v4990, %v4990
    %v5055 = vmul.f32 %v4991, %v4991
    %v5056 = vmul.f32 %v4992, %v4992
    %v5057 = vmul.f32 %v4993, %v4993
    %v5058 = vmul.f32 %v4994, %v4994
    %v5059 = vmul.f32 %v4995, %v4995
    %v5060 = vmul.f32 %v4996, %v4996
    %v5061 = vmul.f32 %v4997, %v4997
    %v5062 = vmul.f32 %v4998, %v4998
    %v5063 = vmul.f32 %v4999, %v4999
    %v5064 = vmul.f32 %v5000, %v5000
    %v5065 = vmul.f32 %v5001, %v5001
    %v5066 = vmul.f32 %v5002, %v5002
    %v5067 = vmul.f32 %v5003, %v5003
    %v5068 = vmul.f32 %v5004, %v5004
    %v5069 = vmul.f32 %v5005, %v5005
    %v5070 = vmul.f32 %v5006, %v5006
    %v5071 = vmul.f32 %v5007, %v5007
    %v5072 = vmul.f32 %v5008, %v5008
    %v5073 = vmul.f32 %v5009, %v5009
    %v5074 = vmul.f32 %v5010, %v5010
    %v5075 = vmul.f32 %v5011, %v5011
    %v5076 = vmul.f32 %v5012, %v5012
    %v5077 = vmul.f32 %v5013, %v5013
    %v5078 = vmul.f32 %v5014, %v5014
    %v5079 = vmul.f32 %v5015, %v5015
    %v5080 = vmul.f32 %v5016, %v5016
    %v5081 = vmul.f32 %v5017, %v5017
    %v5082 = vmul.f32 %v5018, %v5018
    %v5083 = vmul.f32 %v5019, %v5019
    %v5084 = vmul.f32 %v5020, %v5020
    %v5085 = vmul.f32 %v5021, %v5021
    %v5086 = vmul.f32 %v5022, %v5022
    %v5087 = vmul.f32 %v5023, %v5023
    %v5088 = vmul.f32 %v5024, %v5024
    %v5089 = vmul.f32 %v5025, %v5025
    %v5090 = vmul.f32 %v5026, %v5026
    %v5091 = vmul.f32 %v5027, %v5027
    %v5092 = vmul.f32 %v5028, %v5028
    %v5093 = vmul.f32 %v5029, %v5029
    %v5094 = vmul.f32 %v5030, %v5030
    %v5095 = vmul.f32 %v5031, %v5031
    %v5096 = vadd.f32 %v5032, %v5033
    %v5097 = vadd.f32 %v5096, %v5034
    %v5098 = vadd.f32 %v5097, %v5035
    %v5099 = vadd.f32 %v5098, %v5036
    %v5100 = vadd.f32 %v5099, %v5037
    %v5101 = vadd.f32 %v5100, %v5038
    %v5102 = vadd.f32 %v5101, %v5039
    %v5103 = vadd.f32 %v5102, %v5040
    %v5104 = vadd.f32 %v5103, %v5041
    %v5105 = vadd.f32 %v5104, %v5042
    %v5106 = vadd.f32 %v5105, %v5043
    %v5107 = vadd.f32 %v5106, %v5044
    %v5108 = vadd.f32 %v5107, %v5045
    %v5109 = vadd.f32 %v5108, %v5046
    %v5110 = vadd.f32 %v5109, %v5047
    %v5111 = vadd.f32 %v5110, %v5048
    %v5112 = vadd.f32 %v5111, %v5049
    %v5113 = vadd.f32 %v5112, %v5050
    %v5114 = vadd.f32 %v5113, %v5051
    %v5115 = vadd.f32 %v5114, %v5052
    %v5116 = vadd.f32 %v5115, %v5053
    %v5117 = vadd.f32 %v5116, %v5054
    %v5118 = vadd.f32 %v5117, %v5055
    %v5119 = vadd.f32 %v5118, %v5056
    %v5120 = vadd.f32 %v5119, %v5057
    %v5121 = vadd.f32 %v5120, %v5058
    %v5122 = vadd.f32 %v5121, %v5059
    %v5123 = vadd.f32 %v5122, %v5060
    %v5124 = vadd.f32 %v5123, %v5061
    %v5125 = vadd.f32 %v5124, %v5062
    %v5126 = vadd.f32 %v5125, %v5063
    %v5127 = vadd.f32 %v5126, %v5064
    %v5128 = vadd.f32 %v5127, %v5065
    %v5129 = vadd.f32 %v5128, %v5066
    %v5130 = vadd.f32 %v5129, %v5067
    %v5131 = vadd.f32 %v5130, %v5068
    %v5132 = vadd.f32 %v5131, %v5069
    %v5133 = vadd.f32 %v5132, %v5070
    %v5134 = vadd.f32 %v5133, %v5071
    %v5135 = vadd.f32 %v5134, %v5072
    %v5136 = vadd.f32 %v5135, %v5073
    %v5137 = vadd.f32 %v5136, %v5074
    %v5138 = vadd.f32 %v5137, %v5075
    %v5139 = vadd.f32 %v5138, %v5076
    %v5140 = vadd.f32 %v5139, %v5077
    %v5141 = vadd.f32 %v5140, %v5078
    %v5142 = vadd.f32 %v5141, %v5079
    %v5143 = vadd.f32 %v5142, %v5080
    %v5144 = vadd.f32 %v5143, %v5081
    %v5145 = vadd.f32 %v5144, %v5082
    %v5146 = vadd.f32 %v5145, %v5083
    %v5147 = vadd.f32 %v5146, %v5084
    %v5148 = vadd.f32 %v5147, %v5085
    %v5149 = vadd.f32 %v5148, %v5086
    %v5150 = vadd.f32 %v5149, %v5087
    %v5151 = vadd.f32 %v5150, %v5088
    %v5152 = vadd.f32 %v5151, %v5089
    %v5153 = vadd.f32 %v5152, %v5090
    %v5154 = vadd.f32 %v5153, %v5091
    %v5155 = vadd.f32 %v5154, %v5092
    %v5156 = vadd.f32 %v5155, %v5093
    %v5157 = vadd.f32 %v5156, %v5094
    %v5158 = vadd.f32 %v5157, %v5095
    %v5159 = vrot.slane %v5158, 4
    %v5160 = vadd.f32 %v5158, %v5159
    %v5161 = vrot.slane %v5160, 2
    %v5162 = vadd.f32 %v5160, %v5161
    %v5163 = vrot.slane %v5162, 1
    %v5164 = vadd.f32 %v5162, %v5163
    %v5165 = vmul.f32 %v5164, 0.001953125
    %v5166 = vadd.f32 %v5165, 1e-05
    %v5167 = vrsqrt.pop %v5166
    %v5168 = vmul.f32 %v4896, %v5167
    %v5170 = vlaneseq
    %v5171 = vshrl.u32 %v5170, 7
    %v5172 = vsub.s32 0, %v5171
    %v5173 = vrot.slane %v5168, %v5172
    %v5175 = vmul.f32 %v4968, %v5173
    %v5176 = vmul.f32 %v4969, %v5173
    %v5177 = vmul.f32 %v4970, %v5173
    %v5178 = vmul.f32 %v4971, %v5173
    %v5179 = vmul.f32 %v4972, %v5173
    %v5180 = vmul.f32 %v4973, %v5173
    %v5181 = vmul.f32 %v4974, %v5173
    %v5182 = vmul.f32 %v4975, %v5173
    %v5183 = vmul.f32 %v4976, %v5173
    %v5184 = vmul.f32 %v4977, %v5173
    %v5185 = vmul.f32 %v4978, %v5173
    %v5186 = vmul.f32 %v4979, %v5173
    %v5187 = vmul.f32 %v4980, %v5173
    %v5188 = vmul.f32 %v4981, %v5173
    %v5189 = vmul.f32 %v4982, %v5173
    %v5190 = vmul.f32 %v4983, %v5173
    %v5191 = vmul.f32 %v4984, %v5173
    %v5192 = vmul.f32 %v4985, %v5173
    %v5193 = vmul.f32 %v4986, %v5173
    %v5194 = vmul.f32 %v4987, %v5173
    %v5195 = vmul.f32 %v4988, %v5173
    %v5196 = vmul.f32 %v4989, %v5173
    %v5197 = vmul.f32 %v4990, %v5173
    %v5198 = vmul.f32 %v4991, %v5173
    %v5199 = vmul.f32 %v4992, %v5173
    %v5200 = vmul.f32 %v4993, %v5173
    %v5201 = vmul.f32 %v4994, %v5173
    %v5202 = vmul.f32 %v4995, %v5173
    %v5203 = vmul.f32 %v4996, %v5173
    %v5204 = vmul.f32 %v4997, %v5173
    %v5205 = vmul.f32 %v4998, %v5173
    %v5206 = vmul.f32 %v4999, %v5173
    %v5207 = vmul.f32 %v5000, %v5173
    %v5208 = vmul.f32 %v5001, %v5173
    %v5209 = vmul.f32 %v5002, %v5173
    %v5210 = vmul.f32 %v5003, %v5173
    %v5211 = vmul.f32 %v5004, %v5173
    %v5212 = vmul.f32 %v5005, %v5173
    %v5213 = vmul.f32 %v5006, %v5173
    %v5214 = vmul.f32 %v5007, %v5173
    %v5215 = vmul.f32 %v5008, %v5173
    %v5216 = vmul.f32 %v5009, %v5173
    %v5217 = vmul.f32 %v5010, %v5173
    %v5218 = vmul.f32 %v5011, %v5173
    %v5219 = vmul.f32 %v5012, %v5173
    %v5220 = vmul.f32 %v5013, %v5173
    %v5221 = vmul.f32 %v5014, %v5173
    %v5222 = vmul.f32 %v5015, %v5173
    %v5223 = vmul.f32 %v5016, %v5173
    %v5224 = vmul.f32 %v5017, %v5173
    %v5225 = vmul.f32 %v5018, %v5173
    %v5226 = vmul.f32 %v5019, %v5173
    %v5227 = vmul.f32 %v5020, %v5173
    %v5228 = vmul.f32 %v5021, %v5173
    %v5229 = vmul.f32 %v5022, %v5173
    %v5230 = vmul.f32 %v5023, %v5173
    %v5231 = vmul.f32 %v5024, %v5173
    %v5232 = vmul.f32 %v5025, %v5173
    %v5233 = vmul.f32 %v5026, %v5173
    %v5234 = vmul.f32 %v5027, %v5173
    %v5235 = vmul.f32 %v5028, %v5173
    %v5236 = vmul.f32 %v5029, %v5173
    %v5237 = vmul.f32 %v5030, %v5173
    %v5238 = vmul.f32 %v5031, %v5173
    %v5240 = vlaneseq
    %v5241 = vshrl.u32 %v5240, 7
    %v5242 = vsub.s32 0, %v5241
    %v5243 = vrot.slane %v4897, %v5242
    %v5245 = vadd.f32 %v5175, %v5243
    %v5246 = vadd.f32 %v5176, %v5243
    %v5247 = vadd.f32 %v5177, %v5243
    %v5248 = vadd.f32 %v5178, %v5243
    %v5249 = vadd.f32 %v5179, %v5243
    %v5250 = vadd.f32 %v5180, %v5243
    %v5251 = vadd.f32 %v5181, %v5243
    %v5252 = vadd.f32 %v5182, %v5243
    %v5253 = vadd.f32 %v5183, %v5243
    %v5254 = vadd.f32 %v5184, %v5243
    %v5255 = vadd.f32 %v5185, %v5243
    %v5256 = vadd.f32 %v5186, %v5243
    %v5257 = vadd.f32 %v5187, %v5243
    %v5258 = vadd.f32 %v5188, %v5243
    %v5259 = vadd.f32 %v5189, %v5243
    %v5260 = vadd.f32 %v5190, %v5243
    %v5261 = vadd.f32 %v5191, %v5243
    %v5262 = vadd.f32 %v5192, %v5243
    %v5263 = vadd.f32 %v5193, %v5243
    %v5264 = vadd.f32 %v5194, %v5243
    %v5265 = vadd.f32 %v5195, %v5243
    %v5266 = vadd.f32 %v5196, %v5243
    %v5267 = vadd.f32 %v5197, %v5243
    %v5268 = vadd.f32 %v5198, %v5243
    %v5269 = vadd.f32 %v5199, %v5243
    %v5270 = vadd.f32 %v5200, %v5243
    %v5271 = vadd.f32 %v5201, %v5243
    %v5272 = vadd.f32 %v5202, %v5243
    %v5273 = vadd.f32 %v5203, %v5243
    %v5274 = vadd.f32 %v5204, %v5243
    %v5275 = vadd.f32 %v5205, %v5243
    %v5276 = vadd.f32 %v5206, %v5243
    %v5277 = vadd.f32 %v5207, %v5243
    %v5278 = vadd.f32 %v5208, %v5243
    %v5279 = vadd.f32 %v5209, %v5243
    %v5280 = vadd.f32 %v5210, %v5243
    %v5281 = vadd.f32 %v5211, %v5243
    %v5282 = vadd.f32 %v5212, %v5243
    %v5283 = vadd.f32 %v5213, %v5243
    %v5284 = vadd.f32 %v5214, %v5243
    %v5285 = vadd.f32 %v5215, %v5243
    %v5286 = vadd.f32 %v5216, %v5243
    %v5287 = vadd.f32 %v5217, %v5243
    %v5288 = vadd.f32 %v5218, %v5243
    %v5289 = vadd.f32 %v5219, %v5243
    %v5290 = vadd.f32 %v5220, %v5243
    %v5291 = vadd.f32 %v5221, %v5243
    %v5292 = vadd.f32 %v5222, %v5243
    %v5293 = vadd.f32 %v5223, %v5243
    %v5294 = vadd.f32 %v5224, %v5243
    %v5295 = vadd.f32 %v5225, %v5243
    %v5296 = vadd.f32 %v5226, %v5243
    %v5297 = vadd.f32 %v5227, %v5243
    %v5298 = vadd.f32 %v5228, %v5243
    %v5299 = vadd.f32 %v5229, %v5243
    %v5300 = vadd.f32 %v5230, %v5243
    %v5301 = vadd.f32 %v5231, %v5243
    %v5302 = vadd.f32 %v5232, %v5243
    %v5303 = vadd.f32 %v5233, %v5243
    %v5304 = vadd.f32 %v5234, %v5243
    %v5305 = vadd.f32 %v5235, %v5243
    %v5306 = vadd.f32 %v5236, %v5243
    %v5307 = vadd.f32 %v5237, %v5243
    %v5308 = vadd.f32 %v5238, %v5243
    %v5309 = vadd.f32 %v5245, %v37
    %v5310 = vadd.f32 %v5246, %v38
    %v5311 = vadd.f32 %v5247, %v39
    %v5312 = vadd.f32 %v5248, %v40
    %v5313 = vadd.f32 %v5249, %v41
    %v5314 = vadd.f32 %v5250, %v42
    %v5315 = vadd.f32 %v5251, %v43
    %v5316 = vadd.f32 %v5252, %v44
    %v5317 = vadd.f32 %v5253, %v45
    %v5318 = vadd.f32 %v5254, %v46
    %v5319 = vadd.f32 %v5255, %v47
    %v5320 = vadd.f32 %v5256, %v48
    %v5321 = vadd.f32 %v5257, %v49
    %v5322 = vadd.f32 %v5258, %v50
    %v5323 = vadd.f32 %v5259, %v51
    %v5324 = vadd.f32 %v5260, %v52
    %v5325 = vadd.f32 %v5261, %v53
    %v5326 = vadd.f32 %v5262, %v54
    %v5327 = vadd.f32 %v5263, %v55
    %v5328 = vadd.f32 %v5264, %v56
    %v5329 = vadd.f32 %v5265, %v57
    %v5330 = vadd.f32 %v5266, %v58
    %v5331 = vadd.f32 %v5267, %v59
    %v5332 = vadd.f32 %v5268, %v60
    %v5333 = vadd.f32 %v5269, %v61
    %v5334 = vadd.f32 %v5270, %v62
    %v5335 = vadd.f32 %v5271, %v63
    %v5336 = vadd.f32 %v5272, %v64
    %v5337 = vadd.f32 %v5273, %v65
    %v5338 = vadd.f32 %v5274, %v66
    %v5339 = vadd.f32 %v5275, %v67
    %v5340 = vadd.f32 %v5276, %v68
    %v5341 = vadd.f32 %v5277, %v69
    %v5342 = vadd.f32 %v5278, %v70
    %v5343 = vadd.f32 %v5279, %v71
    %v5344 = vadd.f32 %v5280, %v72
    %v5345 = vadd.f32 %v5281, %v73
    %v5346 = vadd.f32 %v5282, %v74
    %v5347 = vadd.f32 %v5283, %v75
    %v5348 = vadd.f32 %v5284, %v76
    %v5349 = vadd.f32 %v5285, %v77
    %v5350 = vadd.f32 %v5286, %v78
    %v5351 = vadd.f32 %v5287, %v79
    %v5352 = vadd.f32 %v5288, %v80
    %v5353 = vadd.f32 %v5289, %v81
    %v5354 = vadd.f32 %v5290, %v82
    %v5355 = vadd.f32 %v5291, %v83
    %v5356 = vadd.f32 %v5292, %v84
    %v5357 = vadd.f32 %v5293, %v85
    %v5358 = vadd.f32 %v5294, %v86
    %v5359 = vadd.f32 %v5295, %v87
    %v5360 = vadd.f32 %v5296, %v88
    %v5361 = vadd.f32 %v5297, %v89
    %v5362 = vadd.f32 %v5298, %v90
    %v5363 = vadd.f32 %v5299, %v91
    %v5364 = vadd.f32 %v5300, %v92
    %v5365 = vadd.f32 %v5301, %v93
    %v5366 = vadd.f32 %v5302, %v94
    %v5367 = vadd.f32 %v5303, %v95
    %v5368 = vadd.f32 %v5304, %v96
    %v5369 = vadd.f32 %v5305, %v97
    %v5370 = vadd.f32 %v5306, %v98
    %v5371 = vadd.f32 %v5307, %v99
    %v5372 = vadd.f32 %v5308, %v100
    %5373 = vst [vmem:[#allocation3] sm:$0xff] %v5309
    %5374 = vst [vmem:[#allocation3 + $0x8] sm:$0xff] %v5310
    %5375 = vst [vmem:[#allocation3 + $0x10] sm:$0xff] %v5311
    %5376 = vst [vmem:[#allocation3 + $0x18] sm:$0xff] %v5312
    %5377 = vst [vmem:[#allocation3 + $0x20] sm:$0xff] %v5313
    %5378 = vst [vmem:[#allocation3 + $0x28] sm:$0xff] %v5314
    %5379 = vst [vmem:[#allocation3 + $0x30] sm:$0xff] %v5315
    %5380 = vst [vmem:[#allocation3 + $0x38] sm:$0xff] %v5316
    %5381 = vst [vmem:[#allocation3 + $0x40] sm:$0xff] %v5317
    %5382 = vst [vmem:[#allocation3 + $0x48] sm:$0xff] %v5318
    %5383 = vst [vmem:[#allocation3 + $0x50] sm:$0xff] %v5319
    %5384 = vst [vmem:[#allocation3 + $0x58] sm:$0xff] %v5320
    %5385 = vst [vmem:[#allocation3 + $0x60] sm:$0xff] %v5321
    %5386 = vst [vmem:[#allocation3 + $0x68] sm:$0xff] %v5322
    %5387 = vst [vmem:[#allocation3 + $0x70] sm:$0xff] %v5323
    %5388 = vst [vmem:[#allocation3 + $0x78] sm:$0xff] %v5324
    %5389 = vst [vmem:[#allocation3 + $0x80] sm:$0xff] %v5325
    %5390 = vst [vmem:[#allocation3 + $0x88] sm:$0xff] %v5326
    %5391 = vst [vmem:[#allocation3 + $0x90] sm:$0xff] %v5327
    %5392 = vst [vmem:[#allocation3 + $0x98] sm:$0xff] %v5328
    %5393 = vst [vmem:[#allocation3 + $0xa0] sm:$0xff] %v5329
    %5394 = vst [vmem:[#allocation3 + $0xa8] sm:$0xff] %v5330
    %5395 = vst [vmem:[#allocation3 + $0xb0] sm:$0xff] %v5331
    %5396 = vst [vmem:[#allocation3 + $0xb8] sm:$0xff] %v5332
    %5397 = vst [vmem:[#allocation3 + $0xc0] sm:$0xff] %v5333
    %5398 = vst [vmem:[#allocation3 + $0xc8] sm:$0xff] %v5334
    %5399 = vst [vmem:[#allocation3 + $0xd0] sm:$0xff] %v5335
    %5400 = vst [vmem:[#allocation3 + $0xd8] sm:$0xff] %v5336
    %5401 = vst [vmem:[#allocation3 + $0xe0] sm:$0xff] %v5337
    %5402 = vst [vmem:[#allocation3 + $0xe8] sm:$0xff] %v5338
    %5403 = vst [vmem:[#allocation3 + $0xf0] sm:$0xff] %v5339
    %5404 = vst [vmem:[#allocation3 + $0xf8] sm:$0xff] %v5340
    %5405 = vst [vmem:[#allocation3 + $0x100] sm:$0xff] %v5341
    %5406 = vst [vmem:[#allocation3 + $0x108] sm:$0xff] %v5342
    %5407 = vst [vmem:[#allocation3 + $0x110] sm:$0xff] %v5343
    %5408 = vst [vmem:[#allocation3 + $0x118] sm:$0xff] %v5344
    %5409 = vst [vmem:[#allocation3 + $0x120] sm:$0xff] %v5345
    %5410 = vst [vmem:[#allocation3 + $0x128] sm:$0xff] %v5346
    %5411 = vst [vmem:[#allocation3 + $0x130] sm:$0xff] %v5347
    %5412 = vst [vmem:[#allocation3 + $0x138] sm:$0xff] %v5348
    %5413 = vst [vmem:[#allocation3 + $0x140] sm:$0xff] %v5349
    %5414 = vst [vmem:[#allocation3 + $0x148] sm:$0xff] %v5350
    %5415 = vst [vmem:[#allocation3 + $0x150] sm:$0xff] %v5351
    %5416 = vst [vmem:[#allocation3 + $0x158] sm:$0xff] %v5352
    %5417 = vst [vmem:[#allocation3 + $0x160] sm:$0xff] %v5353
    %5418 = vst [vmem:[#allocation3 + $0x168] sm:$0xff] %v5354
    %5419 = vst [vmem:[#allocation3 + $0x170] sm:$0xff] %v5355
    %5420 = vst [vmem:[#allocation3 + $0x178] sm:$0xff] %v5356
    %5421 = vst [vmem:[#allocation3 + $0x180] sm:$0xff] %v5357
    %5422 = vst [vmem:[#allocation3 + $0x188] sm:$0xff] %v5358
    %5423 = vst [vmem:[#allocation3 + $0x190] sm:$0xff] %v5359
    %5424 = vst [vmem:[#allocation3 + $0x198] sm:$0xff] %v5360
    %5425 = vst [vmem:[#allocation3 + $0x1a0] sm:$0xff] %v5361
    %5426 = vst [vmem:[#allocation3 + $0x1a8] sm:$0xff] %v5362
    %5427 = vst [vmem:[#allocation3 + $0x1b0] sm:$0xff] %v5363
    %5428 = vst [vmem:[#allocation3 + $0x1b8] sm:$0xff] %v5364
    %5429 = vst [vmem:[#allocation3 + $0x1c0] sm:$0xff] %v5365
    %5430 = vst [vmem:[#allocation3 + $0x1c8] sm:$0xff] %v5366
    %5431 = vst [vmem:[#allocation3 + $0x1d0] sm:$0xff] %v5367
    %5432 = vst [vmem:[#allocation3 + $0x1d8] sm:$0xff] %v5368
    %5433 = vst [vmem:[#allocation3 + $0x1e0] sm:$0xff] %v5369
    %5434 = vst [vmem:[#allocation3 + $0x1e8] sm:$0xff] %v5370
    %5435 = vst [vmem:[#allocation3 + $0x1f0] sm:$0xff] %v5371
    %5436 = vst [vmem:[#allocation3 + $0x1f8] sm:$0xff] %v5372
    // Predicated region
    $region42: #{atrous_bottleneck_forward.1} parent=1 // pred_check
      _
    $region43: #{atrous_bottleneck_forward.1} parent=1 // pred_check_branch
      %5438 = sbr.rel (0) target = $region45
    $region44: #{atrous_bottleneck_forward.1} parent=1 // pred_region
      %s5440 = ssub.s32 8192, 8192
      %5441 = vsyncadd [#allocation4], %s5440
      %s5442 = sshll.u32 [#allocation3], 4
      %s5443 = int_to_ptr.vmem [resolvable:$true] %s5442
      %5448 = dma.vmem_to_hbm [thread:$0]  %s5443, 8192, %s10, [#allocation4], 128, 128, 8
    $region45: #{atrous_bottleneck_forward.1} parent=1 // pred_fallthru
      _
    // Predicated region
    $region46: #{atrous_bottleneck_forward.1} parent=1 // pred_check
      _
    $region47: #{atrous_bottleneck_forward.1} parent=1 // pred_check_branch
      %5450 = sbr.rel (0) target = $region49
    $region48: #{atrous_bottleneck_forward.1} parent=1 // pred_region
      %5451 = dma.done [#allocation4], 8192
    $region49: #{atrous_bottleneck_forward.1} parent=1 // pred_fallthru
      _
    %5452 = vsyncpa [#allocation4], 1

</llo_original>
